<compile_context>
chip_gen: v6e
topology: v6e:2x2x1
jax: 0.10.0
libtpu: 0.0.40
codegen_flags: <defaults>
</compile_context>

<pallas_src>
import functools
import numpy as np
import jax
import jax.numpy as jnp
from jax.experimental import pallas as pl
from jax.experimental.pallas import tpu as pltpu


def _round_up(a, b):
    return (a + b - 1) // b * b


# ----------------------- host-side glue: spherical grid ----------------------
def get_xy(delta_phi, delta_theta, ksize):
    grid = []
    for y in range(ksize):
        row = []
        for x in range(ksize):
            row.append((np.tan((x - (ksize - 1) / 2) * delta_theta),
                        -1 / np.cos((x - (ksize - 1) / 2) * delta_theta)
                        * np.tan((y - (ksize - 1) / 2) * delta_phi)))
        grid.append(row)
    return np.array(grid)


def cal_index(h, w, img_r, img_c, ksize):
    phi = -((img_r + 0.5) / h * np.pi - np.pi / 2)
    theta = (img_c + 0.5) / w * 2 * np.pi - np.pi
    delta_phi = np.pi / h
    delta_theta = 2 * np.pi / w
    xys = get_xy(delta_phi, delta_theta, ksize)
    x = xys[..., 0]
    y = xys[..., 1]
    with np.errstate(divide="ignore", invalid="ignore"):
        rho = np.sqrt(x ** 2 + y ** 2)
        v = np.arctan(rho)
        new_phi = np.arcsin(np.cos(v) * np.sin(phi) + y * np.sin(v) * np.cos(phi) / rho)
        new_theta = theta + np.arctan(
            x * np.sin(v) / (rho * np.cos(phi) * np.cos(v) - y * np.sin(phi) * np.sin(v)))
    new_r = (-new_phi + np.pi / 2) * h / np.pi - 0.5
    new_c = (new_theta + np.pi) * w / 2 / np.pi - 0.5
    new_c = (new_c + w) % w
    new_result = np.stack([new_r, new_c], axis=-1)
    if ksize % 2 != 0:
        new_result[int((ksize - 1) / 2), int((ksize - 1) / 2)] = (img_r, img_c)
    return new_result


def gen_filters_coordinates(h, w, ksize=3, stride=1):
    co = np.array([[cal_index(h, w, i, j, ksize) for j in range(0, w, stride)]
                   for i in range(0, h, stride)])
    return np.ascontiguousarray(co.transpose([4, 0, 1, 2, 3]))


def gen_grid_coordinates(h, w, ksize=3, stride=1):
    coordinates = gen_filters_coordinates(h, w, ksize, stride).copy()
    coordinates[0] = coordinates[0] * 2 / h - 1
    coordinates[1] = coordinates[1] * 2 / w - 1
    coordinates = coordinates[::-1]
    coordinates = coordinates.transpose(1, 3, 2, 4, 0)
    sz = coordinates.shape
    coordinates = coordinates.reshape(1, sz[0] * sz[1], sz[2] * sz[3], sz[4])
    return coordinates.copy()


def build_sampling_tensor(h, w, ksize, stride):
    """Per-tap dense bilinear sampling matrices (align_corners=False, zeros pad).

    Returns S of shape (k*k, H*W, Ho*Wo) such that  x_flat @ S[t]  gives the
    grid-sampled image at tap t (ky*k+kx), laid out as oh*Wo + ow.
    """
    coords = gen_grid_coordinates(h, w, ksize, stride)[0].astype(np.float64)
    Hs, Ws, _ = coords.shape
    assert Hs % ksize == 0 and Ws % ksize == 0, "sampled grid not divisible by ksize"
    Ho, Wo = Hs // ksize, Ws // ksize
    gx, gy = coords[..., 0], coords[..., 1]
    ix = ((gx + 1.0) * w - 1.0) / 2.0
    iy = ((gy + 1.0) * h - 1.0) / 2.0
    ix0 = np.floor(ix); iy0 = np.floor(iy)
    ix1 = ix0 + 1.0;    iy1 = iy0 + 1.0
    wx1 = ix - ix0; wx0 = 1.0 - wx1
    wy1 = iy - iy0; wy0 = 1.0 - wy1

    S = np.zeros((Hs * Ws, h * w), dtype=np.float64)
    rows = np.arange(Hs * Ws)
    for cx, wx in ((ix0, wx0), (ix1, wx1)):
        for cy, wy in ((iy0, wy0), (iy1, wy1)):
            valid = (cx >= 0) & (cx <= w - 1) & (cy >= 0) & (cy <= h - 1)
            wgt = np.where(valid, wx * wy, 0.0).reshape(-1)
            col = (np.clip(cy, 0, h - 1) * w
                   + np.clip(cx, 0, w - 1)).astype(np.int64).reshape(-1)
            np.add.at(S, (rows, col), wgt)

    # rows (oh*k+ky)*Ws + (ow*k+kx)  ->  (ky*k+kx, oh*Wo+ow, hw)
    S = S.reshape(Ho, ksize, Wo, ksize, h * w).transpose(1, 3, 0, 2, 4)
    S = S.reshape(ksize * ksize, Ho * Wo, h * w)          # (kk, how, HW)
    S = np.ascontiguousarray(S.transpose(0, 2, 1))        # (kk, HW, how)
    return S.astype(np.float32), Ho, Wo


# ------------------------------ tile-plan helpers -----------------------------
def _fit_tile(total, target, align=128):
    """Largest tile <= target (aligned) that minimizes padding of `total`."""
    total_a = _round_up(max(int(total), 1), align)
    if total_a <= target:
        return total_a
    nblocks = -(-total // target)                  # ceil
    return _round_up(-(-total // nblocks), align)  # ceil(total/nblocks) aligned


def _pick_tm(nc):
    """Prefer large tm (flops per S-byte ~ tm) unless NC padding waste > 12.5%."""
    cands = (512, 256, 128)
    for tm in cands:
        if (_round_up(nc, tm) - nc) * 8 <= nc:
            return tm
    # small NC: minimize padding, tie-break toward the larger tile
    return min(cands, key=lambda t: (_round_up(nc, t) - nc, -t))


def _vmem_bytes(tm, tk, tn, kk):
    return (2 * tm * tk * 2            # x tile, double-buffered, bf16
            + 2 * kk * tk * tn * 2     # S slab (all taps), double-buffered, bf16
            + 2 * tm * tn * 4          # output tile, double-buffered, f32
            + kk * tm * tn * 4)        # per-tap f32 accumulators (scratch)


# -------------------------------- Pallas kernel -------------------------------
def _sphere_pool_kernel(kk, bmap_ref, x_ref, s_ref, o_ref, acc_ref):
    del bmap_ref                      # consumed by the index_maps only
    s_idx = pl.program_id(2)          # sparse H*W reduction axis (arbitrary)

    @pl.when(s_idx == 0)
    def _():
        acc_ref[...] = jnp.zeros_like(acc_ref)

    # kk matmuls per step: x tile is DMA'd once and reused across all taps.
    for t in range(kk):
        acc_ref[t] = acc_ref[t] + jnp.dot(
            x_ref[...], s_ref[t], preferred_element_type=jnp.float32)

    @pl.when(s_idx == pl.num_programs(2) - 1)
    def _():
        m = acc_ref[0]
        for t in range(1, kk):
            m = jnp.maximum(m, acc_ref[t])
        o_ref[...] = m.astype(o_ref.dtype)


def sphere_max_pool2d(x, kernel_size=3, stride=1):
    # layout: x is NCHW (N, C, H, W) float32, matching the PyTorch module.
    N, C, H, W = x.shape
    S3, Ho, Wo = build_sampling_tensor(H, W, kernel_size, stride)
    kk = kernel_size * kernel_size
    how = Ho * Wo
    NC, HW = N * C, H * W

    # ---------------- shape-aware tile plan (bf16 operands, f32 accumulate) ---
    tm = _pick_tm(NC)
    tk = _fit_tile(HW, 1024)
    tn = _fit_tile(how, 512)

    # VMEM budget: stay well under v7x's 64 MiB/TC (also fine on v5e/v6e).
    budget = 30 * 1024 * 1024
    while _vmem_bytes(tm, tk, tn, kk) > budget:
        if tk > 128:
            tk -= 128
        elif tn > 128:
            tn -= 128
        elif tm > 128:
            tm -= 128
        else:
            break

    # Megacore (v7x has 2 TensorCores): ensure >= 2 parallel tiles if possible.
    if (_round_up(NC, tm) // tm) * (_round_up(how, tn) // tn) < 2:
        if tn > 128:
            tn = max(128, _round_up(tn // 2, 128))
        elif tm > 128:
            tm = max(128, _round_up(tm // 2, 128))

    NCp = _round_up(NC, tm)
    HWp = _round_up(HW, tk)
    howp = _round_up(how, tn)
    gi, gj, gk_total = NCp // tm, howp // tn, HWp // tk

    # ---------------- pad operands (zeros contribute nothing, trimmed later) --
    x_flat = x.reshape(NC, HW).astype(jnp.bfloat16)
    x_flat = jnp.pad(x_flat, ((0, NCp - NC), (0, HWp - HW)))
    Sp = np.pad(S3, ((0, 0), (0, HWp - HW), (0, howp - how)))   # (kk, HWp, howp)

    # ---------------- block-sparsity map over the H*W reduction axis ----------
    # For each output tile j: which HW k-blocks have ANY nonzero (union over
    # taps).  Other blocks are exactly zero and are skipped entirely.
    nzmask = (Sp.reshape(kk, gk_total, tk, gj, tn) != 0).any(axis=(0, 2, 4))
    counts = nzmask.sum(axis=0)                                  # (gj,)
    gk_eff = max(1, int(counts.max()))
    bmap = np.zeros((gj, gk_eff), dtype=np.int32)
    for j in range(gj):
        nz = np.nonzero(nzmask[:, j])[0].astype(np.int32)
        if nz.size == 0:
            nz = np.zeros((1,), np.int32)       # all-zero tile: any block works
        if nz.size < gk_eff:
            # pad with an all-zero block for this tile (exists by construction)
            zero_blocks = np.nonzero(~nzmask[:, j])[0]
            nz = np.concatenate(
                [nz, np.full(gk_eff - nz.size, np.int32(zero_blocks[0]), np.int32)])
        bmap[j] = nz
    bmap_flat = jnp.asarray(bmap.reshape(-1), dtype=jnp.int32)   # 1D -> cheap SMEM
    s_dev = jnp.asarray(Sp, dtype=jnp.bfloat16)                  # (kk, HWp, howp)

    # grid: (output-col tiles, NC tiles, sparse HW blocks); reduction innermost.
    grid = (gj, gi, gk_eff)
    kernel = functools.partial(_sphere_pool_kernel, kk)

    out = pl.pallas_call(
        kernel,
        out_shape=jax.ShapeDtypeStruct((NCp, howp), jnp.float32),
        grid_spec=pltpu.PrefetchScalarGridSpec(
            num_scalar_prefetch=1,
            grid=grid,
            in_specs=[
                pl.BlockSpec((tm, tk),
                             lambda j, i, s, bm: (i, bm[j * gk_eff + s])),
                pl.BlockSpec((kk, tk, tn),
                             lambda j, i, s, bm: (0, bm[j * gk_eff + s], j)),
            ],
            out_specs=pl.BlockSpec((tm, tn), lambda j, i, s, bm: (i, j)),
            scratch_shapes=[pltpu.VMEM((kk, tm, tn), jnp.float32)],
        ),
        compiler_params=pltpu.CompilerParams(
            dimension_semantics=("parallel", "parallel", "arbitrary"),
            vmem_limit_bytes=48 * 1024 * 1024,
        ),
    )(bmap_flat, x_flat, s_dev)
    return out[:NC, :how].reshape(N, C, Ho, Wo)


# ------------------------------ numpy reference -------------------------------
def ref_forward(x, h, w, ksize, stride):
    N, C, H, W = x.shape
    g = gen_grid_coordinates(h, w, ksize, stride)[0]
    Hs, Ws, _ = g.shape
    ix = ((g[..., 0] + 1) * W - 1) / 2
    iy = ((g[..., 1] + 1) * H - 1) / 2
    ix0 = np.floor(ix).astype(np.int64); iy0 = np.floor(iy).astype(np.int64)
    ix1 = ix0 + 1; iy1 = iy0 + 1
    wx1 = ix - ix0; wx0 = 1 - wx1
    wy1 = iy - iy0; wy0 = 1 - wy1
    sampled = np.zeros((N, C, Hs, Ws), np.float64)
    for cx, wx in ((ix0, wx0), (ix1, wx1)):
        for cy, wy in ((iy0, wy0), (iy1, wy1)):
            valid = (cx >= 0) & (cx < W) & (cy >= 0) & (cy < H)
            val = x[:, :, np.clip(cy, 0, H - 1), np.clip(cx, 0, W - 1)]
            sampled += np.where(valid, wx * wy, 0.0)[None, None] * val
    Ho, Wo = Hs // ksize, Ws // ksize
    return sampled.reshape(N, C, Ho, ksize, Wo, ksize).max(axis=(3, 5)).astype(np.float32)


if __name__ == "__main__":
    # SphereMaxPool2D(kernel_size=3, stride=1) has no learnable parameters.
    key = jax.random.PRNGKey(0)
    x = jax.random.normal(key, (2, 4, 16, 16), dtype=jnp.float32)

    out = sphere_max_pool2d(x, kernel_size=3, stride=1)
    out = jax.block_until_ready(out)

    ref = ref_forward(np.asarray(x), 16, 16, 3, 1)
    assert out.shape == ref.shape, (out.shape, ref.shape)
    # bf16 operands with f32 accumulation -> ~0.4% relative sampling error.
    np.testing.assert_allclose(np.asarray(out), ref, rtol=2e-2, atol=2e-2)
    print("KERNEL_OK")
</pallas_src>

<mosaic_0001>
module attributes {stable_mosaic.version = 11 : i64} {
  func.func @_sphere_pool_kernel(%arg0: i32, %arg1: i32, %arg2: i32, %arg3: memref<2xi32, #tpu.memory_space<smem>>, %arg4: memref<128x256xbf16, #tpu.memory_space<vmem>>, %arg5: memref<9x256x128xbf16, #tpu.memory_space<vmem>>, %arg6: memref<128x128xf32, #tpu.memory_space<vmem>>, %arg7: memref<9x128x128xf32, #tpu.memory_space<vmem>>) attributes {dimension_semantics = [#tpu.dimension_semantics<parallel>, #tpu.dimension_semantics<parallel>, #tpu.dimension_semantics<arbitrary>], iteration_bounds = array<i64: 2, 1, 1>, scalar_prefetch = 1 : i64, scratch_operands = 1 : i64, tpu.core_type = #tpu.core_type<tc>, window_params = [{transform_indices = @transform_0, window_bounds = array<i64: 128, 256>}, {transform_indices = @transform_1, window_bounds = array<i64: 9, 256, 128>}, {transform_indices = @transform_2, window_bounds = array<i64: 128, 128>}]} {
    %c0_i32 = arith.constant 0 : i32
    %0 = arith.cmpi eq, %arg2, %c0_i32 : i32
    %1 = arith.extui %0 : i1 to i32
    %c0_i32_0 = arith.constant 0 : i32
    %2 = arith.cmpi ne, %1, %c0_i32_0 : i32
    scf.if %2 {
      %cst_101 = arith.constant 0.000000e+00 : f32
      %96 = vector.broadcast %cst_101 : f32 to vector<9x128x128xf32>
      %c0_102 = arith.constant 0 : index
      %c0_103 = arith.constant 0 : index
      %c0_104 = arith.constant 0 : index
      %97 = vector.load %arg7[%c0_102, %c0_103, %c0_104] : memref<9x128x128xf32, #tpu.memory_space<vmem>>, vector<9x128x128xf32>
      tpu.vector_store %arg7[%c0_102, %c0_103, %c0_104], %96 {strides = array<i32>} : memref<9x128x128xf32, #tpu.memory_space<vmem>>, vector<9x128x128xf32>,
    } else {
    }
    %c0 = arith.constant 0 : index
    %c0_1 = arith.constant 0 : index
    %c0_2 = arith.constant 0 : index
    %3 = vector.load %arg7[%c0, %c0_1, %c0_2] : memref<9x128x128xf32, #tpu.memory_space<vmem>>, vector<1x128x128xf32>
    %4 = vector.shape_cast %3 : vector<1x128x128xf32> to vector<128x128xf32>
    %c0_3 = arith.constant 0 : index
    %c0_4 = arith.constant 0 : index
    %5 = vector.load %arg4[%c0_3, %c0_4] : memref<128x256xbf16, #tpu.memory_space<vmem>>, vector<128x256xbf16>
    %c0_5 = arith.constant 0 : index
    %c0_6 = arith.constant 0 : index
    %c0_7 = arith.constant 0 : index
    %6 = vector.load %arg5[%c0_5, %c0_6, %c0_7] : memref<9x256x128xbf16, #tpu.memory_space<vmem>>, vector<1x256x128xbf16>
    %7 = vector.shape_cast %6 : vector<1x256x128xbf16> to vector<256x128xbf16>
    %cst = arith.constant dense<0.000000e+00> : vector<128x128xf32>
    %8 = tpu.matmul %5, %7, %cst {dimension_numbers = #tpu.dot_dimension_numbers<[1], [0], [0], [1], [0, 0, 1, 1], [], []>} : vector<128x256xbf16>, vector<256x128xbf16>, vector<128x128xf32> -> vector<128x128xf32>
    %9 = arith.addf %4, %8 : vector<128x128xf32>
    %c0_8 = arith.constant 0 : index
    %c0_9 = arith.constant 0 : index
    %c0_10 = arith.constant 0 : index
    %10 = vector.load %arg7[%c0_8, %c0_9, %c0_10] : memref<9x128x128xf32, #tpu.memory_space<vmem>>, vector<1x128x128xf32>
    %11 = vector.shape_cast %10 : vector<1x128x128xf32> to vector<128x128xf32>
    %12 = vector.shape_cast %9 : vector<128x128xf32> to vector<1x128x128xf32>
    tpu.vector_store %arg7[%c0_8, %c0_9, %c0_10], %12 {strides = array<i32>} : memref<9x128x128xf32, #tpu.memory_space<vmem>>, vector<1x128x128xf32>,
    %c1 = arith.constant 1 : index
    %c0_11 = arith.constant 0 : index
    %c0_12 = arith.constant 0 : index
    %13 = vector.load %arg7[%c1, %c0_11, %c0_12] : memref<9x128x128xf32, #tpu.memory_space<vmem>>, vector<1x128x128xf32>
    %14 = vector.shape_cast %13 : vector<1x128x128xf32> to vector<128x128xf32>
    %c0_13 = arith.constant 0 : index
    %c0_14 = arith.constant 0 : index
    %15 = vector.load %arg4[%c0_13, %c0_14] : memref<128x256xbf16, #tpu.memory_space<vmem>>, vector<128x256xbf16>
    %c1_15 = arith.constant 1 : index
    %c0_16 = arith.constant 0 : index
    %c0_17 = arith.constant 0 : index
    %16 = vector.load %arg5[%c1_15, %c0_16, %c0_17] : memref<9x256x128xbf16, #tpu.memory_space<vmem>>, vector<1x256x128xbf16>
    %17 = vector.shape_cast %16 : vector<1x256x128xbf16> to vector<256x128xbf16>
    %cst_18 = arith.constant dense<0.000000e+00> : vector<128x128xf32>
    %18 = tpu.matmul %15, %17, %cst_18 {dimension_numbers = #tpu.dot_dimension_numbers<[1], [0], [0], [1], [0, 0, 1, 1], [], []>} : vector<128x256xbf16>, vector<256x128xbf16>, vector<128x128xf32> -> vector<128x128xf32>
    %19 = arith.addf %14, %18 : vector<128x128xf32>
    %c1_19 = arith.constant 1 : index
    %c0_20 = arith.constant 0 : index
    %c0_21 = arith.constant 0 : index
    %20 = vector.load %arg7[%c1_19, %c0_20, %c0_21] : memref<9x128x128xf32, #tpu.memory_space<vmem>>, vector<1x128x128xf32>
    %21 = vector.shape_cast %20 : vector<1x128x128xf32> to vector<128x128xf32>
    %22 = vector.shape_cast %19 : vector<128x128xf32> to vector<1x128x128xf32>
    tpu.vector_store %arg7[%c1_19, %c0_20, %c0_21], %22 {strides = array<i32>} : memref<9x128x128xf32, #tpu.memory_space<vmem>>, vector<1x128x128xf32>,
    %c2 = arith.constant 2 : index
    %c0_22 = arith.constant 0 : index
    %c0_23 = arith.constant 0 : index
    %23 = vector.load %arg7[%c2, %c0_22, %c0_23] : memref<9x128x128xf32, #tpu.memory_space<vmem>>, vector<1x128x128xf32>
    %24 = vector.shape_cast %23 : vector<1x128x128xf32> to vector<128x128xf32>
    %c0_24 = arith.constant 0 : index
    %c0_25 = arith.constant 0 : index
    %25 = vector.load %arg4[%c0_24, %c0_25] : memref<128x256xbf16, #tpu.memory_space<vmem>>, vector<128x256xbf16>
    %c2_26 = arith.constant 2 : index
    %c0_27 = arith.constant 0 : index
    %c0_28 = arith.constant 0 : index
    %26 = vector.load %arg5[%c2_26, %c0_27, %c0_28] : memref<9x256x128xbf16, #tpu.memory_space<vmem>>, vector<1x256x128xbf16>
    %27 = vector.shape_cast %26 : vector<1x256x128xbf16> to vector<256x128xbf16>
    %cst_29 = arith.constant dense<0.000000e+00> : vector<128x128xf32>
    %28 = tpu.matmul %25, %27, %cst_29 {dimension_numbers = #tpu.dot_dimension_numbers<[1], [0], [0], [1], [0, 0, 1, 1], [], []>} : vector<128x256xbf16>, vector<256x128xbf16>, vector<128x128xf32> -> vector<128x128xf32>
    %29 = arith.addf %24, %28 : vector<128x128xf32>
    %c2_30 = arith.constant 2 : index
    %c0_31 = arith.constant 0 : index
    %c0_32 = arith.constant 0 : index
    %30 = vector.load %arg7[%c2_30, %c0_31, %c0_32] : memref<9x128x128xf32, #tpu.memory_space<vmem>>, vector<1x128x128xf32>
    %31 = vector.shape_cast %30 : vector<1x128x128xf32> to vector<128x128xf32>
    %32 = vector.shape_cast %29 : vector<128x128xf32> to vector<1x128x128xf32>
    tpu.vector_store %arg7[%c2_30, %c0_31, %c0_32], %32 {strides = array<i32>} : memref<9x128x128xf32, #tpu.memory_space<vmem>>, vector<1x128x128xf32>,
    %c3 = arith.constant 3 : index
    %c0_33 = arith.constant 0 : index
    %c0_34 = arith.constant 0 : index
    %33 = vector.load %arg7[%c3, %c0_33, %c0_34] : memref<9x128x128xf32, #tpu.memory_space<vmem>>, vector<1x128x128xf32>
    %34 = vector.shape_cast %33 : vector<1x128x128xf32> to vector<128x128xf32>
    %c0_35 = arith.constant 0 : index
    %c0_36 = arith.constant 0 : index
    %35 = vector.load %arg4[%c0_35, %c0_36] : memref<128x256xbf16, #tpu.memory_space<vmem>>, vector<128x256xbf16>
    %c3_37 = arith.constant 3 : index
    %c0_38 = arith.constant 0 : index
    %c0_39 = arith.constant 0 : index
    %36 = vector.load %arg5[%c3_37, %c0_38, %c0_39] : memref<9x256x128xbf16, #tpu.memory_space<vmem>>, vector<1x256x128xbf16>
    %37 = vector.shape_cast %36 : vector<1x256x128xbf16> to vector<256x128xbf16>
    %cst_40 = arith.constant dense<0.000000e+00> : vector<128x128xf32>
    %38 = tpu.matmul %35, %37, %cst_40 {dimension_numbers = #tpu.dot_dimension_numbers<[1], [0], [0], [1], [0, 0, 1, 1], [], []>} : vector<128x256xbf16>, vector<256x128xbf16>, vector<128x128xf32> -> vector<128x128xf32>
    %39 = arith.addf %34, %38 : vector<128x128xf32>
    %c3_41 = arith.constant 3 : index
    %c0_42 = arith.constant 0 : index
    %c0_43 = arith.constant 0 : index
    %40 = vector.load %arg7[%c3_41, %c0_42, %c0_43] : memref<9x128x128xf32, #tpu.memory_space<vmem>>, vector<1x128x128xf32>
    %41 = vector.shape_cast %40 : vector<1x128x128xf32> to vector<128x128xf32>
    %42 = vector.shape_cast %39 : vector<128x128xf32> to vector<1x128x128xf32>
    tpu.vector_store %arg7[%c3_41, %c0_42, %c0_43], %42 {strides = array<i32>} : memref<9x128x128xf32, #tpu.memory_space<vmem>>, vector<1x128x128xf32>,
    %c4 = arith.constant 4 : index
    %c0_44 = arith.constant 0 : index
    %c0_45 = arith.constant 0 : index
    %43 = vector.load %arg7[%c4, %c0_44, %c0_45] : memref<9x128x128xf32, #tpu.memory_space<vmem>>, vector<1x128x128xf32>
    %44 = vector.shape_cast %43 : vector<1x128x128xf32> to vector<128x128xf32>
    %c0_46 = arith.constant 0 : index
    %c0_47 = arith.constant 0 : index
    %45 = vector.load %arg4[%c0_46, %c0_47] : memref<128x256xbf16, #tpu.memory_space<vmem>>, vector<128x256xbf16>
    %c4_48 = arith.constant 4 : index
    %c0_49 = arith.constant 0 : index
    %c0_50 = arith.constant 0 : index
    %46 = vector.load %arg5[%c4_48, %c0_49, %c0_50] : memref<9x256x128xbf16, #tpu.memory_space<vmem>>, vector<1x256x128xbf16>
    %47 = vector.shape_cast %46 : vector<1x256x128xbf16> to vector<256x128xbf16>
    %cst_51 = arith.constant dense<0.000000e+00> : vector<128x128xf32>
    %48 = tpu.matmul %45, %47, %cst_51 {dimension_numbers = #tpu.dot_dimension_numbers<[1], [0], [0], [1], [0, 0, 1, 1], [], []>} : vector<128x256xbf16>, vector<256x128xbf16>, vector<128x128xf32> -> vector<128x128xf32>
    %49 = arith.addf %44, %48 : vector<128x128xf32>
    %c4_52 = arith.constant 4 : index
    %c0_53 = arith.constant 0 : index
    %c0_54 = arith.constant 0 : index
    %50 = vector.load %arg7[%c4_52, %c0_53, %c0_54] : memref<9x128x128xf32, #tpu.memory_space<vmem>>, vector<1x128x128xf32>
    %51 = vector.shape_cast %50 : vector<1x128x128xf32> to vector<128x128xf32>
    %52 = vector.shape_cast %49 : vector<128x128xf32> to vector<1x128x128xf32>
    tpu.vector_store %arg7[%c4_52, %c0_53, %c0_54], %52 {strides = array<i32>} : memref<9x128x128xf32, #tpu.memory_space<vmem>>, vector<1x128x128xf32>,
    %c5 = arith.constant 5 : index
    %c0_55 = arith.constant 0 : index
    %c0_56 = arith.constant 0 : index
    %53 = vector.load %arg7[%c5, %c0_55, %c0_56] : memref<9x128x128xf32, #tpu.memory_space<vmem>>, vector<1x128x128xf32>
    %54 = vector.shape_cast %53 : vector<1x128x128xf32> to vector<128x128xf32>
    %c0_57 = arith.constant 0 : index
    %c0_58 = arith.constant 0 : index
    %55 = vector.load %arg4[%c0_57, %c0_58] : memref<128x256xbf16, #tpu.memory_space<vmem>>, vector<128x256xbf16>
    %c5_59 = arith.constant 5 : index
    %c0_60 = arith.constant 0 : index
    %c0_61 = arith.constant 0 : index
    %56 = vector.load %arg5[%c5_59, %c0_60, %c0_61] : memref<9x256x128xbf16, #tpu.memory_space<vmem>>, vector<1x256x128xbf16>
    %57 = vector.shape_cast %56 : vector<1x256x128xbf16> to vector<256x128xbf16>
    %cst_62 = arith.constant dense<0.000000e+00> : vector<128x128xf32>
    %58 = tpu.matmul %55, %57, %cst_62 {dimension_numbers = #tpu.dot_dimension_numbers<[1], [0], [0], [1], [0, 0, 1, 1], [], []>} : vector<128x256xbf16>, vector<256x128xbf16>, vector<128x128xf32> -> vector<128x128xf32>
    %59 = arith.addf %54, %58 : vector<128x128xf32>
    %c5_63 = arith.constant 5 : index
    %c0_64 = arith.constant 0 : index
    %c0_65 = arith.constant 0 : index
    %60 = vector.load %arg7[%c5_63, %c0_64, %c0_65] : memref<9x128x128xf32, #tpu.memory_space<vmem>>, vector<1x128x128xf32>
    %61 = vector.shape_cast %60 : vector<1x128x128xf32> to vector<128x128xf32>
    %62 = vector.shape_cast %59 : vector<128x128xf32> to vector<1x128x128xf32>
    tpu.vector_store %arg7[%c5_63, %c0_64, %c0_65], %62 {strides = array<i32>} : memref<9x128x128xf32, #tpu.memory_space<vmem>>, vector<1x128x128xf32>,
    %c6 = arith.constant 6 : index
    %c0_66 = arith.constant 0 : index
    %c0_67 = arith.constant 0 : index
    %63 = vector.load %arg7[%c6, %c0_66, %c0_67] : memref<9x128x128xf32, #tpu.memory_space<vmem>>, vector<1x128x128xf32>
    %64 = vector.shape_cast %63 : vector<1x128x128xf32> to vector<128x128xf32>
    %c0_68 = arith.constant 0 : index
    %c0_69 = arith.constant 0 : index
    %65 = vector.load %arg4[%c0_68, %c0_69] : memref<128x256xbf16, #tpu.memory_space<vmem>>, vector<128x256xbf16>
    %c6_70 = arith.constant 6 : index
    %c0_71 = arith.constant 0 : index
    %c0_72 = arith.constant 0 : index
    %66 = vector.load %arg5[%c6_70, %c0_71, %c0_72] : memref<9x256x128xbf16, #tpu.memory_space<vmem>>, vector<1x256x128xbf16>
    %67 = vector.shape_cast %66 : vector<1x256x128xbf16> to vector<256x128xbf16>
    %cst_73 = arith.constant dense<0.000000e+00> : vector<128x128xf32>
    %68 = tpu.matmul %65, %67, %cst_73 {dimension_numbers = #tpu.dot_dimension_numbers<[1], [0], [0], [1], [0, 0, 1, 1], [], []>} : vector<128x256xbf16>, vector<256x128xbf16>, vector<128x128xf32> -> vector<128x128xf32>
    %69 = arith.addf %64, %68 : vector<128x128xf32>
    %c6_74 = arith.constant 6 : index
    %c0_75 = arith.constant 0 : index
    %c0_76 = arith.constant 0 : index
    %70 = vector.load %arg7[%c6_74, %c0_75, %c0_76] : memref<9x128x128xf32, #tpu.memory_space<vmem>>, vector<1x128x128xf32>
    %71 = vector.shape_cast %70 : vector<1x128x128xf32> to vector<128x128xf32>
    %72 = vector.shape_cast %69 : vector<128x128xf32> to vector<1x128x128xf32>
    tpu.vector_store %arg7[%c6_74, %c0_75, %c0_76], %72 {strides = array<i32>} : memref<9x128x128xf32, #tpu.memory_space<vmem>>, vector<1x128x128xf32>,
    %c7 = arith.constant 7 : index
    %c0_77 = arith.constant 0 : index
    %c0_78 = arith.constant 0 : index
    %73 = vector.load %arg7[%c7, %c0_77, %c0_78] : memref<9x128x128xf32, #tpu.memory_space<vmem>>, vector<1x128x128xf32>
    %74 = vector.shape_cast %73 : vector<1x128x128xf32> to vector<128x128xf32>
    %c0_79 = arith.constant 0 : index
    %c0_80 = arith.constant 0 : index
    %75 = vector.load %arg4[%c0_79, %c0_80] : memref<128x256xbf16, #tpu.memory_space<vmem>>, vector<128x256xbf16>
    %c7_81 = arith.constant 7 : index
    %c0_82 = arith.constant 0 : index
    %c0_83 = arith.constant 0 : index
    %76 = vector.load %arg5[%c7_81, %c0_82, %c0_83] : memref<9x256x128xbf16, #tpu.memory_space<vmem>>, vector<1x256x128xbf16>
    %77 = vector.shape_cast %76 : vector<1x256x128xbf16> to vector<256x128xbf16>
    %cst_84 = arith.constant dense<0.000000e+00> : vector<128x128xf32>
    %78 = tpu.matmul %75, %77, %cst_84 {dimension_numbers = #tpu.dot_dimension_numbers<[1], [0], [0], [1], [0, 0, 1, 1], [], []>} : vector<128x256xbf16>, vector<256x128xbf16>, vector<128x128xf32> -> vector<128x128xf32>
    %79 = arith.addf %74, %78 : vector<128x128xf32>
    %c7_85 = arith.constant 7 : index
    %c0_86 = arith.constant 0 : index
    %c0_87 = arith.constant 0 : index
    %80 = vector.load %arg7[%c7_85, %c0_86, %c0_87] : memref<9x128x128xf32, #tpu.memory_space<vmem>>, vector<1x128x128xf32>
    %81 = vector.shape_cast %80 : vector<1x128x128xf32> to vector<128x128xf32>
    %82 = vector.shape_cast %79 : vector<128x128xf32> to vector<1x128x128xf32>
    tpu.vector_store %arg7[%c7_85, %c0_86, %c0_87], %82 {strides = array<i32>} : memref<9x128x128xf32, #tpu.memory_space<vmem>>, vector<1x128x128xf32>,
    %c8 = arith.constant 8 : index
    %c0_88 = arith.constant 0 : index
    %c0_89 = arith.constant 0 : index
    %83 = vector.load %arg7[%c8, %c0_88, %c0_89] : memref<9x128x128xf32, #tpu.memory_space<vmem>>, vector<1x128x128xf32>
    %84 = vector.shape_cast %83 : vector<1x128x128xf32> to vector<128x128xf32>
    %c0_90 = arith.constant 0 : index
    %c0_91 = arith.constant 0 : index
    %85 = vector.load %arg4[%c0_90, %c0_91] : memref<128x256xbf16, #tpu.memory_space<vmem>>, vector<128x256xbf16>
    %c8_92 = arith.constant 8 : index
    %c0_93 = arith.constant 0 : index
    %c0_94 = arith.constant 0 : index
    %86 = vector.load %arg5[%c8_92, %c0_93, %c0_94] : memref<9x256x128xbf16, #tpu.memory_space<vmem>>, vector<1x256x128xbf16>
    %87 = vector.shape_cast %86 : vector<1x256x128xbf16> to vector<256x128xbf16>
    %cst_95 = arith.constant dense<0.000000e+00> : vector<128x128xf32>
    %88 = tpu.matmul %85, %87, %cst_95 {dimension_numbers = #tpu.dot_dimension_numbers<[1], [0], [0], [1], [0, 0, 1, 1], [], []>} : vector<128x256xbf16>, vector<256x128xbf16>, vector<128x128xf32> -> vector<128x128xf32>
    %89 = arith.addf %84, %88 : vector<128x128xf32>
    %c8_96 = arith.constant 8 : index
    %c0_97 = arith.constant 0 : index
    %c0_98 = arith.constant 0 : index
    %90 = vector.load %arg7[%c8_96, %c0_97, %c0_98] : memref<9x128x128xf32, #tpu.memory_space<vmem>>, vector<1x128x128xf32>
    %91 = vector.shape_cast %90 : vector<1x128x128xf32> to vector<128x128xf32>
    %92 = vector.shape_cast %89 : vector<128x128xf32> to vector<1x128x128xf32>
    tpu.vector_store %arg7[%c8_96, %c0_97, %c0_98], %92 {strides = array<i32>} : memref<9x128x128xf32, #tpu.memory_space<vmem>>, vector<1x128x128xf32>,
    %c0_i32_99 = arith.constant 0 : i32
    %93 = arith.cmpi eq, %arg2, %c0_i32_99 : i32
    %94 = arith.extui %93 : i1 to i32
    %c0_i32_100 = arith.constant 0 : i32
    %95 = arith.cmpi ne, %94, %c0_i32_100 : i32
    scf.if %95 {
      %c0_101 = arith.constant 0 : index
      %c0_102 = arith.constant 0 : index
      %c0_103 = arith.constant 0 : index
      %96 = vector.load %arg7[%c0_101, %c0_102, %c0_103] : memref<9x128x128xf32, #tpu.memory_space<vmem>>, vector<1x128x128xf32>
      %97 = vector.shape_cast %96 : vector<1x128x128xf32> to vector<128x128xf32>
      %c1_104 = arith.constant 1 : index
      %c0_105 = arith.constant 0 : index
      %c0_106 = arith.constant 0 : index
      %98 = vector.load %arg7[%c1_104, %c0_105, %c0_106] : memref<9x128x128xf32, #tpu.memory_space<vmem>>, vector<1x128x128xf32>
      %99 = vector.shape_cast %98 : vector<1x128x128xf32> to vector<128x128xf32>
      %100 = arith.maximumf %97, %99 : vector<128x128xf32>
      %c2_107 = arith.constant 2 : index
      %c0_108 = arith.constant 0 : index
      %c0_109 = arith.constant 0 : index
      %101 = vector.load %arg7[%c2_107, %c0_108, %c0_109] : memref<9x128x128xf32, #tpu.memory_space<vmem>>, vector<1x128x128xf32>
      %102 = vector.shape_cast %101 : vector<1x128x128xf32> to vector<128x128xf32>
      %103 = arith.maximumf %100, %102 : vector<128x128xf32>
      %c3_110 = arith.constant 3 : index
      %c0_111 = arith.constant 0 : index
      %c0_112 = arith.constant 0 : index
      %104 = vector.load %arg7[%c3_110, %c0_111, %c0_112] : memref<9x128x128xf32, #tpu.memory_space<vmem>>, vector<1x128x128xf32>
      %105 = vector.shape_cast %104 : vector<1x128x128xf32> to vector<128x128xf32>
      %106 = arith.maximumf %103, %105 : vector<128x128xf32>
      %c4_113 = arith.constant 4 : index
      %c0_114 = arith.constant 0 : index
      %c0_115 = arith.constant 0 : index
      %107 = vector.load %arg7[%c4_113, %c0_114, %c0_115] : memref<9x128x128xf32, #tpu.memory_space<vmem>>, vector<1x128x128xf32>
      %108 = vector.shape_cast %107 : vector<1x128x128xf32> to vector<128x128xf32>
      %109 = arith.maximumf %106, %108 : vector<128x128xf32>
      %c5_116 = arith.constant 5 : index
      %c0_117 = arith.constant 0 : index
      %c0_118 = arith.constant 0 : index
      %110 = vector.load %arg7[%c5_116, %c0_117, %c0_118] : memref<9x128x128xf32, #tpu.memory_space<vmem>>, vector<1x128x128xf32>
      %111 = vector.shape_cast %110 : vector<1x128x128xf32> to vector<128x128xf32>
      %112 = arith.maximumf %109, %111 : vector<128x128xf32>
      %c6_119 = arith.constant 6 : index
      %c0_120 = arith.constant 0 : index
      %c0_121 = arith.constant 0 : index
      %113 = vector.load %arg7[%c6_119, %c0_120, %c0_121] : memref<9x128x128xf32, #tpu.memory_space<vmem>>, vector<1x128x128xf32>
      %114 = vector.shape_cast %113 : vector<1x128x128xf32> to vector<128x128xf32>
      %115 = arith.maximumf %112, %114 : vector<128x128xf32>
      %c7_122 = arith.constant 7 : index
      %c0_123 = arith.constant 0 : index
      %c0_124 = arith.constant 0 : index
      %116 = vector.load %arg7[%c7_122, %c0_123, %c0_124] : memref<9x128x128xf32, #tpu.memory_space<vmem>>, vector<1x128x128xf32>
      %117 = vector.shape_cast %116 : vector<1x128x128xf32> to vector<128x128xf32>
      %118 = arith.maximumf %115, %117 : vector<128x128xf32>
      %c8_125 = arith.constant 8 : index
      %c0_126 = arith.constant 0 : index
      %c0_127 = arith.constant 0 : index
      %119 = vector.load %arg7[%c8_125, %c0_126, %c0_127] : memref<9x128x128xf32, #tpu.memory_space<vmem>>, vector<1x128x128xf32>
      %120 = vector.shape_cast %119 : vector<1x128x128xf32> to vector<128x128xf32>
      %121 = arith.maximumf %118, %120 : vector<128x128xf32>
      %c0_128 = arith.constant 0 : index
      %c0_129 = arith.constant 0 : index
      %122 = vector.load %arg6[%c0_128, %c0_129] : memref<128x128xf32, #tpu.memory_space<vmem>>, vector<128x128xf32>
      tpu.vector_store %arg6[%c0_128, %c0_129], %121 {strides = array<i32>} : memref<128x128xf32, #tpu.memory_space<vmem>>, vector<128x128xf32>,
    } else {
    }
    return
  }
  func.func @transform_0(%arg0: i32, %arg1: i32, %arg2: i32, %arg3: memref<2xi32, #tpu.memory_space<smem>>) -> (i32, i32) {
    %c1_i32 = arith.constant 1 : i32
    %0 = arith.muli %arg0, %c1_i32 : i32
    %1 = arith.addi %0, %arg2 : i32
    %2 = arith.index_cast %1 : i32 to index
    %3 = memref.load %arg3[%2] : memref<2xi32, #tpu.memory_space<smem>>
    %c0_i32 = arith.constant 0 : i32
    return %arg1, %3 : i32, i32
  }
  func.func @transform_1(%arg0: i32, %arg1: i32, %arg2: i32, %arg3: memref<2xi32, #tpu.memory_space<smem>>) -> (i32, i32, i32) {
    %c1_i32 = arith.constant 1 : i32
    %0 = arith.muli %arg0, %c1_i32 : i32
    %1 = arith.addi %0, %arg2 : i32
    %2 = arith.index_cast %1 : i32 to index
    %3 = memref.load %arg3[%2] : memref<2xi32, #tpu.memory_space<smem>>
    %c0_i32 = arith.constant 0 : i32
    %c0_i32_0 = arith.constant 0 : i32
    return %c0_i32, %3, %arg0 : i32, i32, i32
  }
  func.func @transform_2(%arg0: i32, %arg1: i32, %arg2: i32, %arg3: memref<2xi32, #tpu.memory_space<smem>>) -> (i32, i32) {
    %c0_i32 = arith.constant 0 : i32
    return %arg1, %arg0 : i32, i32
  }
}

</mosaic_0001>

<llo_original>
// kernel: tpu_custom_call.1
$region0: #{tpu_custom_call.1}
  #allocation0 [shape = 'u32[]', space=smem, size = 0x4, offset = 0x4, fixed_abs, tag = 'smem constant byte address 0x4 - core index']
  #allocation1 [shape = 'u32[144,128]{1,0:T(1,128)}', space=vmem, size = 0x12000, scoped, tag = 'internal scratch']
  #allocation2 [shape = 'f32[9,128,128]{2,1,0:T(8,128)}', space=vmem, size = 0x90000, scoped, tag = 'scratch operand']
  #allocation3 [shape = 's32[1]{0}', space=sflag, size = 0x4, scoped, tag = 'scoped memory for tpu_custom_call.1']
  #allocation4 [shape = 'u8[512]{0}', space=smem, size = 0x200, scoped, tag = 'prefetched SMEM operand 0']
  %s0 = inlined_call_operand.hbm [shape: s32[2], index: 0, kind: input, shape index: {}]
  %s1 = inlined_call_operand.hbm [shape: bf16[128,256], index: 1, kind: input, shape index: {}]
  %s2 = inlined_call_operand.hbm [shape: bf16[9,256,256], index: 2, kind: input, shape index: {}]
  %s3 = inlined_call_operand.hbm [shape: f32[128,256], index: 3, kind: output, shape index: {}]
  %s4 = sld [smem:[#allocation0]]
  $region57: #{tpu_custom_call.1} parent=0
    _
  %s6 = ssub.s32 1, %s4
  %s7 = scalar_select 0, %s6, %s4
  %9 = dma.hbm_to_smem %s0, 16, [#allocation4], [#allocation3]
  %10 = dma.done [#allocation3], 16
  %11 = sfence
  $region1: #{tpu_custom_call.1} parent=0
    #allocation5 [shape = 'u8[131072]{0}', space=vmem, size = 0x20000, scoped, tag = 'input window, operand 1']
    #allocation6 [shape = 's32[2]{0}', space=sflag, size = 0x8, scoped, tag = 'scoped memory for tpu_custom_call.1']
    #allocation7 [shape = 's32[2]{0}', space=sflag, size = 0x8, scoped, tag = 'scoped memory for tpu_custom_call.1']
    #allocation8 [shape = 'u8[1179648]{0}', space=vmem, size = 0x120000, scoped, tag = 'input window, operand 2']
    #allocation9 [shape = 's32[2]{0}', space=sflag, size = 0x8, scoped, tag = 'scoped memory for tpu_custom_call.1']
    #allocation10 [shape = 'u8[131072]{0}', space=vmem, size = 0x20000, scoped, tag = 'output window, operand 0']
    %12 = vsyncpa [#allocation6], 0
    %s13 = scalar_lea.sflag [#allocation6], 1
    %14 = vsyncpa %s13, 0
    %15 = vsyncpa [#allocation9], 0
    %s16 = scalar_lea.sflag [#allocation9], 1
    %17 = vsyncpa %s16, 0
    %18 = vsyncpa [#allocation7], 0
    %s19 = scalar_lea.sflag [#allocation7], 1
    %20 = vsyncpa %s19, 0
    loop: start=0, step=1, limit=4
    $region2: #{tpu_custom_call.1} parent=1 // loop_pre_header
      _
    $region3: #{tpu_custom_call.1} parent=1 // loop_header
      %s22 = sphi 0, %s26
      %p23 = scmp.ge.s32.totalorder %s22, 4
      %s29 = sphi 0, %s48
      %s30 = sphi 0, %s44
      %s31 = sphi 0, %s40
      %s32 = sphi 0, %s29
      %s33 = sphi 0, %s30
      %s34 = sphi 0, %s31
      %s35 = sphi 0, %s32
      %s36 = sphi 0, %s33
      %s37 = sphi 0, %s34
      %s57 = sphi 0, %s59
      %s60 = sphi 0, %s57
      %s61 = sphi 0, %s60
      %s77 = sphi 0, %s61
      %s89 = sphi 0, %s91
      %s92 = sphi 0, %s89
      %s93 = sphi 0, %s92
      %s109 = sphi 0, %s93
      %s117 = sphi 0, %s119
      %s120 = sphi 0, %s117
      %s121 = sphi 0, %s120
      %s137 = sphi 0, %s121
    $region4: #{tpu_custom_call.1} parent=1 // loop_header_branch
      %25 = sbr.rel (%p23) target = $region8
    $region5: #{tpu_custom_call.1} parent=1 // loop_body
      %s27 = ssub.s32 %s22, 1
      %s28 = ssub.s32 %s22, 2
      %s38 = sadd.s32 1, %s31
      %p39 = scmp.ge.s32.totalorder %s38, 1
      %s40 = scalar_select %p39, 0, %s38
      %s41 = sadd.s32 1, %s30
      %s42 = scalar_select %p39, %s41, %s30
      %p43 = scmp.ge.s32.totalorder %s42, 1
      %s44 = scalar_select %p43, 0, %s42
      %s45 = sadd.s32 1, %s29
      %s46 = scalar_select %p43, %s45, %s29
      %p47 = scmp.ge.s32.totalorder %s46, 2
      %s48 = scalar_select %p47, 0, %s46
      %s49 = sadd.s32 %s29, %s31
      %s50 = sld [smem:[#allocation4 + %s49]]
      %s51 = sadd.s32 %s48, %s40
      %s52 = sld [smem:[#allocation4 + %s51]]
      %s53 = ssub.s32 %s30, %s44
      %s54 = ssub.s32 %s50, %s52
      %s55 = sor.u32 %s53, %s54
      %p56 = scmp.eq.s32.totalorder %s55, 0
      %s58 = sadd.s32 %s57, 1
      %s59 = scalar_select %p56, %s57, %s58
      %p62 = pneg %p56
      %p63 = scmp.eq.s32.totalorder %s22, 1
      %p64 = por %p62, %p63
      %p65 = scmp.ne.s32.totalorder %s57, %s60
      %p66 = scmp.eq.s32.totalorder %s22, 0
      %p67 = por %p65, %p66
      %p68 = scmp.ne.s32.totalorder %s57, %s60
      %p69 = scmp.eq.s32.totalorder %s27, 1
      %p70 = por %p68, %p69
      %p71 = scmp.ne.s32.totalorder %s60, %s61
      %p72 = scmp.eq.s32.totalorder %s27, 0
      %p73 = por %p71, %p72
      %p74 = scmp.ne.s32.totalorder %s60, %s61
      %p75 = scmp.eq.s32.totalorder %s28, 1
      %p76 = por %p74, %p75
      %p78 = scmp.ne.s32.totalorder %s61, %s77
      %p79 = scmp.eq.s32.totalorder %s28, 0
      %p80 = por %p78, %p79
      %s81 = sadd.s32 %s29, %s31
      %s82 = sld [smem:[#allocation4 + %s81]]
      %s83 = sadd.s32 %s48, %s40
      %s84 = sld [smem:[#allocation4 + %s83]]
      %s85 = ssub.s32 %s82, %s84
      %s86 = ssub.s32 %s29, %s48
      %s87 = sor.u32 %s85, %s86
      %p88 = scmp.eq.s32.totalorder %s87, 0
      %s90 = sadd.s32 %s89, 1
      %s91 = scalar_select %p88, %s89, %s90
      %p94 = pneg %p88
      %p95 = scmp.eq.s32.totalorder %s22, 1
      %p96 = por %p94, %p95
      %p97 = scmp.ne.s32.totalorder %s89, %s92
      %p98 = scmp.eq.s32.totalorder %s22, 0
      %p99 = por %p97, %p98
      %p100 = scmp.ne.s32.totalorder %s89, %s92
      %p101 = scmp.eq.s32.totalorder %s27, 1
      %p102 = por %p100, %p101
      %p103 = scmp.ne.s32.totalorder %s92, %s93
      %p104 = scmp.eq.s32.totalorder %s27, 0
      %p105 = por %p103, %p104
      %p106 = scmp.ne.s32.totalorder %s92, %s93
      %p107 = scmp.eq.s32.totalorder %s28, 1
      %p108 = por %p106, %p107
      %p110 = scmp.ne.s32.totalorder %s93, %s109
      %p111 = scmp.eq.s32.totalorder %s28, 0
      %p112 = por %p110, %p111
      %s113 = ssub.s32 %s30, %s44
      %s114 = ssub.s32 %s29, %s48
      %s115 = sor.u32 %s113, %s114
      %p116 = scmp.eq.s32.totalorder %s115, 0
      %s118 = sadd.s32 %s117, 1
      %s119 = scalar_select %p116, %s117, %s118
      %p122 = pneg %p116
      %p123 = scmp.eq.s32.totalorder %s22, 1
      %p124 = por %p122, %p123
      %p125 = scmp.ne.s32.totalorder %s117, %s120
      %p126 = scmp.eq.s32.totalorder %s22, 0
      %p127 = por %p125, %p126
      %p128 = scmp.ne.s32.totalorder %s117, %s120
      %p129 = scmp.eq.s32.totalorder %s27, 1
      %p130 = por %p128, %p129
      %p131 = scmp.ne.s32.totalorder %s120, %s121
      %p132 = scmp.eq.s32.totalorder %s27, 0
      %p133 = por %p131, %p132
      %p134 = scmp.ne.s32.totalorder %s120, %s121
      %p135 = scmp.eq.s32.totalorder %s28, 1
      %p136 = por %p134, %p135
      %p138 = scmp.ne.s32.totalorder %s121, %s137
      %p139 = scmp.eq.s32.totalorder %s28, 0
      %p140 = por %p138, %p139
      %p141 = scmp.le.s32.totalorder 1, %s22
      %p142 = scmp.lt.s32.totalorder %s22, 3
      %p143 = pnand %p141, %p142
      %p144 = pneg %p143
      // Predicated region
      $region9: #{tpu_custom_call.1} parent=5 // pred_check
        _
      $region10: #{tpu_custom_call.1} parent=5 // pred_check_branch
        %146 = sbr.rel (%p143) target = $region12
      $region11: #{tpu_custom_call.1} parent=5 // pred_region
        %s147 = ssub.s32 %s22, 1
      $region12: #{tpu_custom_call.1} parent=5 // pred_fallthru
        _
      %p148 = scmp.lt.s32.totalorder %s22, 2
      // Predicated region
      $region13: #{tpu_custom_call.1} parent=5 // pred_check
        %p149 = pneg %p148
      $region14: #{tpu_custom_call.1} parent=5 // pred_check_branch
        %151 = sbr.rel (%p149) target = $region16
      $region15: #{tpu_custom_call.1} parent=5 // pred_region
        // Predicated region
        $region17: #{tpu_custom_call.1} parent=15 // pred_check
          %p152 = pneg %p67
        $region18: #{tpu_custom_call.1} parent=15 // pred_check_branch
          %154 = sbr.rel (%p152) target = $region20
        $region19: #{tpu_custom_call.1} parent=15 // pred_region
          %s155 = sand.u32 %s57, 1
          %s156 = scalar_lea.sflag [#allocation6], %s155
          %s157 = sand.u32 %s57, 1
          %s158 = smul.addr %s157, 128
          %s159 = scalar_lea.vmem [#allocation5], %s158
          %s160 = sadd.s32 %s29, %s31
          %s161 = sld [smem:[#allocation4 + %s160]]
          %s162 = smul.u32 16, %s30
          %s163 = smul.u32 2, %s161
          %s165 = ssub.s32 2048, 2048
          %166 = vsyncadd %s156, %s165
          %s167 = smul.addr %s162, 2
          %s168 = sadd.s32 %s163, %s167
          %s169 = smul.addr %s168, 64
          %s170 = scalar_lea.hbm %s1, %s169
          %s171 = sshll.u32 %s159, 4
          %s172 = int_to_ptr.vmem [resolvable:$true] %s171
          %177 = dma.hbm_to_vmem [thread:$0]  %s170, 2048, %s172, %s156, 128, 128, 8
        $region20: #{tpu_custom_call.1} parent=15 // pred_fallthru
          _
        // Predicated region
        $region21: #{tpu_custom_call.1} parent=15 // pred_check
          %p178 = pneg %p99
        $region22: #{tpu_custom_call.1} parent=15 // pred_check_branch
          %180 = sbr.rel (%p178) target = $region24
        $region23: #{tpu_custom_call.1} parent=15 // pred_region
          %s181 = sand.u32 %s89, 1
          %s182 = scalar_lea.sflag [#allocation9], %s181
          %s183 = sand.u32 %s89, 1
          %s184 = smul.addr %s183, 1152
          %s185 = scalar_lea.vmem [#allocation8], %s184
          %s186 = sadd.s32 %s29, %s31
          %s187 = sld [smem:[#allocation4 + %s186]]
          %s188 = smul.u32 32, %s187
          %s190 = ssub.s32 18432, 18432
          %191 = vsyncadd %s182, %s190
          %s192 = smul.addr %s188, 2
          %s193 = sadd.s32 %s29, %s192
          %s194 = smul.addr %s193, 64
          %s195 = scalar_lea.hbm %s2, %s194
          %s196 = sshll.u32 %s185, 4
          %s197 = int_to_ptr.vmem [resolvable:$true] %s196
          %202 = dma.hbm_to_vmem [thread:$0]  %s195, 18432, %s197, %s182, 128, 64, 4
        $region24: #{tpu_custom_call.1} parent=15 // pred_fallthru
          _
      $region16: #{tpu_custom_call.1} parent=5 // pred_fallthru
        _
      %p203 = scmp.le.s32.totalorder 1, %s22
      %p204 = scmp.lt.s32.totalorder %s22, 3
      %p205 = pnand %p203, %p204
      %p206 = pneg %p205
      // Predicated region
      $region25: #{tpu_custom_call.1} parent=5 // pred_check
        _
      $region26: #{tpu_custom_call.1} parent=5 // pred_check_branch
        %208 = sbr.rel (%p205) target = $region28
      $region27: #{tpu_custom_call.1} parent=5 // pred_region
        %s209 = ssub.s32 %s22, 1
        %s210 = sand.u32 %s60, 1
        %s211 = scalar_lea.sflag [#allocation6], %s210
        %s212 = sand.u32 %s60, 1
        %s213 = smul.addr %s212, 128
        %s214 = scalar_lea.vmem [#allocation5], %s213
        // Predicated region
        $region29: #{tpu_custom_call.1} parent=27 // pred_check
          %p215 = pneg %p73
        $region30: #{tpu_custom_call.1} parent=27 // pred_check_branch
          %217 = sbr.rel (%p215) target = $region32
        $region31: #{tpu_custom_call.1} parent=27 // pred_region
          %218 = dma.done %s211, 2048
        $region32: #{tpu_custom_call.1} parent=27 // pred_fallthru
          _
        %s219 = sand.u32 %s92, 1
        %s220 = scalar_lea.sflag [#allocation9], %s219
        %s221 = sand.u32 %s92, 1
        %s222 = smul.addr %s221, 1152
        %s223 = scalar_lea.vmem [#allocation8], %s222
        // Predicated region
        $region33: #{tpu_custom_call.1} parent=27 // pred_check
          %p224 = pneg %p105
        $region34: #{tpu_custom_call.1} parent=27 // pred_check_branch
          %226 = sbr.rel (%p224) target = $region36
        $region35: #{tpu_custom_call.1} parent=27 // pred_region
          %227 = dma.done %s220, 18432
        $region36: #{tpu_custom_call.1} parent=27 // pred_fallthru
          _
        %s228 = sand.u32 %s60, 1
        %s229 = scalar_lea.sflag [#allocation6], %s228
        %s230 = sand.u32 %s60, 1
        %s231 = smul.addr %s230, 128
        %s232 = scalar_lea.vmem [#allocation5], %s231
        %p233 = pneg %p73
        %p234 = pneg %p70
        %s235 = sand.u32 %s92, 1
        %s236 = scalar_lea.sflag [#allocation9], %s235
        %s237 = sand.u32 %s92, 1
        %s238 = smul.addr %s237, 1152
        %s239 = scalar_lea.vmem [#allocation8], %s238
        %p240 = pneg %p105
        %p241 = pneg %p102
        %p242 = pneg %p133
        %p243 = pneg %p130
        %s244 = sand.u32 %s120, 1
        %s245 = scalar_lea.sflag [#allocation7], %s244
        %s246 = sand.u32 %s120, 1
        %s247 = smul.addr %s246, 128
        %s248 = scalar_lea.vmem [#allocation10], %s247
        %s249 = sadd.s32 %s32, %s34
        %s250 = sld [smem:[#allocation4 + %s249]]
        %s251 = smul.u32 16, %s33
        %s252 = smul.u32 2, %s250
        %s253 = sadd.s32 %s32, %s34
        %s254 = sld [smem:[#allocation4 + %s253]]
        %s255 = smul.u32 32, %s254
        %s256 = smul.u32 16, %s33
        %p258 = scmp.eq.s32.totalorder %s34, 0
        // Predicated region
        $region37: #{tpu_custom_call.1} parent=27 // pred_check
          %p259 = pneg %p258
        $region38: #{tpu_custom_call.1} parent=27 // pred_check_branch
          %261 = sbr.rel (%p259) target = $region40
        $region39: #{tpu_custom_call.1} parent=27 // pred_region
          %262 = vst [vmem:[#allocation2] sm:$0xff] 0.0
          %263 = vst [vmem:[#allocation2 + $0x8] sm:$0xff] 0.0
          %264 = vst [vmem:[#allocation2 + $0x10] sm:$0xff] 0.0
          %265 = vst [vmem:[#allocation2 + $0x18] sm:$0xff] 0.0
          %266 = vst [vmem:[#allocation2 + $0x20] sm:$0xff] 0.0
          %267 = vst [vmem:[#allocation2 + $0x28] sm:$0xff] 0.0
          %268 = vst [vmem:[#allocation2 + $0x30] sm:$0xff] 0.0
          %269 = vst [vmem:[#allocation2 + $0x38] sm:$0xff] 0.0
          %270 = vst [vmem:[#allocation2 + $0x40] sm:$0xff] 0.0
          %271 = vst [vmem:[#allocation2 + $0x48] sm:$0xff] 0.0
          %272 = vst [vmem:[#allocation2 + $0x50] sm:$0xff] 0.0
          %273 = vst [vmem:[#allocation2 + $0x58] sm:$0xff] 0.0
          %274 = vst [vmem:[#allocation2 + $0x60] sm:$0xff] 0.0
          %275 = vst [vmem:[#allocation2 + $0x68] sm:$0xff] 0.0
          %276 = vst [vmem:[#allocation2 + $0x70] sm:$0xff] 0.0
          %277 = vst [vmem:[#allocation2 + $0x78] sm:$0xff] 0.0
          %278 = vst [vmem:[#allocation2 + $0x80] sm:$0xff] 0.0
          %279 = vst [vmem:[#allocation2 + $0x88] sm:$0xff] 0.0
          %280 = vst [vmem:[#allocation2 + $0x90] sm:$0xff] 0.0
          %281 = vst [vmem:[#allocation2 + $0x98] sm:$0xff] 0.0
          %282 = vst [vmem:[#allocation2 + $0xa0] sm:$0xff] 0.0
          %283 = vst [vmem:[#allocation2 + $0xa8] sm:$0xff] 0.0
          %284 = vst [vmem:[#allocation2 + $0xb0] sm:$0xff] 0.0
          %285 = vst [vmem:[#allocation2 + $0xb8] sm:$0xff] 0.0
          %286 = vst [vmem:[#allocation2 + $0xc0] sm:$0xff] 0.0
          %287 = vst [vmem:[#allocation2 + $0xc8] sm:$0xff] 0.0
          %288 = vst [vmem:[#allocation2 + $0xd0] sm:$0xff] 0.0
          %289 = vst [vmem:[#allocation2 + $0xd8] sm:$0xff] 0.0
          %290 = vst [vmem:[#allocation2 + $0xe0] sm:$0xff] 0.0
          %291 = vst [vmem:[#allocation2 + $0xe8] sm:$0xff] 0.0
          %292 = vst [vmem:[#allocation2 + $0xf0] sm:$0xff] 0.0
          %293 = vst [vmem:[#allocation2 + $0xf8] sm:$0xff] 0.0
          %294 = vst [vmem:[#allocation2 + $0x100] sm:$0xff] 0.0
          %295 = vst [vmem:[#allocation2 + $0x108] sm:$0xff] 0.0
          %296 = vst [vmem:[#allocation2 + $0x110] sm:$0xff] 0.0
          %297 = vst [vmem:[#allocation2 + $0x118] sm:$0xff] 0.0
          %298 = vst [vmem:[#allocation2 + $0x120] sm:$0xff] 0.0
          %299 = vst [vmem:[#allocation2 + $0x128] sm:$0xff] 0.0
          %300 = vst [vmem:[#allocation2 + $0x130] sm:$0xff] 0.0
          %301 = vst [vmem:[#allocation2 + $0x138] sm:$0xff] 0.0
          %302 = vst [vmem:[#allocation2 + $0x140] sm:$0xff] 0.0
          %303 = vst [vmem:[#allocation2 + $0x148] sm:$0xff] 0.0
          %304 = vst [vmem:[#allocation2 + $0x150] sm:$0xff] 0.0
          %305 = vst [vmem:[#allocation2 + $0x158] sm:$0xff] 0.0
          %306 = vst [vmem:[#allocation2 + $0x160] sm:$0xff] 0.0
          %307 = vst [vmem:[#allocation2 + $0x168] sm:$0xff] 0.0
          %308 = vst [vmem:[#allocation2 + $0x170] sm:$0xff] 0.0
          %309 = vst [vmem:[#allocation2 + $0x178] sm:$0xff] 0.0
          %310 = vst [vmem:[#allocation2 + $0x180] sm:$0xff] 0.0
          %311 = vst [vmem:[#allocation2 + $0x188] sm:$0xff] 0.0
          %312 = vst [vmem:[#allocation2 + $0x190] sm:$0xff] 0.0
          %313 = vst [vmem:[#allocation2 + $0x198] sm:$0xff] 0.0
          %314 = vst [vmem:[#allocation2 + $0x1a0] sm:$0xff] 0.0
          %315 = vst [vmem:[#allocation2 + $0x1a8] sm:$0xff] 0.0
          %316 = vst [vmem:[#allocation2 + $0x1b0] sm:$0xff] 0.0
          %317 = vst [vmem:[#allocation2 + $0x1b8] sm:$0xff] 0.0
          %318 = vst [vmem:[#allocation2 + $0x1c0] sm:$0xff] 0.0
          %319 = vst [vmem:[#allocation2 + $0x1c8] sm:$0xff] 0.0
          %320 = vst [vmem:[#allocation2 + $0x1d0] sm:$0xff] 0.0
          %321 = vst [vmem:[#allocation2 + $0x1d8] sm:$0xff] 0.0
          %322 = vst [vmem:[#allocation2 + $0x1e0] sm:$0xff] 0.0
          %323 = vst [vmem:[#allocation2 + $0x1e8] sm:$0xff] 0.0
          %324 = vst [vmem:[#allocation2 + $0x1f0] sm:$0xff] 0.0
          %325 = vst [vmem:[#allocation2 + $0x1f8] sm:$0xff] 0.0
          %326 = vst [vmem:[#allocation2 + $0x200] sm:$0xff] 0.0
          %327 = vst [vmem:[#allocation2 + $0x208] sm:$0xff] 0.0
          %328 = vst [vmem:[#allocation2 + $0x210] sm:$0xff] 0.0
          %329 = vst [vmem:[#allocation2 + $0x218] sm:$0xff] 0.0
          %330 = vst [vmem:[#allocation2 + $0x220] sm:$0xff] 0.0
          %331 = vst [vmem:[#allocation2 + $0x228] sm:$0xff] 0.0
          %332 = vst [vmem:[#allocation2 + $0x230] sm:$0xff] 0.0
          %333 = vst [vmem:[#allocation2 + $0x238] sm:$0xff] 0.0
          %334 = vst [vmem:[#allocation2 + $0x240] sm:$0xff] 0.0
          %335 = vst [vmem:[#allocation2 + $0x248] sm:$0xff] 0.0
          %336 = vst [vmem:[#allocation2 + $0x250] sm:$0xff] 0.0
          %337 = vst [vmem:[#allocation2 + $0x258] sm:$0xff] 0.0
          %338 = vst [vmem:[#allocation2 + $0x260] sm:$0xff] 0.0
          %339 = vst [vmem:[#allocation2 + $0x268] sm:$0xff] 0.0
          %340 = vst [vmem:[#allocation2 + $0x270] sm:$0xff] 0.0
          %341 = vst [vmem:[#allocation2 + $0x278] sm:$0xff] 0.0
          %342 = vst [vmem:[#allocation2 + $0x280] sm:$0xff] 0.0
          %343 = vst [vmem:[#allocation2 + $0x288] sm:$0xff] 0.0
          %344 = vst [vmem:[#allocation2 + $0x290] sm:$0xff] 0.0
          %345 = vst [vmem:[#allocation2 + $0x298] sm:$0xff] 0.0
          %346 = vst [vmem:[#allocation2 + $0x2a0] sm:$0xff] 0.0
          %347 = vst [vmem:[#allocation2 + $0x2a8] sm:$0xff] 0.0
          %348 = vst [vmem:[#allocation2 + $0x2b0] sm:$0xff] 0.0
          %349 = vst [vmem:[#allocation2 + $0x2b8] sm:$0xff] 0.0
          %350 = vst [vmem:[#allocation2 + $0x2c0] sm:$0xff] 0.0
          %351 = vst [vmem:[#allocation2 + $0x2c8] sm:$0xff] 0.0
          %352 = vst [vmem:[#allocation2 + $0x2d0] sm:$0xff] 0.0
          %353 = vst [vmem:[#allocation2 + $0x2d8] sm:$0xff] 0.0
          %354 = vst [vmem:[#allocation2 + $0x2e0] sm:$0xff] 0.0
          %355 = vst [vmem:[#allocation2 + $0x2e8] sm:$0xff] 0.0
          %356 = vst [vmem:[#allocation2 + $0x2f0] sm:$0xff] 0.0
          %357 = vst [vmem:[#allocation2 + $0x2f8] sm:$0xff] 0.0
          %358 = vst [vmem:[#allocation2 + $0x300] sm:$0xff] 0.0
          %359 = vst [vmem:[#allocation2 + $0x308] sm:$0xff] 0.0
          %360 = vst [vmem:[#allocation2 + $0x310] sm:$0xff] 0.0
          %361 = vst [vmem:[#allocation2 + $0x318] sm:$0xff] 0.0
          %362 = vst [vmem:[#allocation2 + $0x320] sm:$0xff] 0.0
          %363 = vst [vmem:[#allocation2 + $0x328] sm:$0xff] 0.0
          %364 = vst [vmem:[#allocation2 + $0x330] sm:$0xff] 0.0
          %365 = vst [vmem:[#allocation2 + $0x338] sm:$0xff] 0.0
          %366 = vst [vmem:[#allocation2 + $0x340] sm:$0xff] 0.0
          %367 = vst [vmem:[#allocation2 + $0x348] sm:$0xff] 0.0
          %368 = vst [vmem:[#allocation2 + $0x350] sm:$0xff] 0.0
          %369 = vst [vmem:[#allocation2 + $0x358] sm:$0xff] 0.0
          %370 = vst [vmem:[#allocation2 + $0x360] sm:$0xff] 0.0
          %371 = vst [vmem:[#allocation2 + $0x368] sm:$0xff] 0.0
          %372 = vst [vmem:[#allocation2 + $0x370] sm:$0xff] 0.0
          %373 = vst [vmem:[#allocation2 + $0x378] sm:$0xff] 0.0
          %374 = vst [vmem:[#allocation2 + $0x380] sm:$0xff] 0.0
          %375 = vst [vmem:[#allocation2 + $0x388] sm:$0xff] 0.0
          %376 = vst [vmem:[#allocation2 + $0x390] sm:$0xff] 0.0
          %377 = vst [vmem:[#allocation2 + $0x398] sm:$0xff] 0.0
          %378 = vst [vmem:[#allocation2 + $0x3a0] sm:$0xff] 0.0
          %379 = vst [vmem:[#allocation2 + $0x3a8] sm:$0xff] 0.0
          %380 = vst [vmem:[#allocation2 + $0x3b0] sm:$0xff] 0.0
          %381 = vst [vmem:[#allocation2 + $0x3b8] sm:$0xff] 0.0
          %382 = vst [vmem:[#allocation2 + $0x3c0] sm:$0xff] 0.0
          %383 = vst [vmem:[#allocation2 + $0x3c8] sm:$0xff] 0.0
          %384 = vst [vmem:[#allocation2 + $0x3d0] sm:$0xff] 0.0
          %385 = vst [vmem:[#allocation2 + $0x3d8] sm:$0xff] 0.0
          %386 = vst [vmem:[#allocation2 + $0x3e0] sm:$0xff] 0.0
          %387 = vst [vmem:[#allocation2 + $0x3e8] sm:$0xff] 0.0
          %388 = vst [vmem:[#allocation2 + $0x3f0] sm:$0xff] 0.0
          %389 = vst [vmem:[#allocation2 + $0x3f8] sm:$0xff] 0.0
          %390 = vst [vmem:[#allocation2 + $0x400] sm:$0xff] 0.0
          %391 = vst [vmem:[#allocation2 + $0x408] sm:$0xff] 0.0
          %392 = vst [vmem:[#allocation2 + $0x410] sm:$0xff] 0.0
          %393 = vst [vmem:[#allocation2 + $0x418] sm:$0xff] 0.0
          %394 = vst [vmem:[#allocation2 + $0x420] sm:$0xff] 0.0
          %395 = vst [vmem:[#allocation2 + $0x428] sm:$0xff] 0.0
          %396 = vst [vmem:[#allocation2 + $0x430] sm:$0xff] 0.0
          %397 = vst [vmem:[#allocation2 + $0x438] sm:$0xff] 0.0
          %398 = vst [vmem:[#allocation2 + $0x440] sm:$0xff] 0.0
          %399 = vst [vmem:[#allocation2 + $0x448] sm:$0xff] 0.0
          %400 = vst [vmem:[#allocation2 + $0x450] sm:$0xff] 0.0
          %401 = vst [vmem:[#allocation2 + $0x458] sm:$0xff] 0.0
          %402 = vst [vmem:[#allocation2 + $0x460] sm:$0xff] 0.0
          %403 = vst [vmem:[#allocation2 + $0x468] sm:$0xff] 0.0
          %404 = vst [vmem:[#allocation2 + $0x470] sm:$0xff] 0.0
          %405 = vst [vmem:[#allocation2 + $0x478] sm:$0xff] 0.0
        $region40: #{tpu_custom_call.1} parent=27 // pred_fallthru
          _
        %v406 = vld [vmem:[#allocation2] sm:$0xff]
        %v407 = vld [vmem:[#allocation2 + $0x8] sm:$0xff]
        %v408 = vld [vmem:[#allocation2 + $0x10] sm:$0xff]
        %v409 = vld [vmem:[#allocation2 + $0x18] sm:$0xff]
        %v410 = vld [vmem:[#allocation2 + $0x20] sm:$0xff]
        %v411 = vld [vmem:[#allocation2 + $0x28] sm:$0xff]
        %v412 = vld [vmem:[#allocation2 + $0x30] sm:$0xff]
        %v413 = vld [vmem:[#allocation2 + $0x38] sm:$0xff]
        %v414 = vld [vmem:[#allocation2 + $0x40] sm:$0xff]
        %v415 = vld [vmem:[#allocation2 + $0x48] sm:$0xff]
        %v416 = vld [vmem:[#allocation2 + $0x50] sm:$0xff]
        %v417 = vld [vmem:[#allocation2 + $0x58] sm:$0xff]
        %v418 = vld [vmem:[#allocation2 + $0x60] sm:$0xff]
        %v419 = vld [vmem:[#allocation2 + $0x68] sm:$0xff]
        %v420 = vld [vmem:[#allocation2 + $0x70] sm:$0xff]
        %v421 = vld [vmem:[#allocation2 + $0x78] sm:$0xff]
        %v422 = vld [vmem:[%s214] sm:$0xff]
        %v423 = vld [vmem:[%s214 + $0x8] sm:$0xff]
        %v424 = vld [vmem:[%s214 + $0x10] sm:$0xff]
        %v425 = vld [vmem:[%s214 + $0x18] sm:$0xff]
        %v426 = vld [vmem:[%s214 + $0x20] sm:$0xff]
        %v427 = vld [vmem:[%s214 + $0x28] sm:$0xff]
        %v428 = vld [vmem:[%s214 + $0x30] sm:$0xff]
        %v429 = vld [vmem:[%s214 + $0x38] sm:$0xff]
        %v430 = vld [vmem:[%s214 + $0x40] sm:$0xff]
        %v431 = vld [vmem:[%s214 + $0x48] sm:$0xff]
        %v432 = vld [vmem:[%s214 + $0x50] sm:$0xff]
        %v433 = vld [vmem:[%s214 + $0x58] sm:$0xff]
        %v434 = vld [vmem:[%s214 + $0x60] sm:$0xff]
        %v435 = vld [vmem:[%s214 + $0x68] sm:$0xff]
        %v436 = vld [vmem:[%s214 + $0x70] sm:$0xff]
        %v437 = vld [vmem:[%s214 + $0x78] sm:$0xff]
        %v438 = vld [vmem:[%s223] sm:$0xf]
        %v439 = vld [vmem:[%s223 + $0x4] sm:$0xf]
        %v440 = vld [vmem:[%s223 + $0x8] sm:$0xf]
        %v441 = vld [vmem:[%s223 + $0xc] sm:$0xf]
        %v442 = vld [vmem:[%s223 + $0x10] sm:$0xf]
        %v443 = vld [vmem:[%s223 + $0x14] sm:$0xf]
        %v444 = vld [vmem:[%s223 + $0x18] sm:$0xf]
        %v445 = vld [vmem:[%s223 + $0x1c] sm:$0xf]
        %v446 = vld [vmem:[%s223 + $0x20] sm:$0xf]
        %v447 = vld [vmem:[%s223 + $0x24] sm:$0xf]
        %v448 = vld [vmem:[%s223 + $0x28] sm:$0xf]
        %v449 = vld [vmem:[%s223 + $0x2c] sm:$0xf]
        %v450 = vld [vmem:[%s223 + $0x30] sm:$0xf]
        %v451 = vld [vmem:[%s223 + $0x34] sm:$0xf]
        %v452 = vld [vmem:[%s223 + $0x38] sm:$0xf]
        %v453 = vld [vmem:[%s223 + $0x3c] sm:$0xf]
        %v454 = vld [vmem:[%s223 + $0x40] sm:$0xf]
        %v455 = vld [vmem:[%s223 + $0x44] sm:$0xf]
        %v456 = vld [vmem:[%s223 + $0x48] sm:$0xf]
        %v457 = vld [vmem:[%s223 + $0x4c] sm:$0xf]
        %v458 = vld [vmem:[%s223 + $0x50] sm:$0xf]
        %v459 = vld [vmem:[%s223 + $0x54] sm:$0xf]
        %v460 = vld [vmem:[%s223 + $0x58] sm:$0xf]
        %v461 = vld [vmem:[%s223 + $0x5c] sm:$0xf]
        %v462 = vld [vmem:[%s223 + $0x60] sm:$0xf]
        %v463 = vld [vmem:[%s223 + $0x64] sm:$0xf]
        %v464 = vld [vmem:[%s223 + $0x68] sm:$0xf]
        %v465 = vld [vmem:[%s223 + $0x6c] sm:$0xf]
        %v466 = vld [vmem:[%s223 + $0x70] sm:$0xf]
        %v467 = vld [vmem:[%s223 + $0x74] sm:$0xf]
        %v468 = vld [vmem:[%s223 + $0x78] sm:$0xf]
        %v469 = vld [vmem:[%s223 + $0x7c] sm:$0xf]
        %v486 = vunpack.c.l.b16 %v422
        %v487 = vunpack.c.h.b16 %v422
        %v488 = vunpack.c.l.b16 %v423
        %v489 = vunpack.c.h.b16 %v423
        %v490 = vunpack.c.l.b16 %v424
        %v491 = vunpack.c.h.b16 %v424
        %v492 = vunpack.c.l.b16 %v425
        %v493 = vunpack.c.h.b16 %v425
        %v494 = vunpack.c.l.b16 %v426
        %v495 = vunpack.c.h.b16 %v426
        %v496 = vunpack.c.l.b16 %v427
        %v497 = vunpack.c.h.b16 %v427
        %v498 = vunpack.c.l.b16 %v428
        %v499 = vunpack.c.h.b16 %v428
        %v500 = vunpack.c.l.b16 %v429
        %v501 = vunpack.c.h.b16 %v429
        %v502 = vunpack.c.l.b16 %v430
        %v503 = vunpack.c.h.b16 %v430
        %v504 = vunpack.c.l.b16 %v431
        %v505 = vunpack.c.h.b16 %v431
        %v506 = vunpack.c.l.b16 %v432
        %v507 = vunpack.c.h.b16 %v432
        %v508 = vunpack.c.l.b16 %v433
        %v509 = vunpack.c.h.b16 %v433
        %v510 = vunpack.c.l.b16 %v434
        %v511 = vunpack.c.h.b16 %v434
        %v512 = vunpack.c.l.b16 %v435
        %v513 = vunpack.c.h.b16 %v435
        %v514 = vunpack.c.l.b16 %v436
        %v515 = vunpack.c.h.b16 %v436
        %v516 = vunpack.c.l.b16 %v437
        %v517 = vunpack.c.h.b16 %v437
        %v518 = vpack.c.b16 %v488, %v486
        %v519 = vpack.c.b16 %v489, %v487
        %v520 = vpack.c.b16 %v492, %v490
        %v521 = vpack.c.b16 %v493, %v491
        %v522 = vpack.c.b16 %v496, %v494
        %v523 = vpack.c.b16 %v497, %v495
        %v524 = vpack.c.b16 %v500, %v498
        %v525 = vpack.c.b16 %v501, %v499
        %v526 = vpack.c.b16 %v504, %v502
        %v527 = vpack.c.b16 %v505, %v503
        %v528 = vpack.c.b16 %v508, %v506
        %v529 = vpack.c.b16 %v509, %v507
        %v530 = vpack.c.b16 %v512, %v510
        %v531 = vpack.c.b16 %v513, %v511
        %v532 = vpack.c.b16 %v516, %v514
        %v533 = vpack.c.b16 %v517, %v515
        %v582 = vunpack.c.l.b16 %v438
        %v583 = vunpack.c.l.b16 %v439
        %v584 = vunpack.c.l.b16 %v440
        %v585 = vunpack.c.l.b16 %v441
        %v586 = vunpack.c.l.b16 %v442
        %v587 = vunpack.c.l.b16 %v443
        %v588 = vunpack.c.l.b16 %v444
        %v589 = vunpack.c.l.b16 %v445
        %v590 = vunpack.c.l.b16 %v446
        %v591 = vunpack.c.l.b16 %v447
        %v592 = vunpack.c.l.b16 %v448
        %v593 = vunpack.c.l.b16 %v449
        %v594 = vunpack.c.l.b16 %v450
        %v595 = vunpack.c.l.b16 %v451
        %v596 = vunpack.c.l.b16 %v452
        %v597 = vunpack.c.l.b16 %v453
        %v598 = vunpack.c.l.b16 %v454
        %v599 = vunpack.c.l.b16 %v455
        %v600 = vunpack.c.l.b16 %v456
        %v601 = vunpack.c.l.b16 %v457
        %v602 = vunpack.c.l.b16 %v458
        %v603 = vunpack.c.l.b16 %v459
        %v604 = vunpack.c.l.b16 %v460
        %v605 = vunpack.c.l.b16 %v461
        %v606 = vunpack.c.l.b16 %v462
        %v607 = vunpack.c.l.b16 %v463
        %v608 = vunpack.c.l.b16 %v464
        %v609 = vunpack.c.l.b16 %v465
        %v610 = vunpack.c.l.b16 %v466
        %v611 = vunpack.c.l.b16 %v467
        %v612 = vunpack.c.l.b16 %v468
        %v613 = vunpack.c.l.b16 %v469
        %v614 = vpack.c.b16 %v583, %v582
        %v615 = vpack.c.b16 %v585, %v584
        %v616 = vpack.c.b16 %v587, %v586
        %v617 = vpack.c.b16 %v589, %v588
        %v618 = vpack.c.b16 %v591, %v590
        %v619 = vpack.c.b16 %v593, %v592
        %v620 = vpack.c.b16 %v595, %v594
        %v621 = vpack.c.b16 %v597, %v596
        %v622 = vpack.c.b16 %v599, %v598
        %v623 = vpack.c.b16 %v601, %v600
        %v624 = vpack.c.b16 %v603, %v602
        %v625 = vpack.c.b16 %v605, %v604
        %v626 = vpack.c.b16 %v607, %v606
        %v627 = vpack.c.b16 %v609, %v608
        %v628 = vpack.c.b16 %v611, %v610
        %v629 = vpack.c.b16 %v613, %v612
        %646 = vmatprep.subr.bf16.mxu0 0
        %647 = vmatpush1.bf16.msra.mxu0 %v621
        %648 = vmatprep.subr.bf16.mxu0 0
        %649 = vmatpush1.bf16.msra.mxu0 %v620
        %650 = vmatprep.subr.bf16.mxu0 0
        %651 = vmatpush1.bf16.msra.mxu0 %v619
        %652 = vmatprep.subr.bf16.mxu0 0
        %653 = vmatpush1.bf16.msra.mxu0 %v618
        %654 = vmatprep.subr.bf16.mxu0 0
        %655 = vmatpush1.bf16.msra.mxu0 %v617
        %656 = vmatprep.subr.bf16.mxu0 0
        %657 = vmatpush1.bf16.msra.mxu0 %v616
        %658 = vmatprep.subr.bf16.mxu0 0
        %659 = vmatpush1.bf16.msra.mxu0 %v615
        %660 = vmatprep.subr.bf16.mxu0 0
        %661 = vmatpush1.bf16.msra.mxu0 %v614
        %662 = vmatprep.subr.bf16.mxu0 0
        %663 = vmatpush2.bf16.msra.mxu0 %v629
        %664 = vmatprep.subr.bf16.mxu0 0
        %665 = vmatpush2.bf16.msra.mxu0 %v628
        %666 = vmatprep.subr.bf16.mxu0 0
        %667 = vmatpush2.bf16.msra.mxu0 %v627
        %668 = vmatprep.subr.bf16.mxu0 0
        %669 = vmatpush2.bf16.msra.mxu0 %v626
        %670 = vmatprep.subr.bf16.mxu0 0
        %671 = vmatpush2.bf16.msra.mxu0 %v625
        %672 = vmatprep.subr.bf16.mxu0 0
        %673 = vmatpush2.bf16.msra.mxu0 %v624
        %674 = vmatprep.subr.bf16.mxu0 0
        %675 = vmatpush2.bf16.msra.mxu0 %v623
        %676 = vmatprep.subr.bf16.mxu0 0
        %677 = vmatpush2.bf16.msra.mxu0 %v622
        %678 = vmatprep.mubr.bf16.mxu0 %v519
        %679 = vmatmul.mubr.bf16.gmra.mxu0 %v518
        %v680 = vpop.f32.mrf.mxu0
        %v681 = vadd.f32 0.0, %v680
        %v682 = vpop.f32.mrf.mxu0
        %v683 = vpop.f32.mrf.mxu0
        %v684 = vadd.f32 0.0, %v683
        %v685 = vpop.f32.mrf.mxu0
        %686 = vmatprep.mubr.bf16.mxu0 %v521
        %687 = vmatmul.mubr.bf16.gmra.mxu0 %v520
        %v688 = vpop.f32.mrf.mxu0
        %v689 = vadd.f32 0.0, %v688
        %v690 = vpop.f32.mrf.mxu0
        %v691 = vpop.f32.mrf.mxu0
        %v692 = vadd.f32 0.0, %v691
        %v693 = vpop.f32.mrf.mxu0
        %694 = vmatprep.mubr.bf16.mxu0 %v523
        %695 = vmatmul.mubr.bf16.gmra.mxu0 %v522
        %v696 = vpop.f32.mrf.mxu0
        %v697 = vadd.f32 0.0, %v696
        %v698 = vpop.f32.mrf.mxu0
        %v699 = vpop.f32.mrf.mxu0
        %v700 = vadd.f32 0.0, %v699
        %v701 = vpop.f32.mrf.mxu0
        %702 = vmatprep.mubr.bf16.mxu0 %v525
        %703 = vmatmul.mubr.bf16.gmra.mxu0 %v524
        %v704 = vpop.f32.mrf.mxu0
        %v705 = vadd.f32 0.0, %v704
        %v706 = vpop.f32.mrf.mxu0
        %v707 = vpop.f32.mrf.mxu0
        %v708 = vadd.f32 0.0, %v707
        %v709 = vpop.f32.mrf.mxu0
        %710 = vmatprep.mubr.bf16.mxu0 %v527
        %711 = vmatmul.mubr.bf16.gmra.mxu0 %v526
        %v712 = vpop.f32.mrf.mxu0
        %v713 = vadd.f32 0.0, %v712
        %v714 = vpop.f32.mrf.mxu0
        %v715 = vpop.f32.mrf.mxu0
        %v716 = vadd.f32 0.0, %v715
        %v717 = vpop.f32.mrf.mxu0
        %718 = vmatprep.mubr.bf16.mxu0 %v529
        %719 = vmatmul.mubr.bf16.gmra.mxu0 %v528
        %v720 = vpop.f32.mrf.mxu0
        %v721 = vadd.f32 0.0, %v720
        %v722 = vpop.f32.mrf.mxu0
        %v723 = vpop.f32.mrf.mxu0
        %v724 = vadd.f32 0.0, %v723
        %v725 = vpop.f32.mrf.mxu0
        %726 = vmatprep.mubr.bf16.mxu0 %v531
        %727 = vmatmul.mubr.bf16.gmra.mxu0 %v530
        %v728 = vpop.f32.mrf.mxu0
        %v729 = vadd.f32 0.0, %v728
        %v730 = vpop.f32.mrf.mxu0
        %v731 = vpop.f32.mrf.mxu0
        %v732 = vadd.f32 0.0, %v731
        %v733 = vpop.f32.mrf.mxu0
        %734 = vmatprep.mubr.bf16.mxu0 %v533
        %735 = vmatmul.mubr.bf16.gmra.mxu0 %v532
        %v736 = vpop.f32.mrf.mxu0
        %v737 = vadd.f32 0.0, %v736
        %v738 = vpop.f32.mrf.mxu0
        %v739 = vpop.f32.mrf.mxu0
        %v740 = vadd.f32 0.0, %v739
        %v741 = vpop.f32.mrf.mxu0
        %742 = vdwg.mxu0
        %v743 = vadd.f32 %v406, %v681
        %v744 = vadd.f32 %v407, %v684
        %v745 = vadd.f32 %v408, %v689
        %v746 = vadd.f32 %v409, %v692
        %v747 = vadd.f32 %v410, %v697
        %v748 = vadd.f32 %v411, %v700
        %v749 = vadd.f32 %v412, %v705
        %v750 = vadd.f32 %v413, %v708
        %v751 = vadd.f32 %v414, %v713
        %v752 = vadd.f32 %v415, %v716
        %v753 = vadd.f32 %v416, %v721
        %v754 = vadd.f32 %v417, %v724
        %v755 = vadd.f32 %v418, %v729
        %v756 = vadd.f32 %v419, %v732
        %v757 = vadd.f32 %v420, %v737
        %v758 = vadd.f32 %v421, %v740
        %759 = vst [vmem:[#allocation2] sm:$0xff] %v743
        %760 = vst [vmem:[#allocation2 + $0x8] sm:$0xff] %v744
        %761 = vst [vmem:[#allocation2 + $0x10] sm:$0xff] %v745
        %762 = vst [vmem:[#allocation2 + $0x18] sm:$0xff] %v746
        %763 = vst [vmem:[#allocation2 + $0x20] sm:$0xff] %v747
        %764 = vst [vmem:[#allocation2 + $0x28] sm:$0xff] %v748
        %765 = vst [vmem:[#allocation2 + $0x30] sm:$0xff] %v749
        %766 = vst [vmem:[#allocation2 + $0x38] sm:$0xff] %v750
        %767 = vst [vmem:[#allocation2 + $0x40] sm:$0xff] %v751
        %768 = vst [vmem:[#allocation2 + $0x48] sm:$0xff] %v752
        %769 = vst [vmem:[#allocation2 + $0x50] sm:$0xff] %v753
        %770 = vst [vmem:[#allocation2 + $0x58] sm:$0xff] %v754
        %771 = vst [vmem:[#allocation2 + $0x60] sm:$0xff] %v755
        %772 = vst [vmem:[#allocation2 + $0x68] sm:$0xff] %v756
        %773 = vst [vmem:[#allocation2 + $0x70] sm:$0xff] %v757
        %774 = vst [vmem:[#allocation2 + $0x78] sm:$0xff] %v758
        %s775 = scalar_lea.vmem [#allocation2], 128
        %v776 = vld [vmem:[%s775] sm:$0xff]
        %v777 = vld [vmem:[%s775 + $0x8] sm:$0xff]
        %v778 = vld [vmem:[%s775 + $0x10] sm:$0xff]
        %v779 = vld [vmem:[%s775 + $0x18] sm:$0xff]
        %v780 = vld [vmem:[%s775 + $0x20] sm:$0xff]
        %v781 = vld [vmem:[%s775 + $0x28] sm:$0xff]
        %v782 = vld [vmem:[%s775 + $0x30] sm:$0xff]
        %v783 = vld [vmem:[%s775 + $0x38] sm:$0xff]
        %v784 = vld [vmem:[%s775 + $0x40] sm:$0xff]
        %v785 = vld [vmem:[%s775 + $0x48] sm:$0xff]
        %v786 = vld [vmem:[%s775 + $0x50] sm:$0xff]
        %v787 = vld [vmem:[%s775 + $0x58] sm:$0xff]
        %v788 = vld [vmem:[%s775 + $0x60] sm:$0xff]
        %v789 = vld [vmem:[%s775 + $0x68] sm:$0xff]
        %v790 = vld [vmem:[%s775 + $0x70] sm:$0xff]
        %v791 = vld [vmem:[%s775 + $0x78] sm:$0xff]
        %v792 = vld [vmem:[%s214] sm:$0xff]
        %v793 = vld [vmem:[%s214 + $0x8] sm:$0xff]
        %v794 = vld [vmem:[%s214 + $0x10] sm:$0xff]
        %v795 = vld [vmem:[%s214 + $0x18] sm:$0xff]
        %v796 = vld [vmem:[%s214 + $0x20] sm:$0xff]
        %v797 = vld [vmem:[%s214 + $0x28] sm:$0xff]
        %v798 = vld [vmem:[%s214 + $0x30] sm:$0xff]
        %v799 = vld [vmem:[%s214 + $0x38] sm:$0xff]
        %v800 = vld [vmem:[%s214 + $0x40] sm:$0xff]
        %v801 = vld [vmem:[%s214 + $0x48] sm:$0xff]
        %v802 = vld [vmem:[%s214 + $0x50] sm:$0xff]
        %v803 = vld [vmem:[%s214 + $0x58] sm:$0xff]
        %v804 = vld [vmem:[%s214 + $0x60] sm:$0xff]
        %v805 = vld [vmem:[%s214 + $0x68] sm:$0xff]
        %v806 = vld [vmem:[%s214 + $0x70] sm:$0xff]
        %v807 = vld [vmem:[%s214 + $0x78] sm:$0xff]
        %s808 = scalar_lea.vmem %s223, 128 [#allocation8]
        %v809 = vld [vmem:[%s808] sm:$0xf]
        %v810 = vld [vmem:[%s808 + $0x4] sm:$0xf]
        %v811 = vld [vmem:[%s808 + $0x8] sm:$0xf]
        %v812 = vld [vmem:[%s808 + $0xc] sm:$0xf]
        %v813 = vld [vmem:[%s808 + $0x10] sm:$0xf]
        %v814 = vld [vmem:[%s808 + $0x14] sm:$0xf]
        %v815 = vld [vmem:[%s808 + $0x18] sm:$0xf]
        %v816 = vld [vmem:[%s808 + $0x1c] sm:$0xf]
        %v817 = vld [vmem:[%s808 + $0x20] sm:$0xf]
        %v818 = vld [vmem:[%s808 + $0x24] sm:$0xf]
        %v819 = vld [vmem:[%s808 + $0x28] sm:$0xf]
        %v820 = vld [vmem:[%s808 + $0x2c] sm:$0xf]
        %v821 = vld [vmem:[%s808 + $0x30] sm:$0xf]
        %v822 = vld [vmem:[%s808 + $0x34] sm:$0xf]
        %v823 = vld [vmem:[%s808 + $0x38] sm:$0xf]
        %v824 = vld [vmem:[%s808 + $0x3c] sm:$0xf]
        %v825 = vld [vmem:[%s808 + $0x40] sm:$0xf]
        %v826 = vld [vmem:[%s808 + $0x44] sm:$0xf]
        %v827 = vld [vmem:[%s808 + $0x48] sm:$0xf]
        %v828 = vld [vmem:[%s808 + $0x4c] sm:$0xf]
        %v829 = vld [vmem:[%s808 + $0x50] sm:$0xf]
        %v830 = vld [vmem:[%s808 + $0x54] sm:$0xf]
        %v831 = vld [vmem:[%s808 + $0x58] sm:$0xf]
        %v832 = vld [vmem:[%s808 + $0x5c] sm:$0xf]
        %v833 = vld [vmem:[%s808 + $0x60] sm:$0xf]
        %v834 = vld [vmem:[%s808 + $0x64] sm:$0xf]
        %v835 = vld [vmem:[%s808 + $0x68] sm:$0xf]
        %v836 = vld [vmem:[%s808 + $0x6c] sm:$0xf]
        %v837 = vld [vmem:[%s808 + $0x70] sm:$0xf]
        %v838 = vld [vmem:[%s808 + $0x74] sm:$0xf]
        %v839 = vld [vmem:[%s808 + $0x78] sm:$0xf]
        %v840 = vld [vmem:[%s808 + $0x7c] sm:$0xf]
        %v857 = vunpack.c.l.b16 %v792
        %v858 = vunpack.c.h.b16 %v792
        %v859 = vunpack.c.l.b16 %v793
        %v860 = vunpack.c.h.b16 %v793
        %v861 = vunpack.c.l.b16 %v794
        %v862 = vunpack.c.h.b16 %v794
        %v863 = vunpack.c.l.b16 %v795
        %v864 = vunpack.c.h.b16 %v795
        %v865 = vunpack.c.l.b16 %v796
        %v866 = vunpack.c.h.b16 %v796
        %v867 = vunpack.c.l.b16 %v797
        %v868 = vunpack.c.h.b16 %v797
        %v869 = vunpack.c.l.b16 %v798
        %v870 = vunpack.c.h.b16 %v798
        %v871 = vunpack.c.l.b16 %v799
        %v872 = vunpack.c.h.b16 %v799
        %v873 = vunpack.c.l.b16 %v800
        %v874 = vunpack.c.h.b16 %v800
        %v875 = vunpack.c.l.b16 %v801
        %v876 = vunpack.c.h.b16 %v801
        %v877 = vunpack.c.l.b16 %v802
        %v878 = vunpack.c.h.b16 %v802
        %v879 = vunpack.c.l.b16 %v803
        %v880 = vunpack.c.h.b16 %v803
        %v881 = vunpack.c.l.b16 %v804
        %v882 = vunpack.c.h.b16 %v804
        %v883 = vunpack.c.l.b16 %v805
        %v884 = vunpack.c.h.b16 %v805
        %v885 = vunpack.c.l.b16 %v806
        %v886 = vunpack.c.h.b16 %v806
        %v887 = vunpack.c.l.b16 %v807
        %v888 = vunpack.c.h.b16 %v807
        %v889 = vpack.c.b16 %v859, %v857
        %v890 = vpack.c.b16 %v860, %v858
        %v891 = vpack.c.b16 %v863, %v861
        %v892 = vpack.c.b16 %v864, %v862
        %v893 = vpack.c.b16 %v867, %v865
        %v894 = vpack.c.b16 %v868, %v866
        %v895 = vpack.c.b16 %v871, %v869
        %v896 = vpack.c.b16 %v872, %v870
        %v897 = vpack.c.b16 %v875, %v873
        %v898 = vpack.c.b16 %v876, %v874
        %v899 = vpack.c.b16 %v879, %v877
        %v900 = vpack.c.b16 %v880, %v878
        %v901 = vpack.c.b16 %v883, %v881
        %v902 = vpack.c.b16 %v884, %v882
        %v903 = vpack.c.b16 %v887, %v885
        %v904 = vpack.c.b16 %v888, %v886
        %v953 = vunpack.c.l.b16 %v809
        %v954 = vunpack.c.l.b16 %v810
        %v955 = vunpack.c.l.b16 %v811
        %v956 = vunpack.c.l.b16 %v812
        %v957 = vunpack.c.l.b16 %v813
        %v958 = vunpack.c.l.b16 %v814
        %v959 = vunpack.c.l.b16 %v815
        %v960 = vunpack.c.l.b16 %v816
        %v961 = vunpack.c.l.b16 %v817
        %v962 = vunpack.c.l.b16 %v818
        %v963 = vunpack.c.l.b16 %v819
        %v964 = vunpack.c.l.b16 %v820
        %v965 = vunpack.c.l.b16 %v821
        %v966 = vunpack.c.l.b16 %v822
        %v967 = vunpack.c.l.b16 %v823
        %v968 = vunpack.c.l.b16 %v824
        %v969 = vunpack.c.l.b16 %v825
        %v970 = vunpack.c.l.b16 %v826
        %v971 = vunpack.c.l.b16 %v827
        %v972 = vunpack.c.l.b16 %v828
        %v973 = vunpack.c.l.b16 %v829
        %v974 = vunpack.c.l.b16 %v830
        %v975 = vunpack.c.l.b16 %v831
        %v976 = vunpack.c.l.b16 %v832
        %v977 = vunpack.c.l.b16 %v833
        %v978 = vunpack.c.l.b16 %v834
        %v979 = vunpack.c.l.b16 %v835
        %v980 = vunpack.c.l.b16 %v836
        %v981 = vunpack.c.l.b16 %v837
        %v982 = vunpack.c.l.b16 %v838
        %v983 = vunpack.c.l.b16 %v839
        %v984 = vunpack.c.l.b16 %v840
        %v985 = vpack.c.b16 %v954, %v953
        %v986 = vpack.c.b16 %v956, %v955
        %v987 = vpack.c.b16 %v958, %v957
        %v988 = vpack.c.b16 %v960, %v959
        %v989 = vpack.c.b16 %v962, %v961
        %v990 = vpack.c.b16 %v964, %v963
        %v991 = vpack.c.b16 %v966, %v965
        %v992 = vpack.c.b16 %v968, %v967
        %v993 = vpack.c.b16 %v970, %v969
        %v994 = vpack.c.b16 %v972, %v971
        %v995 = vpack.c.b16 %v974, %v973
        %v996 = vpack.c.b16 %v976, %v975
        %v997 = vpack.c.b16 %v978, %v977
        %v998 = vpack.c.b16 %v980, %v979
        %v999 = vpack.c.b16 %v982, %v981
        %v1000 = vpack.c.b16 %v984, %v983
        %1017 = vmatprep.subr.bf16.mxu0 0
        %1018 = vmatpush1.bf16.msra.mxu0 %v992
        %1019 = vmatprep.subr.bf16.mxu0 0
        %1020 = vmatpush1.bf16.msra.mxu0 %v991
        %1021 = vmatprep.subr.bf16.mxu0 0
        %1022 = vmatpush1.bf16.msra.mxu0 %v990
        %1023 = vmatprep.subr.bf16.mxu0 0
        %1024 = vmatpush1.bf16.msra.mxu0 %v989
        %1025 = vmatprep.subr.bf16.mxu0 0
        %1026 = vmatpush1.bf16.msra.mxu0 %v988
        %1027 = vmatprep.subr.bf16.mxu0 0
        %1028 = vmatpush1.bf16.msra.mxu0 %v987
        %1029 = vmatprep.subr.bf16.mxu0 0
        %1030 = vmatpush1.bf16.msra.mxu0 %v986
        %1031 = vmatprep.subr.bf16.mxu0 0
        %1032 = vmatpush1.bf16.msra.mxu0 %v985
        %1033 = vmatprep.subr.bf16.mxu0 0
        %1034 = vmatpush2.bf16.msra.mxu0 %v1000
        %1035 = vmatprep.subr.bf16.mxu0 0
        %1036 = vmatpush2.bf16.msra.mxu0 %v999
        %1037 = vmatprep.subr.bf16.mxu0 0
        %1038 = vmatpush2.bf16.msra.mxu0 %v998
        %1039 = vmatprep.subr.bf16.mxu0 0
        %1040 = vmatpush2.bf16.msra.mxu0 %v997
        %1041 = vmatprep.subr.bf16.mxu0 0
        %1042 = vmatpush2.bf16.msra.mxu0 %v996
        %1043 = vmatprep.subr.bf16.mxu0 0
        %1044 = vmatpush2.bf16.msra.mxu0 %v995
        %1045 = vmatprep.subr.bf16.mxu0 0
        %1046 = vmatpush2.bf16.msra.mxu0 %v994
        %1047 = vmatprep.subr.bf16.mxu0 0
        %1048 = vmatpush2.bf16.msra.mxu0 %v993
        %1049 = vmatprep.mubr.bf16.mxu0 %v890
        %1050 = vmatmul.mubr.bf16.gmra.mxu0 %v889
        %v1051 = vpop.f32.mrf.mxu0
        %v1052 = vadd.f32 0.0, %v1051
        %v1053 = vpop.f32.mrf.mxu0
        %v1054 = vpop.f32.mrf.mxu0
        %v1055 = vadd.f32 0.0, %v1054
        %v1056 = vpop.f32.mrf.mxu0
        %1057 = vmatprep.mubr.bf16.mxu0 %v892
        %1058 = vmatmul.mubr.bf16.gmra.mxu0 %v891
        %v1059 = vpop.f32.mrf.mxu0
        %v1060 = vadd.f32 0.0, %v1059
        %v1061 = vpop.f32.mrf.mxu0
        %v1062 = vpop.f32.mrf.mxu0
        %v1063 = vadd.f32 0.0, %v1062
        %v1064 = vpop.f32.mrf.mxu0
        %1065 = vmatprep.mubr.bf16.mxu0 %v894
        %1066 = vmatmul.mubr.bf16.gmra.mxu0 %v893
        %v1067 = vpop.f32.mrf.mxu0
        %v1068 = vadd.f32 0.0, %v1067
        %v1069 = vpop.f32.mrf.mxu0
        %v1070 = vpop.f32.mrf.mxu0
        %v1071 = vadd.f32 0.0, %v1070
        %v1072 = vpop.f32.mrf.mxu0
        %1073 = vmatprep.mubr.bf16.mxu0 %v896
        %1074 = vmatmul.mubr.bf16.gmra.mxu0 %v895
        %v1075 = vpop.f32.mrf.mxu0
        %v1076 = vadd.f32 0.0, %v1075
        %v1077 = vpop.f32.mrf.mxu0
        %v1078 = vpop.f32.mrf.mxu0
        %v1079 = vadd.f32 0.0, %v1078
        %v1080 = vpop.f32.mrf.mxu0
        %1081 = vmatprep.mubr.bf16.mxu0 %v898
        %1082 = vmatmul.mubr.bf16.gmra.mxu0 %v897
        %v1083 = vpop.f32.mrf.mxu0
        %v1084 = vadd.f32 0.0, %v1083
        %v1085 = vpop.f32.mrf.mxu0
        %v1086 = vpop.f32.mrf.mxu0
        %v1087 = vadd.f32 0.0, %v1086
        %v1088 = vpop.f32.mrf.mxu0
        %1089 = vmatprep.mubr.bf16.mxu0 %v900
        %1090 = vmatmul.mubr.bf16.gmra.mxu0 %v899
        %v1091 = vpop.f32.mrf.mxu0
        %v1092 = vadd.f32 0.0, %v1091
        %v1093 = vpop.f32.mrf.mxu0
        %v1094 = vpop.f32.mrf.mxu0
        %v1095 = vadd.f32 0.0, %v1094
        %v1096 = vpop.f32.mrf.mxu0
        %1097 = vmatprep.mubr.bf16.mxu0 %v902
        %1098 = vmatmul.mubr.bf16.gmra.mxu0 %v901
        %v1099 = vpop.f32.mrf.mxu0
        %v1100 = vadd.f32 0.0, %v1099
        %v1101 = vpop.f32.mrf.mxu0
        %v1102 = vpop.f32.mrf.mxu0
        %v1103 = vadd.f32 0.0, %v1102
        %v1104 = vpop.f32.mrf.mxu0
        %1105 = vmatprep.mubr.bf16.mxu0 %v904
        %1106 = vmatmul.mubr.bf16.gmra.mxu0 %v903
        %v1107 = vpop.f32.mrf.mxu0
        %v1108 = vadd.f32 0.0, %v1107
        %v1109 = vpop.f32.mrf.mxu0
        %v1110 = vpop.f32.mrf.mxu0
        %v1111 = vadd.f32 0.0, %v1110
        %v1112 = vpop.f32.mrf.mxu0
        %1113 = vdwg.mxu0
        %v1114 = vadd.f32 %v776, %v1052
        %v1115 = vadd.f32 %v777, %v1055
        %v1116 = vadd.f32 %v778, %v1060
        %v1117 = vadd.f32 %v779, %v1063
        %v1118 = vadd.f32 %v780, %v1068
        %v1119 = vadd.f32 %v781, %v1071
        %v1120 = vadd.f32 %v782, %v1076
        %v1121 = vadd.f32 %v783, %v1079
        %v1122 = vadd.f32 %v784, %v1084
        %v1123 = vadd.f32 %v785, %v1087
        %v1124 = vadd.f32 %v786, %v1092
        %v1125 = vadd.f32 %v787, %v1095
        %v1126 = vadd.f32 %v788, %v1100
        %v1127 = vadd.f32 %v789, %v1103
        %v1128 = vadd.f32 %v790, %v1108
        %v1129 = vadd.f32 %v791, %v1111
        %1130 = vst [vmem:[%s775] sm:$0xff] %v1114
        %1131 = vst [vmem:[%s775 + $0x8] sm:$0xff] %v1115
        %1132 = vst [vmem:[%s775 + $0x10] sm:$0xff] %v1116
        %1133 = vst [vmem:[%s775 + $0x18] sm:$0xff] %v1117
        %1134 = vst [vmem:[%s775 + $0x20] sm:$0xff] %v1118
        %1135 = vst [vmem:[%s775 + $0x28] sm:$0xff] %v1119
        %1136 = vst [vmem:[%s775 + $0x30] sm:$0xff] %v1120
        %1137 = vst [vmem:[%s775 + $0x38] sm:$0xff] %v1121
        %1138 = vst [vmem:[%s775 + $0x40] sm:$0xff] %v1122
        %1139 = vst [vmem:[%s775 + $0x48] sm:$0xff] %v1123
        %1140 = vst [vmem:[%s775 + $0x50] sm:$0xff] %v1124
        %1141 = vst [vmem:[%s775 + $0x58] sm:$0xff] %v1125
        %1142 = vst [vmem:[%s775 + $0x60] sm:$0xff] %v1126
        %1143 = vst [vmem:[%s775 + $0x68] sm:$0xff] %v1127
        %1144 = vst [vmem:[%s775 + $0x70] sm:$0xff] %v1128
        %1145 = vst [vmem:[%s775 + $0x78] sm:$0xff] %v1129
        %s1146 = scalar_lea.vmem [#allocation2], 256
        %v1147 = vld [vmem:[%s1146] sm:$0xff]
        %v1148 = vld [vmem:[%s1146 + $0x8] sm:$0xff]
        %v1149 = vld [vmem:[%s1146 + $0x10] sm:$0xff]
        %v1150 = vld [vmem:[%s1146 + $0x18] sm:$0xff]
        %v1151 = vld [vmem:[%s1146 + $0x20] sm:$0xff]
        %v1152 = vld [vmem:[%s1146 + $0x28] sm:$0xff]
        %v1153 = vld [vmem:[%s1146 + $0x30] sm:$0xff]
        %v1154 = vld [vmem:[%s1146 + $0x38] sm:$0xff]
        %v1155 = vld [vmem:[%s1146 + $0x40] sm:$0xff]
        %v1156 = vld [vmem:[%s1146 + $0x48] sm:$0xff]
        %v1157 = vld [vmem:[%s1146 + $0x50] sm:$0xff]
        %v1158 = vld [vmem:[%s1146 + $0x58] sm:$0xff]
        %v1159 = vld [vmem:[%s1146 + $0x60] sm:$0xff]
        %v1160 = vld [vmem:[%s1146 + $0x68] sm:$0xff]
        %v1161 = vld [vmem:[%s1146 + $0x70] sm:$0xff]
        %v1162 = vld [vmem:[%s1146 + $0x78] sm:$0xff]
        %v1163 = vld [vmem:[%s214] sm:$0xff]
        %v1164 = vld [vmem:[%s214 + $0x8] sm:$0xff]
        %v1165 = vld [vmem:[%s214 + $0x10] sm:$0xff]
        %v1166 = vld [vmem:[%s214 + $0x18] sm:$0xff]
        %v1167 = vld [vmem:[%s214 + $0x20] sm:$0xff]
        %v1168 = vld [vmem:[%s214 + $0x28] sm:$0xff]
        %v1169 = vld [vmem:[%s214 + $0x30] sm:$0xff]
        %v1170 = vld [vmem:[%s214 + $0x38] sm:$0xff]
        %v1171 = vld [vmem:[%s214 + $0x40] sm:$0xff]
        %v1172 = vld [vmem:[%s214 + $0x48] sm:$0xff]
        %v1173 = vld [vmem:[%s214 + $0x50] sm:$0xff]
        %v1174 = vld [vmem:[%s214 + $0x58] sm:$0xff]
        %v1175 = vld [vmem:[%s214 + $0x60] sm:$0xff]
        %v1176 = vld [vmem:[%s214 + $0x68] sm:$0xff]
        %v1177 = vld [vmem:[%s214 + $0x70] sm:$0xff]
        %v1178 = vld [vmem:[%s214 + $0x78] sm:$0xff]
        %s1179 = scalar_lea.vmem %s223, 256 [#allocation8]
        %v1180 = vld [vmem:[%s1179] sm:$0xf]
        %v1181 = vld [vmem:[%s1179 + $0x4] sm:$0xf]
        %v1182 = vld [vmem:[%s1179 + $0x8] sm:$0xf]
        %v1183 = vld [vmem:[%s1179 + $0xc] sm:$0xf]
        %v1184 = vld [vmem:[%s1179 + $0x10] sm:$0xf]
        %v1185 = vld [vmem:[%s1179 + $0x14] sm:$0xf]
        %v1186 = vld [vmem:[%s1179 + $0x18] sm:$0xf]
        %v1187 = vld [vmem:[%s1179 + $0x1c] sm:$0xf]
        %v1188 = vld [vmem:[%s1179 + $0x20] sm:$0xf]
        %v1189 = vld [vmem:[%s1179 + $0x24] sm:$0xf]
        %v1190 = vld [vmem:[%s1179 + $0x28] sm:$0xf]
        %v1191 = vld [vmem:[%s1179 + $0x2c] sm:$0xf]
        %v1192 = vld [vmem:[%s1179 + $0x30] sm:$0xf]
        %v1193 = vld [vmem:[%s1179 + $0x34] sm:$0xf]
        %v1194 = vld [vmem:[%s1179 + $0x38] sm:$0xf]
        %v1195 = vld [vmem:[%s1179 + $0x3c] sm:$0xf]
        %v1196 = vld [vmem:[%s1179 + $0x40] sm:$0xf]
        %v1197 = vld [vmem:[%s1179 + $0x44] sm:$0xf]
        %v1198 = vld [vmem:[%s1179 + $0x48] sm:$0xf]
        %v1199 = vld [vmem:[%s1179 + $0x4c] sm:$0xf]
        %v1200 = vld [vmem:[%s1179 + $0x50] sm:$0xf]
        %v1201 = vld [vmem:[%s1179 + $0x54] sm:$0xf]
        %v1202 = vld [vmem:[%s1179 + $0x58] sm:$0xf]
        %v1203 = vld [vmem:[%s1179 + $0x5c] sm:$0xf]
        %v1204 = vld [vmem:[%s1179 + $0x60] sm:$0xf]
        %v1205 = vld [vmem:[%s1179 + $0x64] sm:$0xf]
        %v1206 = vld [vmem:[%s1179 + $0x68] sm:$0xf]
        %v1207 = vld [vmem:[%s1179 + $0x6c] sm:$0xf]
        %v1208 = vld [vmem:[%s1179 + $0x70] sm:$0xf]
        %v1209 = vld [vmem:[%s1179 + $0x74] sm:$0xf]
        %v1210 = vld [vmem:[%s1179 + $0x78] sm:$0xf]
        %v1211 = vld [vmem:[%s1179 + $0x7c] sm:$0xf]
        %v1228 = vunpack.c.l.b16 %v1163
        %v1229 = vunpack.c.h.b16 %v1163
        %v1230 = vunpack.c.l.b16 %v1164
        %v1231 = vunpack.c.h.b16 %v1164
        %v1232 = vunpack.c.l.b16 %v1165
        %v1233 = vunpack.c.h.b16 %v1165
        %v1234 = vunpack.c.l.b16 %v1166
        %v1235 = vunpack.c.h.b16 %v1166
        %v1236 = vunpack.c.l.b16 %v1167
        %v1237 = vunpack.c.h.b16 %v1167
        %v1238 = vunpack.c.l.b16 %v1168
        %v1239 = vunpack.c.h.b16 %v1168
        %v1240 = vunpack.c.l.b16 %v1169
        %v1241 = vunpack.c.h.b16 %v1169
        %v1242 = vunpack.c.l.b16 %v1170
        %v1243 = vunpack.c.h.b16 %v1170
        %v1244 = vunpack.c.l.b16 %v1171
        %v1245 = vunpack.c.h.b16 %v1171
        %v1246 = vunpack.c.l.b16 %v1172
        %v1247 = vunpack.c.h.b16 %v1172
        %v1248 = vunpack.c.l.b16 %v1173
        %v1249 = vunpack.c.h.b16 %v1173
        %v1250 = vunpack.c.l.b16 %v1174
        %v1251 = vunpack.c.h.b16 %v1174
        %v1252 = vunpack.c.l.b16 %v1175
        %v1253 = vunpack.c.h.b16 %v1175
        %v1254 = vunpack.c.l.b16 %v1176
        %v1255 = vunpack.c.h.b16 %v1176
        %v1256 = vunpack.c.l.b16 %v1177
        %v1257 = vunpack.c.h.b16 %v1177
        %v1258 = vunpack.c.l.b16 %v1178
        %v1259 = vunpack.c.h.b16 %v1178
        %v1260 = vpack.c.b16 %v1230, %v1228
        %v1261 = vpack.c.b16 %v1231, %v1229
        %v1262 = vpack.c.b16 %v1234, %v1232
        %v1263 = vpack.c.b16 %v1235, %v1233
        %v1264 = vpack.c.b16 %v1238, %v1236
        %v1265 = vpack.c.b16 %v1239, %v1237
        %v1266 = vpack.c.b16 %v1242, %v1240
        %v1267 = vpack.c.b16 %v1243, %v1241
        %v1268 = vpack.c.b16 %v1246, %v1244
        %v1269 = vpack.c.b16 %v1247, %v1245
        %v1270 = vpack.c.b16 %v1250, %v1248
        %v1271 = vpack.c.b16 %v1251, %v1249
        %v1272 = vpack.c.b16 %v1254, %v1252
        %v1273 = vpack.c.b16 %v1255, %v1253
        %v1274 = vpack.c.b16 %v1258, %v1256
        %v1275 = vpack.c.b16 %v1259, %v1257
        %v1324 = vunpack.c.l.b16 %v1180
        %v1325 = vunpack.c.l.b16 %v1181
        %v1326 = vunpack.c.l.b16 %v1182
        %v1327 = vunpack.c.l.b16 %v1183
        %v1328 = vunpack.c.l.b16 %v1184
        %v1329 = vunpack.c.l.b16 %v1185
        %v1330 = vunpack.c.l.b16 %v1186
        %v1331 = vunpack.c.l.b16 %v1187
        %v1332 = vunpack.c.l.b16 %v1188
        %v1333 = vunpack.c.l.b16 %v1189
        %v1334 = vunpack.c.l.b16 %v1190
        %v1335 = vunpack.c.l.b16 %v1191
        %v1336 = vunpack.c.l.b16 %v1192
        %v1337 = vunpack.c.l.b16 %v1193
        %v1338 = vunpack.c.l.b16 %v1194
        %v1339 = vunpack.c.l.b16 %v1195
        %v1340 = vunpack.c.l.b16 %v1196
        %v1341 = vunpack.c.l.b16 %v1197
        %v1342 = vunpack.c.l.b16 %v1198
        %v1343 = vunpack.c.l.b16 %v1199
        %v1344 = vunpack.c.l.b16 %v1200
        %v1345 = vunpack.c.l.b16 %v1201
        %v1346 = vunpack.c.l.b16 %v1202
        %v1347 = vunpack.c.l.b16 %v1203
        %v1348 = vunpack.c.l.b16 %v1204
        %v1349 = vunpack.c.l.b16 %v1205
        %v1350 = vunpack.c.l.b16 %v1206
        %v1351 = vunpack.c.l.b16 %v1207
        %v1352 = vunpack.c.l.b16 %v1208
        %v1353 = vunpack.c.l.b16 %v1209
        %v1354 = vunpack.c.l.b16 %v1210
        %v1355 = vunpack.c.l.b16 %v1211
        %v1356 = vpack.c.b16 %v1325, %v1324
        %v1357 = vpack.c.b16 %v1327, %v1326
        %v1358 = vpack.c.b16 %v1329, %v1328
        %v1359 = vpack.c.b16 %v1331, %v1330
        %v1360 = vpack.c.b16 %v1333, %v1332
        %v1361 = vpack.c.b16 %v1335, %v1334
        %v1362 = vpack.c.b16 %v1337, %v1336
        %v1363 = vpack.c.b16 %v1339, %v1338
        %v1364 = vpack.c.b16 %v1341, %v1340
        %v1365 = vpack.c.b16 %v1343, %v1342
        %v1366 = vpack.c.b16 %v1345, %v1344
        %v1367 = vpack.c.b16 %v1347, %v1346
        %v1368 = vpack.c.b16 %v1349, %v1348
        %v1369 = vpack.c.b16 %v1351, %v1350
        %v1370 = vpack.c.b16 %v1353, %v1352
        %v1371 = vpack.c.b16 %v1355, %v1354
        %1388 = vmatprep.subr.bf16.mxu0 0
        %1389 = vmatpush1.bf16.msra.mxu0 %v1363
        %1390 = vmatprep.subr.bf16.mxu0 0
        %1391 = vmatpush1.bf16.msra.mxu0 %v1362
        %1392 = vmatprep.subr.bf16.mxu0 0
        %1393 = vmatpush1.bf16.msra.mxu0 %v1361
        %1394 = vmatprep.subr.bf16.mxu0 0
        %1395 = vmatpush1.bf16.msra.mxu0 %v1360
        %1396 = vmatprep.subr.bf16.mxu0 0
        %1397 = vmatpush1.bf16.msra.mxu0 %v1359
        %1398 = vmatprep.subr.bf16.mxu0 0
        %1399 = vmatpush1.bf16.msra.mxu0 %v1358
        %1400 = vmatprep.subr.bf16.mxu0 0
        %1401 = vmatpush1.bf16.msra.mxu0 %v1357
        %1402 = vmatprep.subr.bf16.mxu0 0
        %1403 = vmatpush1.bf16.msra.mxu0 %v1356
        %1404 = vmatprep.subr.bf16.mxu0 0
        %1405 = vmatpush2.bf16.msra.mxu0 %v1371
        %1406 = vmatprep.subr.bf16.mxu0 0
        %1407 = vmatpush2.bf16.msra.mxu0 %v1370
        %1408 = vmatprep.subr.bf16.mxu0 0
        %1409 = vmatpush2.bf16.msra.mxu0 %v1369
        %1410 = vmatprep.subr.bf16.mxu0 0
        %1411 = vmatpush2.bf16.msra.mxu0 %v1368
        %1412 = vmatprep.subr.bf16.mxu0 0
        %1413 = vmatpush2.bf16.msra.mxu0 %v1367
        %1414 = vmatprep.subr.bf16.mxu0 0
        %1415 = vmatpush2.bf16.msra.mxu0 %v1366
        %1416 = vmatprep.subr.bf16.mxu0 0
        %1417 = vmatpush2.bf16.msra.mxu0 %v1365
        %1418 = vmatprep.subr.bf16.mxu0 0
        %1419 = vmatpush2.bf16.msra.mxu0 %v1364
        %1420 = vmatprep.mubr.bf16.mxu0 %v1261
        %1421 = vmatmul.mubr.bf16.gmra.mxu0 %v1260
        %v1422 = vpop.f32.mrf.mxu0
        %v1423 = vadd.f32 0.0, %v1422
        %v1424 = vpop.f32.mrf.mxu0
        %v1425 = vpop.f32.mrf.mxu0
        %v1426 = vadd.f32 0.0, %v1425
        %v1427 = vpop.f32.mrf.mxu0
        %1428 = vmatprep.mubr.bf16.mxu0 %v1263
        %1429 = vmatmul.mubr.bf16.gmra.mxu0 %v1262
        %v1430 = vpop.f32.mrf.mxu0
        %v1431 = vadd.f32 0.0, %v1430
        %v1432 = vpop.f32.mrf.mxu0
        %v1433 = vpop.f32.mrf.mxu0
        %v1434 = vadd.f32 0.0, %v1433
        %v1435 = vpop.f32.mrf.mxu0
        %1436 = vmatprep.mubr.bf16.mxu0 %v1265
        %1437 = vmatmul.mubr.bf16.gmra.mxu0 %v1264
        %v1438 = vpop.f32.mrf.mxu0
        %v1439 = vadd.f32 0.0, %v1438
        %v1440 = vpop.f32.mrf.mxu0
        %v1441 = vpop.f32.mrf.mxu0
        %v1442 = vadd.f32 0.0, %v1441
        %v1443 = vpop.f32.mrf.mxu0
        %1444 = vmatprep.mubr.bf16.mxu0 %v1267
        %1445 = vmatmul.mubr.bf16.gmra.mxu0 %v1266
        %v1446 = vpop.f32.mrf.mxu0
        %v1447 = vadd.f32 0.0, %v1446
        %v1448 = vpop.f32.mrf.mxu0
        %v1449 = vpop.f32.mrf.mxu0
        %v1450 = vadd.f32 0.0, %v1449
        %v1451 = vpop.f32.mrf.mxu0
        %1452 = vmatprep.mubr.bf16.mxu0 %v1269
        %1453 = vmatmul.mubr.bf16.gmra.mxu0 %v1268
        %v1454 = vpop.f32.mrf.mxu0
        %v1455 = vadd.f32 0.0, %v1454
        %v1456 = vpop.f32.mrf.mxu0
        %v1457 = vpop.f32.mrf.mxu0
        %v1458 = vadd.f32 0.0, %v1457
        %v1459 = vpop.f32.mrf.mxu0
        %1460 = vmatprep.mubr.bf16.mxu0 %v1271
        %1461 = vmatmul.mubr.bf16.gmra.mxu0 %v1270
        %v1462 = vpop.f32.mrf.mxu0
        %v1463 = vadd.f32 0.0, %v1462
        %v1464 = vpop.f32.mrf.mxu0
        %v1465 = vpop.f32.mrf.mxu0
        %v1466 = vadd.f32 0.0, %v1465
        %v1467 = vpop.f32.mrf.mxu0
        %1468 = vmatprep.mubr.bf16.mxu0 %v1273
        %1469 = vmatmul.mubr.bf16.gmra.mxu0 %v1272
        %v1470 = vpop.f32.mrf.mxu0
        %v1471 = vadd.f32 0.0, %v1470
        %v1472 = vpop.f32.mrf.mxu0
        %v1473 = vpop.f32.mrf.mxu0
        %v1474 = vadd.f32 0.0, %v1473
        %v1475 = vpop.f32.mrf.mxu0
        %1476 = vmatprep.mubr.bf16.mxu0 %v1275
        %1477 = vmatmul.mubr.bf16.gmra.mxu0 %v1274
        %v1478 = vpop.f32.mrf.mxu0
        %v1479 = vadd.f32 0.0, %v1478
        %v1480 = vpop.f32.mrf.mxu0
        %v1481 = vpop.f32.mrf.mxu0
        %v1482 = vadd.f32 0.0, %v1481
        %v1483 = vpop.f32.mrf.mxu0
        %1484 = vdwg.mxu0
        %v1485 = vadd.f32 %v1147, %v1423
        %v1486 = vadd.f32 %v1148, %v1426
        %v1487 = vadd.f32 %v1149, %v1431
        %v1488 = vadd.f32 %v1150, %v1434
        %v1489 = vadd.f32 %v1151, %v1439
        %v1490 = vadd.f32 %v1152, %v1442
        %v1491 = vadd.f32 %v1153, %v1447
        %v1492 = vadd.f32 %v1154, %v1450
        %v1493 = vadd.f32 %v1155, %v1455
        %v1494 = vadd.f32 %v1156, %v1458
        %v1495 = vadd.f32 %v1157, %v1463
        %v1496 = vadd.f32 %v1158, %v1466
        %v1497 = vadd.f32 %v1159, %v1471
        %v1498 = vadd.f32 %v1160, %v1474
        %v1499 = vadd.f32 %v1161, %v1479
        %v1500 = vadd.f32 %v1162, %v1482
        %1501 = vst [vmem:[%s1146] sm:$0xff] %v1485
        %1502 = vst [vmem:[%s1146 + $0x8] sm:$0xff] %v1486
        %1503 = vst [vmem:[%s1146 + $0x10] sm:$0xff] %v1487
        %1504 = vst [vmem:[%s1146 + $0x18] sm:$0xff] %v1488
        %1505 = vst [vmem:[%s1146 + $0x20] sm:$0xff] %v1489
        %1506 = vst [vmem:[%s1146 + $0x28] sm:$0xff] %v1490
        %1507 = vst [vmem:[%s1146 + $0x30] sm:$0xff] %v1491
        %1508 = vst [vmem:[%s1146 + $0x38] sm:$0xff] %v1492
        %1509 = vst [vmem:[%s1146 + $0x40] sm:$0xff] %v1493
        %1510 = vst [vmem:[%s1146 + $0x48] sm:$0xff] %v1494
        %1511 = vst [vmem:[%s1146 + $0x50] sm:$0xff] %v1495
        %1512 = vst [vmem:[%s1146 + $0x58] sm:$0xff] %v1496
        %1513 = vst [vmem:[%s1146 + $0x60] sm:$0xff] %v1497
        %1514 = vst [vmem:[%s1146 + $0x68] sm:$0xff] %v1498
        %1515 = vst [vmem:[%s1146 + $0x70] sm:$0xff] %v1499
        %1516 = vst [vmem:[%s1146 + $0x78] sm:$0xff] %v1500
        %s1517 = scalar_lea.vmem [#allocation2], 384
        %v1518 = vld [vmem:[%s1517] sm:$0xff]
        %v1519 = vld [vmem:[%s1517 + $0x8] sm:$0xff]
        %v1520 = vld [vmem:[%s1517 + $0x10] sm:$0xff]
        %v1521 = vld [vmem:[%s1517 + $0x18] sm:$0xff]
        %v1522 = vld [vmem:[%s1517 + $0x20] sm:$0xff]
        %v1523 = vld [vmem:[%s1517 + $0x28] sm:$0xff]
        %v1524 = vld [vmem:[%s1517 + $0x30] sm:$0xff]
        %v1525 = vld [vmem:[%s1517 + $0x38] sm:$0xff]
        %v1526 = vld [vmem:[%s1517 + $0x40] sm:$0xff]
        %v1527 = vld [vmem:[%s1517 + $0x48] sm:$0xff]
        %v1528 = vld [vmem:[%s1517 + $0x50] sm:$0xff]
        %v1529 = vld [vmem:[%s1517 + $0x58] sm:$0xff]
        %v1530 = vld [vmem:[%s1517 + $0x60] sm:$0xff]
        %v1531 = vld [vmem:[%s1517 + $0x68] sm:$0xff]
        %v1532 = vld [vmem:[%s1517 + $0x70] sm:$0xff]
        %v1533 = vld [vmem:[%s1517 + $0x78] sm:$0xff]
        %v1534 = vld [vmem:[%s214] sm:$0xff]
        %v1535 = vld [vmem:[%s214 + $0x8] sm:$0xff]
        %v1536 = vld [vmem:[%s214 + $0x10] sm:$0xff]
        %v1537 = vld [vmem:[%s214 + $0x18] sm:$0xff]
        %v1538 = vld [vmem:[%s214 + $0x20] sm:$0xff]
        %v1539 = vld [vmem:[%s214 + $0x28] sm:$0xff]
        %v1540 = vld [vmem:[%s214 + $0x30] sm:$0xff]
        %v1541 = vld [vmem:[%s214 + $0x38] sm:$0xff]
        %v1542 = vld [vmem:[%s214 + $0x40] sm:$0xff]
        %v1543 = vld [vmem:[%s214 + $0x48] sm:$0xff]
        %v1544 = vld [vmem:[%s214 + $0x50] sm:$0xff]
        %v1545 = vld [vmem:[%s214 + $0x58] sm:$0xff]
        %v1546 = vld [vmem:[%s214 + $0x60] sm:$0xff]
        %v1547 = vld [vmem:[%s214 + $0x68] sm:$0xff]
        %v1548 = vld [vmem:[%s214 + $0x70] sm:$0xff]
        %v1549 = vld [vmem:[%s214 + $0x78] sm:$0xff]
        %s1550 = scalar_lea.vmem %s223, 384 [#allocation8]
        %v1551 = vld [vmem:[%s1550] sm:$0xf]
        %v1552 = vld [vmem:[%s1550 + $0x4] sm:$0xf]
        %v1553 = vld [vmem:[%s1550 + $0x8] sm:$0xf]
        %v1554 = vld [vmem:[%s1550 + $0xc] sm:$0xf]
        %v1555 = vld [vmem:[%s1550 + $0x10] sm:$0xf]
        %v1556 = vld [vmem:[%s1550 + $0x14] sm:$0xf]
        %v1557 = vld [vmem:[%s1550 + $0x18] sm:$0xf]
        %v1558 = vld [vmem:[%s1550 + $0x1c] sm:$0xf]
        %v1559 = vld [vmem:[%s1550 + $0x20] sm:$0xf]
        %v1560 = vld [vmem:[%s1550 + $0x24] sm:$0xf]
        %v1561 = vld [vmem:[%s1550 + $0x28] sm:$0xf]
        %v1562 = vld [vmem:[%s1550 + $0x2c] sm:$0xf]
        %v1563 = vld [vmem:[%s1550 + $0x30] sm:$0xf]
        %v1564 = vld [vmem:[%s1550 + $0x34] sm:$0xf]
        %v1565 = vld [vmem:[%s1550 + $0x38] sm:$0xf]
        %v1566 = vld [vmem:[%s1550 + $0x3c] sm:$0xf]
        %v1567 = vld [vmem:[%s1550 + $0x40] sm:$0xf]
        %v1568 = vld [vmem:[%s1550 + $0x44] sm:$0xf]
        %v1569 = vld [vmem:[%s1550 + $0x48] sm:$0xf]
        %v1570 = vld [vmem:[%s1550 + $0x4c] sm:$0xf]
        %v1571 = vld [vmem:[%s1550 + $0x50] sm:$0xf]
        %v1572 = vld [vmem:[%s1550 + $0x54] sm:$0xf]
        %v1573 = vld [vmem:[%s1550 + $0x58] sm:$0xf]
        %v1574 = vld [vmem:[%s1550 + $0x5c] sm:$0xf]
        %v1575 = vld [vmem:[%s1550 + $0x60] sm:$0xf]
        %v1576 = vld [vmem:[%s1550 + $0x64] sm:$0xf]
        %v1577 = vld [vmem:[%s1550 + $0x68] sm:$0xf]
        %v1578 = vld [vmem:[%s1550 + $0x6c] sm:$0xf]
        %v1579 = vld [vmem:[%s1550 + $0x70] sm:$0xf]
        %v1580 = vld [vmem:[%s1550 + $0x74] sm:$0xf]
        %v1581 = vld [vmem:[%s1550 + $0x78] sm:$0xf]
        %v1582 = vld [vmem:[%s1550 + $0x7c] sm:$0xf]
        %v1599 = vunpack.c.l.b16 %v1534
        %v1600 = vunpack.c.h.b16 %v1534
        %v1601 = vunpack.c.l.b16 %v1535
        %v1602 = vunpack.c.h.b16 %v1535
        %v1603 = vunpack.c.l.b16 %v1536
        %v1604 = vunpack.c.h.b16 %v1536
        %v1605 = vunpack.c.l.b16 %v1537
        %v1606 = vunpack.c.h.b16 %v1537
        %v1607 = vunpack.c.l.b16 %v1538
        %v1608 = vunpack.c.h.b16 %v1538
        %v1609 = vunpack.c.l.b16 %v1539
        %v1610 = vunpack.c.h.b16 %v1539
        %v1611 = vunpack.c.l.b16 %v1540
        %v1612 = vunpack.c.h.b16 %v1540
        %v1613 = vunpack.c.l.b16 %v1541
        %v1614 = vunpack.c.h.b16 %v1541
        %v1615 = vunpack.c.l.b16 %v1542
        %v1616 = vunpack.c.h.b16 %v1542
        %v1617 = vunpack.c.l.b16 %v1543
        %v1618 = vunpack.c.h.b16 %v1543
        %v1619 = vunpack.c.l.b16 %v1544
        %v1620 = vunpack.c.h.b16 %v1544
        %v1621 = vunpack.c.l.b16 %v1545
        %v1622 = vunpack.c.h.b16 %v1545
        %v1623 = vunpack.c.l.b16 %v1546
        %v1624 = vunpack.c.h.b16 %v1546
        %v1625 = vunpack.c.l.b16 %v1547
        %v1626 = vunpack.c.h.b16 %v1547
        %v1627 = vunpack.c.l.b16 %v1548
        %v1628 = vunpack.c.h.b16 %v1548
        %v1629 = vunpack.c.l.b16 %v1549
        %v1630 = vunpack.c.h.b16 %v1549
        %v1631 = vpack.c.b16 %v1601, %v1599
        %v1632 = vpack.c.b16 %v1602, %v1600
        %v1633 = vpack.c.b16 %v1605, %v1603
        %v1634 = vpack.c.b16 %v1606, %v1604
        %v1635 = vpack.c.b16 %v1609, %v1607
        %v1636 = vpack.c.b16 %v1610, %v1608
        %v1637 = vpack.c.b16 %v1613, %v1611
        %v1638 = vpack.c.b16 %v1614, %v1612
        %v1639 = vpack.c.b16 %v1617, %v1615
        %v1640 = vpack.c.b16 %v1618, %v1616
        %v1641 = vpack.c.b16 %v1621, %v1619
        %v1642 = vpack.c.b16 %v1622, %v1620
        %v1643 = vpack.c.b16 %v1625, %v1623
        %v1644 = vpack.c.b16 %v1626, %v1624
        %v1645 = vpack.c.b16 %v1629, %v1627
        %v1646 = vpack.c.b16 %v1630, %v1628
        %v1695 = vunpack.c.l.b16 %v1551
        %v1696 = vunpack.c.l.b16 %v1552
        %v1697 = vunpack.c.l.b16 %v1553
        %v1698 = vunpack.c.l.b16 %v1554
        %v1699 = vunpack.c.l.b16 %v1555
        %v1700 = vunpack.c.l.b16 %v1556
        %v1701 = vunpack.c.l.b16 %v1557
        %v1702 = vunpack.c.l.b16 %v1558
        %v1703 = vunpack.c.l.b16 %v1559
        %v1704 = vunpack.c.l.b16 %v1560
        %v1705 = vunpack.c.l.b16 %v1561
        %v1706 = vunpack.c.l.b16 %v1562
        %v1707 = vunpack.c.l.b16 %v1563
        %v1708 = vunpack.c.l.b16 %v1564
        %v1709 = vunpack.c.l.b16 %v1565
        %v1710 = vunpack.c.l.b16 %v1566
        %v1711 = vunpack.c.l.b16 %v1567
        %v1712 = vunpack.c.l.b16 %v1568
        %v1713 = vunpack.c.l.b16 %v1569
        %v1714 = vunpack.c.l.b16 %v1570
        %v1715 = vunpack.c.l.b16 %v1571
        %v1716 = vunpack.c.l.b16 %v1572
        %v1717 = vunpack.c.l.b16 %v1573
        %v1718 = vunpack.c.l.b16 %v1574
        %v1719 = vunpack.c.l.b16 %v1575
        %v1720 = vunpack.c.l.b16 %v1576
        %v1721 = vunpack.c.l.b16 %v1577
        %v1722 = vunpack.c.l.b16 %v1578
        %v1723 = vunpack.c.l.b16 %v1579
        %v1724 = vunpack.c.l.b16 %v1580
        %v1725 = vunpack.c.l.b16 %v1581
        %v1726 = vunpack.c.l.b16 %v1582
        %v1727 = vpack.c.b16 %v1696, %v1695
        %v1728 = vpack.c.b16 %v1698, %v1697
        %v1729 = vpack.c.b16 %v1700, %v1699
        %v1730 = vpack.c.b16 %v1702, %v1701
        %v1731 = vpack.c.b16 %v1704, %v1703
        %v1732 = vpack.c.b16 %v1706, %v1705
        %v1733 = vpack.c.b16 %v1708, %v1707
        %v1734 = vpack.c.b16 %v1710, %v1709
        %v1735 = vpack.c.b16 %v1712, %v1711
        %v1736 = vpack.c.b16 %v1714, %v1713
        %v1737 = vpack.c.b16 %v1716, %v1715
        %v1738 = vpack.c.b16 %v1718, %v1717
        %v1739 = vpack.c.b16 %v1720, %v1719
        %v1740 = vpack.c.b16 %v1722, %v1721
        %v1741 = vpack.c.b16 %v1724, %v1723
        %v1742 = vpack.c.b16 %v1726, %v1725
        %1759 = vmatprep.subr.bf16.mxu0 0
        %1760 = vmatpush1.bf16.msra.mxu0 %v1734
        %1761 = vmatprep.subr.bf16.mxu0 0
        %1762 = vmatpush1.bf16.msra.mxu0 %v1733
        %1763 = vmatprep.subr.bf16.mxu0 0
        %1764 = vmatpush1.bf16.msra.mxu0 %v1732
        %1765 = vmatprep.subr.bf16.mxu0 0
        %1766 = vmatpush1.bf16.msra.mxu0 %v1731
        %1767 = vmatprep.subr.bf16.mxu0 0
        %1768 = vmatpush1.bf16.msra.mxu0 %v1730
        %1769 = vmatprep.subr.bf16.mxu0 0
        %1770 = vmatpush1.bf16.msra.mxu0 %v1729
        %1771 = vmatprep.subr.bf16.mxu0 0
        %1772 = vmatpush1.bf16.msra.mxu0 %v1728
        %1773 = vmatprep.subr.bf16.mxu0 0
        %1774 = vmatpush1.bf16.msra.mxu0 %v1727
        %1775 = vmatprep.subr.bf16.mxu0 0
        %1776 = vmatpush2.bf16.msra.mxu0 %v1742
        %1777 = vmatprep.subr.bf16.mxu0 0
        %1778 = vmatpush2.bf16.msra.mxu0 %v1741
        %1779 = vmatprep.subr.bf16.mxu0 0
        %1780 = vmatpush2.bf16.msra.mxu0 %v1740
        %1781 = vmatprep.subr.bf16.mxu0 0
        %1782 = vmatpush2.bf16.msra.mxu0 %v1739
        %1783 = vmatprep.subr.bf16.mxu0 0
        %1784 = vmatpush2.bf16.msra.mxu0 %v1738
        %1785 = vmatprep.subr.bf16.mxu0 0
        %1786 = vmatpush2.bf16.msra.mxu0 %v1737
        %1787 = vmatprep.subr.bf16.mxu0 0
        %1788 = vmatpush2.bf16.msra.mxu0 %v1736
        %1789 = vmatprep.subr.bf16.mxu0 0
        %1790 = vmatpush2.bf16.msra.mxu0 %v1735
        %1791 = vmatprep.mubr.bf16.mxu0 %v1632
        %1792 = vmatmul.mubr.bf16.gmra.mxu0 %v1631
        %v1793 = vpop.f32.mrf.mxu0
        %v1794 = vadd.f32 0.0, %v1793
        %v1795 = vpop.f32.mrf.mxu0
        %v1796 = vpop.f32.mrf.mxu0
        %v1797 = vadd.f32 0.0, %v1796
        %v1798 = vpop.f32.mrf.mxu0
        %1799 = vmatprep.mubr.bf16.mxu0 %v1634
        %1800 = vmatmul.mubr.bf16.gmra.mxu0 %v1633
        %v1801 = vpop.f32.mrf.mxu0
        %v1802 = vadd.f32 0.0, %v1801
        %v1803 = vpop.f32.mrf.mxu0
        %v1804 = vpop.f32.mrf.mxu0
        %v1805 = vadd.f32 0.0, %v1804
        %v1806 = vpop.f32.mrf.mxu0
        %1807 = vmatprep.mubr.bf16.mxu0 %v1636
        %1808 = vmatmul.mubr.bf16.gmra.mxu0 %v1635
        %v1809 = vpop.f32.mrf.mxu0
        %v1810 = vadd.f32 0.0, %v1809
        %v1811 = vpop.f32.mrf.mxu0
        %v1812 = vpop.f32.mrf.mxu0
        %v1813 = vadd.f32 0.0, %v1812
        %v1814 = vpop.f32.mrf.mxu0
        %1815 = vmatprep.mubr.bf16.mxu0 %v1638
        %1816 = vmatmul.mubr.bf16.gmra.mxu0 %v1637
        %v1817 = vpop.f32.mrf.mxu0
        %v1818 = vadd.f32 0.0, %v1817
        %v1819 = vpop.f32.mrf.mxu0
        %v1820 = vpop.f32.mrf.mxu0
        %v1821 = vadd.f32 0.0, %v1820
        %v1822 = vpop.f32.mrf.mxu0
        %1823 = vmatprep.mubr.bf16.mxu0 %v1640
        %1824 = vmatmul.mubr.bf16.gmra.mxu0 %v1639
        %v1825 = vpop.f32.mrf.mxu0
        %v1826 = vadd.f32 0.0, %v1825
        %v1827 = vpop.f32.mrf.mxu0
        %v1828 = vpop.f32.mrf.mxu0
        %v1829 = vadd.f32 0.0, %v1828
        %v1830 = vpop.f32.mrf.mxu0
        %1831 = vmatprep.mubr.bf16.mxu0 %v1642
        %1832 = vmatmul.mubr.bf16.gmra.mxu0 %v1641
        %v1833 = vpop.f32.mrf.mxu0
        %v1834 = vadd.f32 0.0, %v1833
        %v1835 = vpop.f32.mrf.mxu0
        %v1836 = vpop.f32.mrf.mxu0
        %v1837 = vadd.f32 0.0, %v1836
        %v1838 = vpop.f32.mrf.mxu0
        %1839 = vmatprep.mubr.bf16.mxu0 %v1644
        %1840 = vmatmul.mubr.bf16.gmra.mxu0 %v1643
        %v1841 = vpop.f32.mrf.mxu0
        %v1842 = vadd.f32 0.0, %v1841
        %v1843 = vpop.f32.mrf.mxu0
        %v1844 = vpop.f32.mrf.mxu0
        %v1845 = vadd.f32 0.0, %v1844
        %v1846 = vpop.f32.mrf.mxu0
        %1847 = vmatprep.mubr.bf16.mxu0 %v1646
        %1848 = vmatmul.mubr.bf16.gmra.mxu0 %v1645
        %v1849 = vpop.f32.mrf.mxu0
        %v1850 = vadd.f32 0.0, %v1849
        %v1851 = vpop.f32.mrf.mxu0
        %v1852 = vpop.f32.mrf.mxu0
        %v1853 = vadd.f32 0.0, %v1852
        %v1854 = vpop.f32.mrf.mxu0
        %1855 = vdwg.mxu0
        %v1856 = vadd.f32 %v1518, %v1794
        %v1857 = vadd.f32 %v1519, %v1797
        %v1858 = vadd.f32 %v1520, %v1802
        %v1859 = vadd.f32 %v1521, %v1805
        %v1860 = vadd.f32 %v1522, %v1810
        %v1861 = vadd.f32 %v1523, %v1813
        %v1862 = vadd.f32 %v1524, %v1818
        %v1863 = vadd.f32 %v1525, %v1821
        %v1864 = vadd.f32 %v1526, %v1826
        %v1865 = vadd.f32 %v1527, %v1829
        %v1866 = vadd.f32 %v1528, %v1834
        %v1867 = vadd.f32 %v1529, %v1837
        %v1868 = vadd.f32 %v1530, %v1842
        %v1869 = vadd.f32 %v1531, %v1845
        %v1870 = vadd.f32 %v1532, %v1850
        %v1871 = vadd.f32 %v1533, %v1853
        %1872 = vst [vmem:[%s1517] sm:$0xff] %v1856
        %1873 = vst [vmem:[%s1517 + $0x8] sm:$0xff] %v1857
        %1874 = vst [vmem:[%s1517 + $0x10] sm:$0xff] %v1858
        %1875 = vst [vmem:[%s1517 + $0x18] sm:$0xff] %v1859
        %1876 = vst [vmem:[%s1517 + $0x20] sm:$0xff] %v1860
        %1877 = vst [vmem:[%s1517 + $0x28] sm:$0xff] %v1861
        %1878 = vst [vmem:[%s1517 + $0x30] sm:$0xff] %v1862
        %1879 = vst [vmem:[%s1517 + $0x38] sm:$0xff] %v1863
        %1880 = vst [vmem:[%s1517 + $0x40] sm:$0xff] %v1864
        %1881 = vst [vmem:[%s1517 + $0x48] sm:$0xff] %v1865
        %1882 = vst [vmem:[%s1517 + $0x50] sm:$0xff] %v1866
        %1883 = vst [vmem:[%s1517 + $0x58] sm:$0xff] %v1867
        %1884 = vst [vmem:[%s1517 + $0x60] sm:$0xff] %v1868
        %1885 = vst [vmem:[%s1517 + $0x68] sm:$0xff] %v1869
        %1886 = vst [vmem:[%s1517 + $0x70] sm:$0xff] %v1870
        %1887 = vst [vmem:[%s1517 + $0x78] sm:$0xff] %v1871
        %s1888 = scalar_lea.vmem [#allocation2], 512
        %v1889 = vld [vmem:[%s1888] sm:$0xff]
        %v1890 = vld [vmem:[%s1888 + $0x8] sm:$0xff]
        %v1891 = vld [vmem:[%s1888 + $0x10] sm:$0xff]
        %v1892 = vld [vmem:[%s1888 + $0x18] sm:$0xff]
        %v1893 = vld [vmem:[%s1888 + $0x20] sm:$0xff]
        %v1894 = vld [vmem:[%s1888 + $0x28] sm:$0xff]
        %v1895 = vld [vmem:[%s1888 + $0x30] sm:$0xff]
        %v1896 = vld [vmem:[%s1888 + $0x38] sm:$0xff]
        %v1897 = vld [vmem:[%s1888 + $0x40] sm:$0xff]
        %v1898 = vld [vmem:[%s1888 + $0x48] sm:$0xff]
        %v1899 = vld [vmem:[%s1888 + $0x50] sm:$0xff]
        %v1900 = vld [vmem:[%s1888 + $0x58] sm:$0xff]
        %v1901 = vld [vmem:[%s1888 + $0x60] sm:$0xff]
        %v1902 = vld [vmem:[%s1888 + $0x68] sm:$0xff]
        %v1903 = vld [vmem:[%s1888 + $0x70] sm:$0xff]
        %v1904 = vld [vmem:[%s1888 + $0x78] sm:$0xff]
        %v1905 = vld [vmem:[%s214] sm:$0xff]
        %v1906 = vld [vmem:[%s214 + $0x8] sm:$0xff]
        %v1907 = vld [vmem:[%s214 + $0x10] sm:$0xff]
        %v1908 = vld [vmem:[%s214 + $0x18] sm:$0xff]
        %v1909 = vld [vmem:[%s214 + $0x20] sm:$0xff]
        %v1910 = vld [vmem:[%s214 + $0x28] sm:$0xff]
        %v1911 = vld [vmem:[%s214 + $0x30] sm:$0xff]
        %v1912 = vld [vmem:[%s214 + $0x38] sm:$0xff]
        %v1913 = vld [vmem:[%s214 + $0x40] sm:$0xff]
        %v1914 = vld [vmem:[%s214 + $0x48] sm:$0xff]
        %v1915 = vld [vmem:[%s214 + $0x50] sm:$0xff]
        %v1916 = vld [vmem:[%s214 + $0x58] sm:$0xff]
        %v1917 = vld [vmem:[%s214 + $0x60] sm:$0xff]
        %v1918 = vld [vmem:[%s214 + $0x68] sm:$0xff]
        %v1919 = vld [vmem:[%s214 + $0x70] sm:$0xff]
        %v1920 = vld [vmem:[%s214 + $0x78] sm:$0xff]
        %s1921 = scalar_lea.vmem %s223, 512 [#allocation8]
        %v1922 = vld [vmem:[%s1921] sm:$0xf]
        %v1923 = vld [vmem:[%s1921 + $0x4] sm:$0xf]
        %v1924 = vld [vmem:[%s1921 + $0x8] sm:$0xf]
        %v1925 = vld [vmem:[%s1921 + $0xc] sm:$0xf]
        %v1926 = vld [vmem:[%s1921 + $0x10] sm:$0xf]
        %v1927 = vld [vmem:[%s1921 + $0x14] sm:$0xf]
        %v1928 = vld [vmem:[%s1921 + $0x18] sm:$0xf]
        %v1929 = vld [vmem:[%s1921 + $0x1c] sm:$0xf]
        %v1930 = vld [vmem:[%s1921 + $0x20] sm:$0xf]
        %v1931 = vld [vmem:[%s1921 + $0x24] sm:$0xf]
        %v1932 = vld [vmem:[%s1921 + $0x28] sm:$0xf]
        %v1933 = vld [vmem:[%s1921 + $0x2c] sm:$0xf]
        %v1934 = vld [vmem:[%s1921 + $0x30] sm:$0xf]
        %v1935 = vld [vmem:[%s1921 + $0x34] sm:$0xf]
        %v1936 = vld [vmem:[%s1921 + $0x38] sm:$0xf]
        %v1937 = vld [vmem:[%s1921 + $0x3c] sm:$0xf]
        %v1938 = vld [vmem:[%s1921 + $0x40] sm:$0xf]
        %v1939 = vld [vmem:[%s1921 + $0x44] sm:$0xf]
        %v1940 = vld [vmem:[%s1921 + $0x48] sm:$0xf]
        %v1941 = vld [vmem:[%s1921 + $0x4c] sm:$0xf]
        %v1942 = vld [vmem:[%s1921 + $0x50] sm:$0xf]
        %v1943 = vld [vmem:[%s1921 + $0x54] sm:$0xf]
        %v1944 = vld [vmem:[%s1921 + $0x58] sm:$0xf]
        %v1945 = vld [vmem:[%s1921 + $0x5c] sm:$0xf]
        %v1946 = vld [vmem:[%s1921 + $0x60] sm:$0xf]
        %v1947 = vld [vmem:[%s1921 + $0x64] sm:$0xf]
        %v1948 = vld [vmem:[%s1921 + $0x68] sm:$0xf]
        %v1949 = vld [vmem:[%s1921 + $0x6c] sm:$0xf]
        %v1950 = vld [vmem:[%s1921 + $0x70] sm:$0xf]
        %v1951 = vld [vmem:[%s1921 + $0x74] sm:$0xf]
        %v1952 = vld [vmem:[%s1921 + $0x78] sm:$0xf]
        %v1953 = vld [vmem:[%s1921 + $0x7c] sm:$0xf]
        %v1970 = vunpack.c.l.b16 %v1905
        %v1971 = vunpack.c.h.b16 %v1905
        %v1972 = vunpack.c.l.b16 %v1906
        %v1973 = vunpack.c.h.b16 %v1906
        %v1974 = vunpack.c.l.b16 %v1907
        %v1975 = vunpack.c.h.b16 %v1907
        %v1976 = vunpack.c.l.b16 %v1908
        %v1977 = vunpack.c.h.b16 %v1908
        %v1978 = vunpack.c.l.b16 %v1909
        %v1979 = vunpack.c.h.b16 %v1909
        %v1980 = vunpack.c.l.b16 %v1910
        %v1981 = vunpack.c.h.b16 %v1910
        %v1982 = vunpack.c.l.b16 %v1911
        %v1983 = vunpack.c.h.b16 %v1911
        %v1984 = vunpack.c.l.b16 %v1912
        %v1985 = vunpack.c.h.b16 %v1912
        %v1986 = vunpack.c.l.b16 %v1913
        %v1987 = vunpack.c.h.b16 %v1913
        %v1988 = vunpack.c.l.b16 %v1914
        %v1989 = vunpack.c.h.b16 %v1914
        %v1990 = vunpack.c.l.b16 %v1915
        %v1991 = vunpack.c.h.b16 %v1915
        %v1992 = vunpack.c.l.b16 %v1916
        %v1993 = vunpack.c.h.b16 %v1916
        %v1994 = vunpack.c.l.b16 %v1917
        %v1995 = vunpack.c.h.b16 %v1917
        %v1996 = vunpack.c.l.b16 %v1918
        %v1997 = vunpack.c.h.b16 %v1918
        %v1998 = vunpack.c.l.b16 %v1919
        %v1999 = vunpack.c.h.b16 %v1919
        %v2000 = vunpack.c.l.b16 %v1920
        %v2001 = vunpack.c.h.b16 %v1920
        %v2002 = vpack.c.b16 %v1972, %v1970
        %v2003 = vpack.c.b16 %v1973, %v1971
        %v2004 = vpack.c.b16 %v1976, %v1974
        %v2005 = vpack.c.b16 %v1977, %v1975
        %v2006 = vpack.c.b16 %v1980, %v1978
        %v2007 = vpack.c.b16 %v1981, %v1979
        %v2008 = vpack.c.b16 %v1984, %v1982
        %v2009 = vpack.c.b16 %v1985, %v1983
        %v2010 = vpack.c.b16 %v1988, %v1986
        %v2011 = vpack.c.b16 %v1989, %v1987
        %v2012 = vpack.c.b16 %v1992, %v1990
        %v2013 = vpack.c.b16 %v1993, %v1991
        %v2014 = vpack.c.b16 %v1996, %v1994
        %v2015 = vpack.c.b16 %v1997, %v1995
        %v2016 = vpack.c.b16 %v2000, %v1998
        %v2017 = vpack.c.b16 %v2001, %v1999
        %v2066 = vunpack.c.l.b16 %v1922
        %v2067 = vunpack.c.l.b16 %v1923
        %v2068 = vunpack.c.l.b16 %v1924
        %v2069 = vunpack.c.l.b16 %v1925
        %v2070 = vunpack.c.l.b16 %v1926
        %v2071 = vunpack.c.l.b16 %v1927
        %v2072 = vunpack.c.l.b16 %v1928
        %v2073 = vunpack.c.l.b16 %v1929
        %v2074 = vunpack.c.l.b16 %v1930
        %v2075 = vunpack.c.l.b16 %v1931
        %v2076 = vunpack.c.l.b16 %v1932
        %v2077 = vunpack.c.l.b16 %v1933
        %v2078 = vunpack.c.l.b16 %v1934
        %v2079 = vunpack.c.l.b16 %v1935
        %v2080 = vunpack.c.l.b16 %v1936
        %v2081 = vunpack.c.l.b16 %v1937
        %v2082 = vunpack.c.l.b16 %v1938
        %v2083 = vunpack.c.l.b16 %v1939
        %v2084 = vunpack.c.l.b16 %v1940
        %v2085 = vunpack.c.l.b16 %v1941
        %v2086 = vunpack.c.l.b16 %v1942
        %v2087 = vunpack.c.l.b16 %v1943
        %v2088 = vunpack.c.l.b16 %v1944
        %v2089 = vunpack.c.l.b16 %v1945
        %v2090 = vunpack.c.l.b16 %v1946
        %v2091 = vunpack.c.l.b16 %v1947
        %v2092 = vunpack.c.l.b16 %v1948
        %v2093 = vunpack.c.l.b16 %v1949
        %v2094 = vunpack.c.l.b16 %v1950
        %v2095 = vunpack.c.l.b16 %v1951
        %v2096 = vunpack.c.l.b16 %v1952
        %v2097 = vunpack.c.l.b16 %v1953
        %v2098 = vpack.c.b16 %v2067, %v2066
        %v2099 = vpack.c.b16 %v2069, %v2068
        %v2100 = vpack.c.b16 %v2071, %v2070
        %v2101 = vpack.c.b16 %v2073, %v2072
        %v2102 = vpack.c.b16 %v2075, %v2074
        %v2103 = vpack.c.b16 %v2077, %v2076
        %v2104 = vpack.c.b16 %v2079, %v2078
        %v2105 = vpack.c.b16 %v2081, %v2080
        %v2106 = vpack.c.b16 %v2083, %v2082
        %v2107 = vpack.c.b16 %v2085, %v2084
        %v2108 = vpack.c.b16 %v2087, %v2086
        %v2109 = vpack.c.b16 %v2089, %v2088
        %v2110 = vpack.c.b16 %v2091, %v2090
        %v2111 = vpack.c.b16 %v2093, %v2092
        %v2112 = vpack.c.b16 %v2095, %v2094
        %v2113 = vpack.c.b16 %v2097, %v2096
        %2130 = vmatprep.subr.bf16.mxu0 0
        %2131 = vmatpush1.bf16.msra.mxu0 %v2105
        %2132 = vmatprep.subr.bf16.mxu0 0
        %2133 = vmatpush1.bf16.msra.mxu0 %v2104
        %2134 = vmatprep.subr.bf16.mxu0 0
        %2135 = vmatpush1.bf16.msra.mxu0 %v2103
        %2136 = vmatprep.subr.bf16.mxu0 0
        %2137 = vmatpush1.bf16.msra.mxu0 %v2102
        %2138 = vmatprep.subr.bf16.mxu0 0
        %2139 = vmatpush1.bf16.msra.mxu0 %v2101
        %2140 = vmatprep.subr.bf16.mxu0 0
        %2141 = vmatpush1.bf16.msra.mxu0 %v2100
        %2142 = vmatprep.subr.bf16.mxu0 0
        %2143 = vmatpush1.bf16.msra.mxu0 %v2099
        %2144 = vmatprep.subr.bf16.mxu0 0
        %2145 = vmatpush1.bf16.msra.mxu0 %v2098
        %2146 = vmatprep.subr.bf16.mxu0 0
        %2147 = vmatpush2.bf16.msra.mxu0 %v2113
        %2148 = vmatprep.subr.bf16.mxu0 0
        %2149 = vmatpush2.bf16.msra.mxu0 %v2112
        %2150 = vmatprep.subr.bf16.mxu0 0
        %2151 = vmatpush2.bf16.msra.mxu0 %v2111
        %2152 = vmatprep.subr.bf16.mxu0 0
        %2153 = vmatpush2.bf16.msra.mxu0 %v2110
        %2154 = vmatprep.subr.bf16.mxu0 0
        %2155 = vmatpush2.bf16.msra.mxu0 %v2109
        %2156 = vmatprep.subr.bf16.mxu0 0
        %2157 = vmatpush2.bf16.msra.mxu0 %v2108
        %2158 = vmatprep.subr.bf16.mxu0 0
        %2159 = vmatpush2.bf16.msra.mxu0 %v2107
        %2160 = vmatprep.subr.bf16.mxu0 0
        %2161 = vmatpush2.bf16.msra.mxu0 %v2106
        %2162 = vmatprep.mubr.bf16.mxu0 %v2003
        %2163 = vmatmul.mubr.bf16.gmra.mxu0 %v2002
        %v2164 = vpop.f32.mrf.mxu0
        %v2165 = vadd.f32 0.0, %v2164
        %v2166 = vpop.f32.mrf.mxu0
        %v2167 = vpop.f32.mrf.mxu0
        %v2168 = vadd.f32 0.0, %v2167
        %v2169 = vpop.f32.mrf.mxu0
        %2170 = vmatprep.mubr.bf16.mxu0 %v2005
        %2171 = vmatmul.mubr.bf16.gmra.mxu0 %v2004
        %v2172 = vpop.f32.mrf.mxu0
        %v2173 = vadd.f32 0.0, %v2172
        %v2174 = vpop.f32.mrf.mxu0
        %v2175 = vpop.f32.mrf.mxu0
        %v2176 = vadd.f32 0.0, %v2175
        %v2177 = vpop.f32.mrf.mxu0
        %2178 = vmatprep.mubr.bf16.mxu0 %v2007
        %2179 = vmatmul.mubr.bf16.gmra.mxu0 %v2006
        %v2180 = vpop.f32.mrf.mxu0
        %v2181 = vadd.f32 0.0, %v2180
        %v2182 = vpop.f32.mrf.mxu0
        %v2183 = vpop.f32.mrf.mxu0
        %v2184 = vadd.f32 0.0, %v2183
        %v2185 = vpop.f32.mrf.mxu0
        %2186 = vmatprep.mubr.bf16.mxu0 %v2009
        %2187 = vmatmul.mubr.bf16.gmra.mxu0 %v2008
        %v2188 = vpop.f32.mrf.mxu0
        %v2189 = vadd.f32 0.0, %v2188
        %v2190 = vpop.f32.mrf.mxu0
        %v2191 = vpop.f32.mrf.mxu0
        %v2192 = vadd.f32 0.0, %v2191
        %v2193 = vpop.f32.mrf.mxu0
        %2194 = vmatprep.mubr.bf16.mxu0 %v2011
        %2195 = vmatmul.mubr.bf16.gmra.mxu0 %v2010
        %v2196 = vpop.f32.mrf.mxu0
        %v2197 = vadd.f32 0.0, %v2196
        %v2198 = vpop.f32.mrf.mxu0
        %v2199 = vpop.f32.mrf.mxu0
        %v2200 = vadd.f32 0.0, %v2199
        %v2201 = vpop.f32.mrf.mxu0
        %2202 = vmatprep.mubr.bf16.mxu0 %v2013
        %2203 = vmatmul.mubr.bf16.gmra.mxu0 %v2012
        %v2204 = vpop.f32.mrf.mxu0
        %v2205 = vadd.f32 0.0, %v2204
        %v2206 = vpop.f32.mrf.mxu0
        %v2207 = vpop.f32.mrf.mxu0
        %v2208 = vadd.f32 0.0, %v2207
        %v2209 = vpop.f32.mrf.mxu0
        %2210 = vmatprep.mubr.bf16.mxu0 %v2015
        %2211 = vmatmul.mubr.bf16.gmra.mxu0 %v2014
        %v2212 = vpop.f32.mrf.mxu0
        %v2213 = vadd.f32 0.0, %v2212
        %v2214 = vpop.f32.mrf.mxu0
        %v2215 = vpop.f32.mrf.mxu0
        %v2216 = vadd.f32 0.0, %v2215
        %v2217 = vpop.f32.mrf.mxu0
        %2218 = vmatprep.mubr.bf16.mxu0 %v2017
        %2219 = vmatmul.mubr.bf16.gmra.mxu0 %v2016
        %v2220 = vpop.f32.mrf.mxu0
        %v2221 = vadd.f32 0.0, %v2220
        %v2222 = vpop.f32.mrf.mxu0
        %v2223 = vpop.f32.mrf.mxu0
        %v2224 = vadd.f32 0.0, %v2223
        %v2225 = vpop.f32.mrf.mxu0
        %2226 = vdwg.mxu0
        %v2227 = vadd.f32 %v1889, %v2165
        %v2228 = vadd.f32 %v1890, %v2168
        %v2229 = vadd.f32 %v1891, %v2173
        %v2230 = vadd.f32 %v1892, %v2176
        %v2231 = vadd.f32 %v1893, %v2181
        %v2232 = vadd.f32 %v1894, %v2184
        %v2233 = vadd.f32 %v1895, %v2189
        %v2234 = vadd.f32 %v1896, %v2192
        %v2235 = vadd.f32 %v1897, %v2197
        %v2236 = vadd.f32 %v1898, %v2200
        %v2237 = vadd.f32 %v1899, %v2205
        %v2238 = vadd.f32 %v1900, %v2208
        %v2239 = vadd.f32 %v1901, %v2213
        %v2240 = vadd.f32 %v1902, %v2216
        %v2241 = vadd.f32 %v1903, %v2221
        %v2242 = vadd.f32 %v1904, %v2224
        %2243 = vst [vmem:[%s1888] sm:$0xff] %v2227
        %2244 = vst [vmem:[%s1888 + $0x8] sm:$0xff] %v2228
        %2245 = vst [vmem:[%s1888 + $0x10] sm:$0xff] %v2229
        %2246 = vst [vmem:[%s1888 + $0x18] sm:$0xff] %v2230
        %2247 = vst [vmem:[%s1888 + $0x20] sm:$0xff] %v2231
        %2248 = vst [vmem:[%s1888 + $0x28] sm:$0xff] %v2232
        %2249 = vst [vmem:[%s1888 + $0x30] sm:$0xff] %v2233
        %2250 = vst [vmem:[%s1888 + $0x38] sm:$0xff] %v2234
        %2251 = vst [vmem:[%s1888 + $0x40] sm:$0xff] %v2235
        %2252 = vst [vmem:[%s1888 + $0x48] sm:$0xff] %v2236
        %2253 = vst [vmem:[%s1888 + $0x50] sm:$0xff] %v2237
        %2254 = vst [vmem:[%s1888 + $0x58] sm:$0xff] %v2238
        %2255 = vst [vmem:[%s1888 + $0x60] sm:$0xff] %v2239
        %2256 = vst [vmem:[%s1888 + $0x68] sm:$0xff] %v2240
        %2257 = vst [vmem:[%s1888 + $0x70] sm:$0xff] %v2241
        %2258 = vst [vmem:[%s1888 + $0x78] sm:$0xff] %v2242
        %s2259 = scalar_lea.vmem [#allocation2], 640
        %v2260 = vld [vmem:[%s2259] sm:$0xff]
        %v2261 = vld [vmem:[%s2259 + $0x8] sm:$0xff]
        %v2262 = vld [vmem:[%s2259 + $0x10] sm:$0xff]
        %v2263 = vld [vmem:[%s2259 + $0x18] sm:$0xff]
        %v2264 = vld [vmem:[%s2259 + $0x20] sm:$0xff]
        %v2265 = vld [vmem:[%s2259 + $0x28] sm:$0xff]
        %v2266 = vld [vmem:[%s2259 + $0x30] sm:$0xff]
        %v2267 = vld [vmem:[%s2259 + $0x38] sm:$0xff]
        %v2268 = vld [vmem:[%s2259 + $0x40] sm:$0xff]
        %v2269 = vld [vmem:[%s2259 + $0x48] sm:$0xff]
        %v2270 = vld [vmem:[%s2259 + $0x50] sm:$0xff]
        %v2271 = vld [vmem:[%s2259 + $0x58] sm:$0xff]
        %v2272 = vld [vmem:[%s2259 + $0x60] sm:$0xff]
        %v2273 = vld [vmem:[%s2259 + $0x68] sm:$0xff]
        %v2274 = vld [vmem:[%s2259 + $0x70] sm:$0xff]
        %v2275 = vld [vmem:[%s2259 + $0x78] sm:$0xff]
        %v2276 = vld [vmem:[%s214] sm:$0xff]
        %v2277 = vld [vmem:[%s214 + $0x8] sm:$0xff]
        %v2278 = vld [vmem:[%s214 + $0x10] sm:$0xff]
        %v2279 = vld [vmem:[%s214 + $0x18] sm:$0xff]
        %v2280 = vld [vmem:[%s214 + $0x20] sm:$0xff]
        %v2281 = vld [vmem:[%s214 + $0x28] sm:$0xff]
        %v2282 = vld [vmem:[%s214 + $0x30] sm:$0xff]
        %v2283 = vld [vmem:[%s214 + $0x38] sm:$0xff]
        %v2284 = vld [vmem:[%s214 + $0x40] sm:$0xff]
        %v2285 = vld [vmem:[%s214 + $0x48] sm:$0xff]
        %v2286 = vld [vmem:[%s214 + $0x50] sm:$0xff]
        %v2287 = vld [vmem:[%s214 + $0x58] sm:$0xff]
        %v2288 = vld [vmem:[%s214 + $0x60] sm:$0xff]
        %v2289 = vld [vmem:[%s214 + $0x68] sm:$0xff]
        %v2290 = vld [vmem:[%s214 + $0x70] sm:$0xff]
        %v2291 = vld [vmem:[%s214 + $0x78] sm:$0xff]
        %s2292 = scalar_lea.vmem %s223, 640 [#allocation8]
        %v2293 = vld [vmem:[%s2292] sm:$0xf]
        %v2294 = vld [vmem:[%s2292 + $0x4] sm:$0xf]
        %v2295 = vld [vmem:[%s2292 + $0x8] sm:$0xf]
        %v2296 = vld [vmem:[%s2292 + $0xc] sm:$0xf]
        %v2297 = vld [vmem:[%s2292 + $0x10] sm:$0xf]
        %v2298 = vld [vmem:[%s2292 + $0x14] sm:$0xf]
        %v2299 = vld [vmem:[%s2292 + $0x18] sm:$0xf]
        %v2300 = vld [vmem:[%s2292 + $0x1c] sm:$0xf]
        %v2301 = vld [vmem:[%s2292 + $0x20] sm:$0xf]
        %v2302 = vld [vmem:[%s2292 + $0x24] sm:$0xf]
        %v2303 = vld [vmem:[%s2292 + $0x28] sm:$0xf]
        %v2304 = vld [vmem:[%s2292 + $0x2c] sm:$0xf]
        %v2305 = vld [vmem:[%s2292 + $0x30] sm:$0xf]
        %v2306 = vld [vmem:[%s2292 + $0x34] sm:$0xf]
        %v2307 = vld [vmem:[%s2292 + $0x38] sm:$0xf]
        %v2308 = vld [vmem:[%s2292 + $0x3c] sm:$0xf]
        %v2309 = vld [vmem:[%s2292 + $0x40] sm:$0xf]
        %v2310 = vld [vmem:[%s2292 + $0x44] sm:$0xf]
        %v2311 = vld [vmem:[%s2292 + $0x48] sm:$0xf]
        %v2312 = vld [vmem:[%s2292 + $0x4c] sm:$0xf]
        %v2313 = vld [vmem:[%s2292 + $0x50] sm:$0xf]
        %v2314 = vld [vmem:[%s2292 + $0x54] sm:$0xf]
        %v2315 = vld [vmem:[%s2292 + $0x58] sm:$0xf]
        %v2316 = vld [vmem:[%s2292 + $0x5c] sm:$0xf]
        %v2317 = vld [vmem:[%s2292 + $0x60] sm:$0xf]
        %v2318 = vld [vmem:[%s2292 + $0x64] sm:$0xf]
        %v2319 = vld [vmem:[%s2292 + $0x68] sm:$0xf]
        %v2320 = vld [vmem:[%s2292 + $0x6c] sm:$0xf]
        %v2321 = vld [vmem:[%s2292 + $0x70] sm:$0xf]
        %v2322 = vld [vmem:[%s2292 + $0x74] sm:$0xf]
        %v2323 = vld [vmem:[%s2292 + $0x78] sm:$0xf]
        %v2324 = vld [vmem:[%s2292 + $0x7c] sm:$0xf]
        %v2341 = vunpack.c.l.b16 %v2276
        %v2342 = vunpack.c.h.b16 %v2276
        %v2343 = vunpack.c.l.b16 %v2277
        %v2344 = vunpack.c.h.b16 %v2277
        %v2345 = vunpack.c.l.b16 %v2278
        %v2346 = vunpack.c.h.b16 %v2278
        %v2347 = vunpack.c.l.b16 %v2279
        %v2348 = vunpack.c.h.b16 %v2279
        %v2349 = vunpack.c.l.b16 %v2280
        %v2350 = vunpack.c.h.b16 %v2280
        %v2351 = vunpack.c.l.b16 %v2281
        %v2352 = vunpack.c.h.b16 %v2281
        %v2353 = vunpack.c.l.b16 %v2282
        %v2354 = vunpack.c.h.b16 %v2282
        %v2355 = vunpack.c.l.b16 %v2283
        %v2356 = vunpack.c.h.b16 %v2283
        %v2357 = vunpack.c.l.b16 %v2284
        %v2358 = vunpack.c.h.b16 %v2284
        %v2359 = vunpack.c.l.b16 %v2285
        %v2360 = vunpack.c.h.b16 %v2285
        %v2361 = vunpack.c.l.b16 %v2286
        %v2362 = vunpack.c.h.b16 %v2286
        %v2363 = vunpack.c.l.b16 %v2287
        %v2364 = vunpack.c.h.b16 %v2287
        %v2365 = vunpack.c.l.b16 %v2288
        %v2366 = vunpack.c.h.b16 %v2288
        %v2367 = vunpack.c.l.b16 %v2289
        %v2368 = vunpack.c.h.b16 %v2289
        %v2369 = vunpack.c.l.b16 %v2290
        %v2370 = vunpack.c.h.b16 %v2290
        %v2371 = vunpack.c.l.b16 %v2291
        %v2372 = vunpack.c.h.b16 %v2291
        %v2373 = vpack.c.b16 %v2343, %v2341
        %v2374 = vpack.c.b16 %v2344, %v2342
        %v2375 = vpack.c.b16 %v2347, %v2345
        %v2376 = vpack.c.b16 %v2348, %v2346
        %v2377 = vpack.c.b16 %v2351, %v2349
        %v2378 = vpack.c.b16 %v2352, %v2350
        %v2379 = vpack.c.b16 %v2355, %v2353
        %v2380 = vpack.c.b16 %v2356, %v2354
        %v2381 = vpack.c.b16 %v2359, %v2357
        %v2382 = vpack.c.b16 %v2360, %v2358
        %v2383 = vpack.c.b16 %v2363, %v2361
        %v2384 = vpack.c.b16 %v2364, %v2362
        %v2385 = vpack.c.b16 %v2367, %v2365
        %v2386 = vpack.c.b16 %v2368, %v2366
        %v2387 = vpack.c.b16 %v2371, %v2369
        %v2388 = vpack.c.b16 %v2372, %v2370
        %v2437 = vunpack.c.l.b16 %v2293
        %v2438 = vunpack.c.l.b16 %v2294
        %v2439 = vunpack.c.l.b16 %v2295
        %v2440 = vunpack.c.l.b16 %v2296
        %v2441 = vunpack.c.l.b16 %v2297
        %v2442 = vunpack.c.l.b16 %v2298
        %v2443 = vunpack.c.l.b16 %v2299
        %v2444 = vunpack.c.l.b16 %v2300
        %v2445 = vunpack.c.l.b16 %v2301
        %v2446 = vunpack.c.l.b16 %v2302
        %v2447 = vunpack.c.l.b16 %v2303
        %v2448 = vunpack.c.l.b16 %v2304
        %v2449 = vunpack.c.l.b16 %v2305
        %v2450 = vunpack.c.l.b16 %v2306
        %v2451 = vunpack.c.l.b16 %v2307
        %v2452 = vunpack.c.l.b16 %v2308
        %v2453 = vunpack.c.l.b16 %v2309
        %v2454 = vunpack.c.l.b16 %v2310
        %v2455 = vunpack.c.l.b16 %v2311
        %v2456 = vunpack.c.l.b16 %v2312
        %v2457 = vunpack.c.l.b16 %v2313
        %v2458 = vunpack.c.l.b16 %v2314
        %v2459 = vunpack.c.l.b16 %v2315
        %v2460 = vunpack.c.l.b16 %v2316
        %v2461 = vunpack.c.l.b16 %v2317
        %v2462 = vunpack.c.l.b16 %v2318
        %v2463 = vunpack.c.l.b16 %v2319
        %v2464 = vunpack.c.l.b16 %v2320
        %v2465 = vunpack.c.l.b16 %v2321
        %v2466 = vunpack.c.l.b16 %v2322
        %v2467 = vunpack.c.l.b16 %v2323
        %v2468 = vunpack.c.l.b16 %v2324
        %v2469 = vpack.c.b16 %v2438, %v2437
        %v2470 = vpack.c.b16 %v2440, %v2439
        %v2471 = vpack.c.b16 %v2442, %v2441
        %v2472 = vpack.c.b16 %v2444, %v2443
        %v2473 = vpack.c.b16 %v2446, %v2445
        %v2474 = vpack.c.b16 %v2448, %v2447
        %v2475 = vpack.c.b16 %v2450, %v2449
        %v2476 = vpack.c.b16 %v2452, %v2451
        %v2477 = vpack.c.b16 %v2454, %v2453
        %v2478 = vpack.c.b16 %v2456, %v2455
        %v2479 = vpack.c.b16 %v2458, %v2457
        %v2480 = vpack.c.b16 %v2460, %v2459
        %v2481 = vpack.c.b16 %v2462, %v2461
        %v2482 = vpack.c.b16 %v2464, %v2463
        %v2483 = vpack.c.b16 %v2466, %v2465
        %v2484 = vpack.c.b16 %v2468, %v2467
        %2501 = vmatprep.subr.bf16.mxu0 0
        %2502 = vmatpush1.bf16.msra.mxu0 %v2476
        %2503 = vmatprep.subr.bf16.mxu0 0
        %2504 = vmatpush1.bf16.msra.mxu0 %v2475
        %2505 = vmatprep.subr.bf16.mxu0 0
        %2506 = vmatpush1.bf16.msra.mxu0 %v2474
        %2507 = vmatprep.subr.bf16.mxu0 0
        %2508 = vmatpush1.bf16.msra.mxu0 %v2473
        %2509 = vmatprep.subr.bf16.mxu0 0
        %2510 = vmatpush1.bf16.msra.mxu0 %v2472
        %2511 = vmatprep.subr.bf16.mxu0 0
        %2512 = vmatpush1.bf16.msra.mxu0 %v2471
        %2513 = vmatprep.subr.bf16.mxu0 0
        %2514 = vmatpush1.bf16.msra.mxu0 %v2470
        %2515 = vmatprep.subr.bf16.mxu0 0
        %2516 = vmatpush1.bf16.msra.mxu0 %v2469
        %2517 = vmatprep.subr.bf16.mxu0 0
        %2518 = vmatpush2.bf16.msra.mxu0 %v2484
        %2519 = vmatprep.subr.bf16.mxu0 0
        %2520 = vmatpush2.bf16.msra.mxu0 %v2483
        %2521 = vmatprep.subr.bf16.mxu0 0
        %2522 = vmatpush2.bf16.msra.mxu0 %v2482
        %2523 = vmatprep.subr.bf16.mxu0 0
        %2524 = vmatpush2.bf16.msra.mxu0 %v2481
        %2525 = vmatprep.subr.bf16.mxu0 0
        %2526 = vmatpush2.bf16.msra.mxu0 %v2480
        %2527 = vmatprep.subr.bf16.mxu0 0
        %2528 = vmatpush2.bf16.msra.mxu0 %v2479
        %2529 = vmatprep.subr.bf16.mxu0 0
        %2530 = vmatpush2.bf16.msra.mxu0 %v2478
        %2531 = vmatprep.subr.bf16.mxu0 0
        %2532 = vmatpush2.bf16.msra.mxu0 %v2477
        %2533 = vmatprep.mubr.bf16.mxu0 %v2374
        %2534 = vmatmul.mubr.bf16.gmra.mxu0 %v2373
        %v2535 = vpop.f32.mrf.mxu0
        %v2536 = vadd.f32 0.0, %v2535
        %v2537 = vpop.f32.mrf.mxu0
        %v2538 = vpop.f32.mrf.mxu0
        %v2539 = vadd.f32 0.0, %v2538
        %v2540 = vpop.f32.mrf.mxu0
        %2541 = vmatprep.mubr.bf16.mxu0 %v2376
        %2542 = vmatmul.mubr.bf16.gmra.mxu0 %v2375
        %v2543 = vpop.f32.mrf.mxu0
        %v2544 = vadd.f32 0.0, %v2543
        %v2545 = vpop.f32.mrf.mxu0
        %v2546 = vpop.f32.mrf.mxu0
        %v2547 = vadd.f32 0.0, %v2546
        %v2548 = vpop.f32.mrf.mxu0
        %2549 = vmatprep.mubr.bf16.mxu0 %v2378
        %2550 = vmatmul.mubr.bf16.gmra.mxu0 %v2377
        %v2551 = vpop.f32.mrf.mxu0
        %v2552 = vadd.f32 0.0, %v2551
        %v2553 = vpop.f32.mrf.mxu0
        %v2554 = vpop.f32.mrf.mxu0
        %v2555 = vadd.f32 0.0, %v2554
        %v2556 = vpop.f32.mrf.mxu0
        %2557 = vmatprep.mubr.bf16.mxu0 %v2380
        %2558 = vmatmul.mubr.bf16.gmra.mxu0 %v2379
        %v2559 = vpop.f32.mrf.mxu0
        %v2560 = vadd.f32 0.0, %v2559
        %v2561 = vpop.f32.mrf.mxu0
        %v2562 = vpop.f32.mrf.mxu0
        %v2563 = vadd.f32 0.0, %v2562
        %v2564 = vpop.f32.mrf.mxu0
        %2565 = vmatprep.mubr.bf16.mxu0 %v2382
        %2566 = vmatmul.mubr.bf16.gmra.mxu0 %v2381
        %v2567 = vpop.f32.mrf.mxu0
        %v2568 = vadd.f32 0.0, %v2567
        %v2569 = vpop.f32.mrf.mxu0
        %v2570 = vpop.f32.mrf.mxu0
        %v2571 = vadd.f32 0.0, %v2570
        %v2572 = vpop.f32.mrf.mxu0
        %2573 = vmatprep.mubr.bf16.mxu0 %v2384
        %2574 = vmatmul.mubr.bf16.gmra.mxu0 %v2383
        %v2575 = vpop.f32.mrf.mxu0
        %v2576 = vadd.f32 0.0, %v2575
        %v2577 = vpop.f32.mrf.mxu0
        %v2578 = vpop.f32.mrf.mxu0
        %v2579 = vadd.f32 0.0, %v2578
        %v2580 = vpop.f32.mrf.mxu0
        %2581 = vmatprep.mubr.bf16.mxu0 %v2386
        %2582 = vmatmul.mubr.bf16.gmra.mxu0 %v2385
        %v2583 = vpop.f32.mrf.mxu0
        %v2584 = vadd.f32 0.0, %v2583
        %v2585 = vpop.f32.mrf.mxu0
        %v2586 = vpop.f32.mrf.mxu0
        %v2587 = vadd.f32 0.0, %v2586
        %v2588 = vpop.f32.mrf.mxu0
        %2589 = vmatprep.mubr.bf16.mxu0 %v2388
        %2590 = vmatmul.mubr.bf16.gmra.mxu0 %v2387
        %v2591 = vpop.f32.mrf.mxu0
        %v2592 = vadd.f32 0.0, %v2591
        %v2593 = vpop.f32.mrf.mxu0
        %v2594 = vpop.f32.mrf.mxu0
        %v2595 = vadd.f32 0.0, %v2594
        %v2596 = vpop.f32.mrf.mxu0
        %2597 = vdwg.mxu0
        %v2598 = vadd.f32 %v2260, %v2536
        %v2599 = vadd.f32 %v2261, %v2539
        %v2600 = vadd.f32 %v2262, %v2544
        %v2601 = vadd.f32 %v2263, %v2547
        %v2602 = vadd.f32 %v2264, %v2552
        %v2603 = vadd.f32 %v2265, %v2555
        %v2604 = vadd.f32 %v2266, %v2560
        %v2605 = vadd.f32 %v2267, %v2563
        %v2606 = vadd.f32 %v2268, %v2568
        %v2607 = vadd.f32 %v2269, %v2571
        %v2608 = vadd.f32 %v2270, %v2576
        %v2609 = vadd.f32 %v2271, %v2579
        %v2610 = vadd.f32 %v2272, %v2584
        %v2611 = vadd.f32 %v2273, %v2587
        %v2612 = vadd.f32 %v2274, %v2592
        %v2613 = vadd.f32 %v2275, %v2595
        %2614 = vst [vmem:[%s2259] sm:$0xff] %v2598
        %2615 = vst [vmem:[%s2259 + $0x8] sm:$0xff] %v2599
        %2616 = vst [vmem:[%s2259 + $0x10] sm:$0xff] %v2600
        %2617 = vst [vmem:[%s2259 + $0x18] sm:$0xff] %v2601
        %2618 = vst [vmem:[%s2259 + $0x20] sm:$0xff] %v2602
        %2619 = vst [vmem:[%s2259 + $0x28] sm:$0xff] %v2603
        %2620 = vst [vmem:[%s2259 + $0x30] sm:$0xff] %v2604
        %2621 = vst [vmem:[%s2259 + $0x38] sm:$0xff] %v2605
        %2622 = vst [vmem:[%s2259 + $0x40] sm:$0xff] %v2606
        %2623 = vst [vmem:[%s2259 + $0x48] sm:$0xff] %v2607
        %2624 = vst [vmem:[%s2259 + $0x50] sm:$0xff] %v2608
        %2625 = vst [vmem:[%s2259 + $0x58] sm:$0xff] %v2609
        %2626 = vst [vmem:[%s2259 + $0x60] sm:$0xff] %v2610
        %2627 = vst [vmem:[%s2259 + $0x68] sm:$0xff] %v2611
        %2628 = vst [vmem:[%s2259 + $0x70] sm:$0xff] %v2612
        %2629 = vst [vmem:[%s2259 + $0x78] sm:$0xff] %v2613
        %s2630 = scalar_lea.vmem [#allocation2], 768
        %v2631 = vld [vmem:[%s2630] sm:$0xff]
        %v2632 = vld [vmem:[%s2630 + $0x8] sm:$0xff]
        %v2633 = vld [vmem:[%s2630 + $0x10] sm:$0xff]
        %v2634 = vld [vmem:[%s2630 + $0x18] sm:$0xff]
        %v2635 = vld [vmem:[%s2630 + $0x20] sm:$0xff]
        %v2636 = vld [vmem:[%s2630 + $0x28] sm:$0xff]
        %v2637 = vld [vmem:[%s2630 + $0x30] sm:$0xff]
        %v2638 = vld [vmem:[%s2630 + $0x38] sm:$0xff]
        %v2639 = vld [vmem:[%s2630 + $0x40] sm:$0xff]
        %v2640 = vld [vmem:[%s2630 + $0x48] sm:$0xff]
        %v2641 = vld [vmem:[%s2630 + $0x50] sm:$0xff]
        %v2642 = vld [vmem:[%s2630 + $0x58] sm:$0xff]
        %v2643 = vld [vmem:[%s2630 + $0x60] sm:$0xff]
        %v2644 = vld [vmem:[%s2630 + $0x68] sm:$0xff]
        %v2645 = vld [vmem:[%s2630 + $0x70] sm:$0xff]
        %v2646 = vld [vmem:[%s2630 + $0x78] sm:$0xff]
        %v2647 = vld [vmem:[%s214] sm:$0xff]
        %v2648 = vld [vmem:[%s214 + $0x8] sm:$0xff]
        %v2649 = vld [vmem:[%s214 + $0x10] sm:$0xff]
        %v2650 = vld [vmem:[%s214 + $0x18] sm:$0xff]
        %v2651 = vld [vmem:[%s214 + $0x20] sm:$0xff]
        %v2652 = vld [vmem:[%s214 + $0x28] sm:$0xff]
        %v2653 = vld [vmem:[%s214 + $0x30] sm:$0xff]
        %v2654 = vld [vmem:[%s214 + $0x38] sm:$0xff]
        %v2655 = vld [vmem:[%s214 + $0x40] sm:$0xff]
        %v2656 = vld [vmem:[%s214 + $0x48] sm:$0xff]
        %v2657 = vld [vmem:[%s214 + $0x50] sm:$0xff]
        %v2658 = vld [vmem:[%s214 + $0x58] sm:$0xff]
        %v2659 = vld [vmem:[%s214 + $0x60] sm:$0xff]
        %v2660 = vld [vmem:[%s214 + $0x68] sm:$0xff]
        %v2661 = vld [vmem:[%s214 + $0x70] sm:$0xff]
        %v2662 = vld [vmem:[%s214 + $0x78] sm:$0xff]
        %s2663 = scalar_lea.vmem %s223, 768 [#allocation8]
        %v2664 = vld [vmem:[%s2663] sm:$0xf]
        %v2665 = vld [vmem:[%s2663 + $0x4] sm:$0xf]
        %v2666 = vld [vmem:[%s2663 + $0x8] sm:$0xf]
        %v2667 = vld [vmem:[%s2663 + $0xc] sm:$0xf]
        %v2668 = vld [vmem:[%s2663 + $0x10] sm:$0xf]
        %v2669 = vld [vmem:[%s2663 + $0x14] sm:$0xf]
        %v2670 = vld [vmem:[%s2663 + $0x18] sm:$0xf]
        %v2671 = vld [vmem:[%s2663 + $0x1c] sm:$0xf]
        %v2672 = vld [vmem:[%s2663 + $0x20] sm:$0xf]
        %v2673 = vld [vmem:[%s2663 + $0x24] sm:$0xf]
        %v2674 = vld [vmem:[%s2663 + $0x28] sm:$0xf]
        %v2675 = vld [vmem:[%s2663 + $0x2c] sm:$0xf]
        %v2676 = vld [vmem:[%s2663 + $0x30] sm:$0xf]
        %v2677 = vld [vmem:[%s2663 + $0x34] sm:$0xf]
        %v2678 = vld [vmem:[%s2663 + $0x38] sm:$0xf]
        %v2679 = vld [vmem:[%s2663 + $0x3c] sm:$0xf]
        %v2680 = vld [vmem:[%s2663 + $0x40] sm:$0xf]
        %v2681 = vld [vmem:[%s2663 + $0x44] sm:$0xf]
        %v2682 = vld [vmem:[%s2663 + $0x48] sm:$0xf]
        %v2683 = vld [vmem:[%s2663 + $0x4c] sm:$0xf]
        %v2684 = vld [vmem:[%s2663 + $0x50] sm:$0xf]
        %v2685 = vld [vmem:[%s2663 + $0x54] sm:$0xf]
        %v2686 = vld [vmem:[%s2663 + $0x58] sm:$0xf]
        %v2687 = vld [vmem:[%s2663 + $0x5c] sm:$0xf]
        %v2688 = vld [vmem:[%s2663 + $0x60] sm:$0xf]
        %v2689 = vld [vmem:[%s2663 + $0x64] sm:$0xf]
        %v2690 = vld [vmem:[%s2663 + $0x68] sm:$0xf]
        %v2691 = vld [vmem:[%s2663 + $0x6c] sm:$0xf]
        %v2692 = vld [vmem:[%s2663 + $0x70] sm:$0xf]
        %v2693 = vld [vmem:[%s2663 + $0x74] sm:$0xf]
        %v2694 = vld [vmem:[%s2663 + $0x78] sm:$0xf]
        %v2695 = vld [vmem:[%s2663 + $0x7c] sm:$0xf]
        %v2712 = vunpack.c.l.b16 %v2647
        %v2713 = vunpack.c.h.b16 %v2647
        %v2714 = vunpack.c.l.b16 %v2648
        %v2715 = vunpack.c.h.b16 %v2648
        %v2716 = vunpack.c.l.b16 %v2649
        %v2717 = vunpack.c.h.b16 %v2649
        %v2718 = vunpack.c.l.b16 %v2650
        %v2719 = vunpack.c.h.b16 %v2650
        %v2720 = vunpack.c.l.b16 %v2651
        %v2721 = vunpack.c.h.b16 %v2651
        %v2722 = vunpack.c.l.b16 %v2652
        %v2723 = vunpack.c.h.b16 %v2652
        %v2724 = vunpack.c.l.b16 %v2653
        %v2725 = vunpack.c.h.b16 %v2653
        %v2726 = vunpack.c.l.b16 %v2654
        %v2727 = vunpack.c.h.b16 %v2654
        %v2728 = vunpack.c.l.b16 %v2655
        %v2729 = vunpack.c.h.b16 %v2655
        %v2730 = vunpack.c.l.b16 %v2656
        %v2731 = vunpack.c.h.b16 %v2656
        %v2732 = vunpack.c.l.b16 %v2657
        %v2733 = vunpack.c.h.b16 %v2657
        %v2734 = vunpack.c.l.b16 %v2658
        %v2735 = vunpack.c.h.b16 %v2658
        %v2736 = vunpack.c.l.b16 %v2659
        %v2737 = vunpack.c.h.b16 %v2659
        %v2738 = vunpack.c.l.b16 %v2660
        %v2739 = vunpack.c.h.b16 %v2660
        %v2740 = vunpack.c.l.b16 %v2661
        %v2741 = vunpack.c.h.b16 %v2661
        %v2742 = vunpack.c.l.b16 %v2662
        %v2743 = vunpack.c.h.b16 %v2662
        %v2744 = vpack.c.b16 %v2714, %v2712
        %v2745 = vpack.c.b16 %v2715, %v2713
        %v2746 = vpack.c.b16 %v2718, %v2716
        %v2747 = vpack.c.b16 %v2719, %v2717
        %v2748 = vpack.c.b16 %v2722, %v2720
        %v2749 = vpack.c.b16 %v2723, %v2721
        %v2750 = vpack.c.b16 %v2726, %v2724
        %v2751 = vpack.c.b16 %v2727, %v2725
        %v2752 = vpack.c.b16 %v2730, %v2728
        %v2753 = vpack.c.b16 %v2731, %v2729
        %v2754 = vpack.c.b16 %v2734, %v2732
        %v2755 = vpack.c.b16 %v2735, %v2733
        %v2756 = vpack.c.b16 %v2738, %v2736
        %v2757 = vpack.c.b16 %v2739, %v2737
        %v2758 = vpack.c.b16 %v2742, %v2740
        %v2759 = vpack.c.b16 %v2743, %v2741
        %v2808 = vunpack.c.l.b16 %v2664
        %v2809 = vunpack.c.l.b16 %v2665
        %v2810 = vunpack.c.l.b16 %v2666
        %v2811 = vunpack.c.l.b16 %v2667
        %v2812 = vunpack.c.l.b16 %v2668
        %v2813 = vunpack.c.l.b16 %v2669
        %v2814 = vunpack.c.l.b16 %v2670
        %v2815 = vunpack.c.l.b16 %v2671
        %v2816 = vunpack.c.l.b16 %v2672
        %v2817 = vunpack.c.l.b16 %v2673
        %v2818 = vunpack.c.l.b16 %v2674
        %v2819 = vunpack.c.l.b16 %v2675
        %v2820 = vunpack.c.l.b16 %v2676
        %v2821 = vunpack.c.l.b16 %v2677
        %v2822 = vunpack.c.l.b16 %v2678
        %v2823 = vunpack.c.l.b16 %v2679
        %v2824 = vunpack.c.l.b16 %v2680
        %v2825 = vunpack.c.l.b16 %v2681
        %v2826 = vunpack.c.l.b16 %v2682
        %v2827 = vunpack.c.l.b16 %v2683
        %v2828 = vunpack.c.l.b16 %v2684
        %v2829 = vunpack.c.l.b16 %v2685
        %v2830 = vunpack.c.l.b16 %v2686
        %v2831 = vunpack.c.l.b16 %v2687
        %v2832 = vunpack.c.l.b16 %v2688
        %v2833 = vunpack.c.l.b16 %v2689
        %v2834 = vunpack.c.l.b16 %v2690
        %v2835 = vunpack.c.l.b16 %v2691
        %v2836 = vunpack.c.l.b16 %v2692
        %v2837 = vunpack.c.l.b16 %v2693
        %v2838 = vunpack.c.l.b16 %v2694
        %v2839 = vunpack.c.l.b16 %v2695
        %v2840 = vpack.c.b16 %v2809, %v2808
        %v2841 = vpack.c.b16 %v2811, %v2810
        %v2842 = vpack.c.b16 %v2813, %v2812
        %v2843 = vpack.c.b16 %v2815, %v2814
        %v2844 = vpack.c.b16 %v2817, %v2816
        %v2845 = vpack.c.b16 %v2819, %v2818
        %v2846 = vpack.c.b16 %v2821, %v2820
        %v2847 = vpack.c.b16 %v2823, %v2822
        %v2848 = vpack.c.b16 %v2825, %v2824
        %v2849 = vpack.c.b16 %v2827, %v2826
        %v2850 = vpack.c.b16 %v2829, %v2828
        %v2851 = vpack.c.b16 %v2831, %v2830
        %v2852 = vpack.c.b16 %v2833, %v2832
        %v2853 = vpack.c.b16 %v2835, %v2834
        %v2854 = vpack.c.b16 %v2837, %v2836
        %v2855 = vpack.c.b16 %v2839, %v2838
        %2872 = vmatprep.subr.bf16.mxu0 0
        %2873 = vmatpush1.bf16.msra.mxu0 %v2847
        %2874 = vmatprep.subr.bf16.mxu0 0
        %2875 = vmatpush1.bf16.msra.mxu0 %v2846
        %2876 = vmatprep.subr.bf16.mxu0 0
        %2877 = vmatpush1.bf16.msra.mxu0 %v2845
        %2878 = vmatprep.subr.bf16.mxu0 0
        %2879 = vmatpush1.bf16.msra.mxu0 %v2844
        %2880 = vmatprep.subr.bf16.mxu0 0
        %2881 = vmatpush1.bf16.msra.mxu0 %v2843
        %2882 = vmatprep.subr.bf16.mxu0 0
        %2883 = vmatpush1.bf16.msra.mxu0 %v2842
        %2884 = vmatprep.subr.bf16.mxu0 0
        %2885 = vmatpush1.bf16.msra.mxu0 %v2841
        %2886 = vmatprep.subr.bf16.mxu0 0
        %2887 = vmatpush1.bf16.msra.mxu0 %v2840
        %2888 = vmatprep.subr.bf16.mxu0 0
        %2889 = vmatpush2.bf16.msra.mxu0 %v2855
        %2890 = vmatprep.subr.bf16.mxu0 0
        %2891 = vmatpush2.bf16.msra.mxu0 %v2854
        %2892 = vmatprep.subr.bf16.mxu0 0
        %2893 = vmatpush2.bf16.msra.mxu0 %v2853
        %2894 = vmatprep.subr.bf16.mxu0 0
        %2895 = vmatpush2.bf16.msra.mxu0 %v2852
        %2896 = vmatprep.subr.bf16.mxu0 0
        %2897 = vmatpush2.bf16.msra.mxu0 %v2851
        %2898 = vmatprep.subr.bf16.mxu0 0
        %2899 = vmatpush2.bf16.msra.mxu0 %v2850
        %2900 = vmatprep.subr.bf16.mxu0 0
        %2901 = vmatpush2.bf16.msra.mxu0 %v2849
        %2902 = vmatprep.subr.bf16.mxu0 0
        %2903 = vmatpush2.bf16.msra.mxu0 %v2848
        %2904 = vmatprep.mubr.bf16.mxu0 %v2745
        %2905 = vmatmul.mubr.bf16.gmra.mxu0 %v2744
        %v2906 = vpop.f32.mrf.mxu0
        %v2907 = vadd.f32 0.0, %v2906
        %v2908 = vpop.f32.mrf.mxu0
        %v2909 = vpop.f32.mrf.mxu0
        %v2910 = vadd.f32 0.0, %v2909
        %v2911 = vpop.f32.mrf.mxu0
        %2912 = vmatprep.mubr.bf16.mxu0 %v2747
        %2913 = vmatmul.mubr.bf16.gmra.mxu0 %v2746
        %v2914 = vpop.f32.mrf.mxu0
        %v2915 = vadd.f32 0.0, %v2914
        %v2916 = vpop.f32.mrf.mxu0
        %v2917 = vpop.f32.mrf.mxu0
        %v2918 = vadd.f32 0.0, %v2917
        %v2919 = vpop.f32.mrf.mxu0
        %2920 = vmatprep.mubr.bf16.mxu0 %v2749
        %2921 = vmatmul.mubr.bf16.gmra.mxu0 %v2748
        %v2922 = vpop.f32.mrf.mxu0
        %v2923 = vadd.f32 0.0, %v2922
        %v2924 = vpop.f32.mrf.mxu0
        %v2925 = vpop.f32.mrf.mxu0
        %v2926 = vadd.f32 0.0, %v2925
        %v2927 = vpop.f32.mrf.mxu0
        %2928 = vmatprep.mubr.bf16.mxu0 %v2751
        %2929 = vmatmul.mubr.bf16.gmra.mxu0 %v2750
        %v2930 = vpop.f32.mrf.mxu0
        %v2931 = vadd.f32 0.0, %v2930
        %v2932 = vpop.f32.mrf.mxu0
        %v2933 = vpop.f32.mrf.mxu0
        %v2934 = vadd.f32 0.0, %v2933
        %v2935 = vpop.f32.mrf.mxu0
        %2936 = vmatprep.mubr.bf16.mxu0 %v2753
        %2937 = vmatmul.mubr.bf16.gmra.mxu0 %v2752
        %v2938 = vpop.f32.mrf.mxu0
        %v2939 = vadd.f32 0.0, %v2938
        %v2940 = vpop.f32.mrf.mxu0
        %v2941 = vpop.f32.mrf.mxu0
        %v2942 = vadd.f32 0.0, %v2941
        %v2943 = vpop.f32.mrf.mxu0
        %2944 = vmatprep.mubr.bf16.mxu0 %v2755
        %2945 = vmatmul.mubr.bf16.gmra.mxu0 %v2754
        %v2946 = vpop.f32.mrf.mxu0
        %v2947 = vadd.f32 0.0, %v2946
        %v2948 = vpop.f32.mrf.mxu0
        %v2949 = vpop.f32.mrf.mxu0
        %v2950 = vadd.f32 0.0, %v2949
        %v2951 = vpop.f32.mrf.mxu0
        %2952 = vmatprep.mubr.bf16.mxu0 %v2757
        %2953 = vmatmul.mubr.bf16.gmra.mxu0 %v2756
        %v2954 = vpop.f32.mrf.mxu0
        %v2955 = vadd.f32 0.0, %v2954
        %v2956 = vpop.f32.mrf.mxu0
        %v2957 = vpop.f32.mrf.mxu0
        %v2958 = vadd.f32 0.0, %v2957
        %v2959 = vpop.f32.mrf.mxu0
        %2960 = vmatprep.mubr.bf16.mxu0 %v2759
        %2961 = vmatmul.mubr.bf16.gmra.mxu0 %v2758
        %v2962 = vpop.f32.mrf.mxu0
        %v2963 = vadd.f32 0.0, %v2962
        %v2964 = vpop.f32.mrf.mxu0
        %v2965 = vpop.f32.mrf.mxu0
        %v2966 = vadd.f32 0.0, %v2965
        %v2967 = vpop.f32.mrf.mxu0
        %2968 = vdwg.mxu0
        %v2969 = vadd.f32 %v2631, %v2907
        %v2970 = vadd.f32 %v2632, %v2910
        %v2971 = vadd.f32 %v2633, %v2915
        %v2972 = vadd.f32 %v2634, %v2918
        %v2973 = vadd.f32 %v2635, %v2923
        %v2974 = vadd.f32 %v2636, %v2926
        %v2975 = vadd.f32 %v2637, %v2931
        %v2976 = vadd.f32 %v2638, %v2934
        %v2977 = vadd.f32 %v2639, %v2939
        %v2978 = vadd.f32 %v2640, %v2942
        %v2979 = vadd.f32 %v2641, %v2947
        %v2980 = vadd.f32 %v2642, %v2950
        %v2981 = vadd.f32 %v2643, %v2955
        %v2982 = vadd.f32 %v2644, %v2958
        %v2983 = vadd.f32 %v2645, %v2963
        %v2984 = vadd.f32 %v2646, %v2966
        %2985 = vst [vmem:[%s2630] sm:$0xff] %v2969
        %2986 = vst [vmem:[%s2630 + $0x8] sm:$0xff] %v2970
        %2987 = vst [vmem:[%s2630 + $0x10] sm:$0xff] %v2971
        %2988 = vst [vmem:[%s2630 + $0x18] sm:$0xff] %v2972
        %2989 = vst [vmem:[%s2630 + $0x20] sm:$0xff] %v2973
        %2990 = vst [vmem:[%s2630 + $0x28] sm:$0xff] %v2974
        %2991 = vst [vmem:[%s2630 + $0x30] sm:$0xff] %v2975
        %2992 = vst [vmem:[%s2630 + $0x38] sm:$0xff] %v2976
        %2993 = vst [vmem:[%s2630 + $0x40] sm:$0xff] %v2977
        %2994 = vst [vmem:[%s2630 + $0x48] sm:$0xff] %v2978
        %2995 = vst [vmem:[%s2630 + $0x50] sm:$0xff] %v2979
        %2996 = vst [vmem:[%s2630 + $0x58] sm:$0xff] %v2980
        %2997 = vst [vmem:[%s2630 + $0x60] sm:$0xff] %v2981
        %2998 = vst [vmem:[%s2630 + $0x68] sm:$0xff] %v2982
        %2999 = vst [vmem:[%s2630 + $0x70] sm:$0xff] %v2983
        %3000 = vst [vmem:[%s2630 + $0x78] sm:$0xff] %v2984
        %s3001 = scalar_lea.vmem [#allocation2], 896
        %v3002 = vld [vmem:[%s3001] sm:$0xff]
        %v3003 = vld [vmem:[%s3001 + $0x8] sm:$0xff]
        %v3004 = vld [vmem:[%s3001 + $0x10] sm:$0xff]
        %v3005 = vld [vmem:[%s3001 + $0x18] sm:$0xff]
        %v3006 = vld [vmem:[%s3001 + $0x20] sm:$0xff]
        %v3007 = vld [vmem:[%s3001 + $0x28] sm:$0xff]
        %v3008 = vld [vmem:[%s3001 + $0x30] sm:$0xff]
        %v3009 = vld [vmem:[%s3001 + $0x38] sm:$0xff]
        %v3010 = vld [vmem:[%s3001 + $0x40] sm:$0xff]
        %v3011 = vld [vmem:[%s3001 + $0x48] sm:$0xff]
        %v3012 = vld [vmem:[%s3001 + $0x50] sm:$0xff]
        %v3013 = vld [vmem:[%s3001 + $0x58] sm:$0xff]
        %v3014 = vld [vmem:[%s3001 + $0x60] sm:$0xff]
        %v3015 = vld [vmem:[%s3001 + $0x68] sm:$0xff]
        %v3016 = vld [vmem:[%s3001 + $0x70] sm:$0xff]
        %v3017 = vld [vmem:[%s3001 + $0x78] sm:$0xff]
        %v3018 = vld [vmem:[%s214] sm:$0xff]
        %v3019 = vld [vmem:[%s214 + $0x8] sm:$0xff]
        %v3020 = vld [vmem:[%s214 + $0x10] sm:$0xff]
        %v3021 = vld [vmem:[%s214 + $0x18] sm:$0xff]
        %v3022 = vld [vmem:[%s214 + $0x20] sm:$0xff]
        %v3023 = vld [vmem:[%s214 + $0x28] sm:$0xff]
        %v3024 = vld [vmem:[%s214 + $0x30] sm:$0xff]
        %v3025 = vld [vmem:[%s214 + $0x38] sm:$0xff]
        %v3026 = vld [vmem:[%s214 + $0x40] sm:$0xff]
        %v3027 = vld [vmem:[%s214 + $0x48] sm:$0xff]
        %v3028 = vld [vmem:[%s214 + $0x50] sm:$0xff]
        %v3029 = vld [vmem:[%s214 + $0x58] sm:$0xff]
        %v3030 = vld [vmem:[%s214 + $0x60] sm:$0xff]
        %v3031 = vld [vmem:[%s214 + $0x68] sm:$0xff]
        %v3032 = vld [vmem:[%s214 + $0x70] sm:$0xff]
        %v3033 = vld [vmem:[%s214 + $0x78] sm:$0xff]
        %s3034 = scalar_lea.vmem %s223, 896 [#allocation8]
        %v3035 = vld [vmem:[%s3034] sm:$0xf]
        %v3036 = vld [vmem:[%s3034 + $0x4] sm:$0xf]
        %v3037 = vld [vmem:[%s3034 + $0x8] sm:$0xf]
        %v3038 = vld [vmem:[%s3034 + $0xc] sm:$0xf]
        %v3039 = vld [vmem:[%s3034 + $0x10] sm:$0xf]
        %v3040 = vld [vmem:[%s3034 + $0x14] sm:$0xf]
        %v3041 = vld [vmem:[%s3034 + $0x18] sm:$0xf]
        %v3042 = vld [vmem:[%s3034 + $0x1c] sm:$0xf]
        %v3043 = vld [vmem:[%s3034 + $0x20] sm:$0xf]
        %v3044 = vld [vmem:[%s3034 + $0x24] sm:$0xf]
        %v3045 = vld [vmem:[%s3034 + $0x28] sm:$0xf]
        %v3046 = vld [vmem:[%s3034 + $0x2c] sm:$0xf]
        %v3047 = vld [vmem:[%s3034 + $0x30] sm:$0xf]
        %v3048 = vld [vmem:[%s3034 + $0x34] sm:$0xf]
        %v3049 = vld [vmem:[%s3034 + $0x38] sm:$0xf]
        %v3050 = vld [vmem:[%s3034 + $0x3c] sm:$0xf]
        %v3051 = vld [vmem:[%s3034 + $0x40] sm:$0xf]
        %v3052 = vld [vmem:[%s3034 + $0x44] sm:$0xf]
        %v3053 = vld [vmem:[%s3034 + $0x48] sm:$0xf]
        %v3054 = vld [vmem:[%s3034 + $0x4c] sm:$0xf]
        %v3055 = vld [vmem:[%s3034 + $0x50] sm:$0xf]
        %v3056 = vld [vmem:[%s3034 + $0x54] sm:$0xf]
        %v3057 = vld [vmem:[%s3034 + $0x58] sm:$0xf]
        %v3058 = vld [vmem:[%s3034 + $0x5c] sm:$0xf]
        %v3059 = vld [vmem:[%s3034 + $0x60] sm:$0xf]
        %v3060 = vld [vmem:[%s3034 + $0x64] sm:$0xf]
        %v3061 = vld [vmem:[%s3034 + $0x68] sm:$0xf]
        %v3062 = vld [vmem:[%s3034 + $0x6c] sm:$0xf]
        %v3063 = vld [vmem:[%s3034 + $0x70] sm:$0xf]
        %v3064 = vld [vmem:[%s3034 + $0x74] sm:$0xf]
        %v3065 = vld [vmem:[%s3034 + $0x78] sm:$0xf]
        %v3066 = vld [vmem:[%s3034 + $0x7c] sm:$0xf]
        %v3083 = vunpack.c.l.b16 %v3018
        %v3084 = vunpack.c.h.b16 %v3018
        %v3085 = vunpack.c.l.b16 %v3019
        %v3086 = vunpack.c.h.b16 %v3019
        %v3087 = vunpack.c.l.b16 %v3020
        %v3088 = vunpack.c.h.b16 %v3020
        %v3089 = vunpack.c.l.b16 %v3021
        %v3090 = vunpack.c.h.b16 %v3021
        %v3091 = vunpack.c.l.b16 %v3022
        %v3092 = vunpack.c.h.b16 %v3022
        %v3093 = vunpack.c.l.b16 %v3023
        %v3094 = vunpack.c.h.b16 %v3023
        %v3095 = vunpack.c.l.b16 %v3024
        %v3096 = vunpack.c.h.b16 %v3024
        %v3097 = vunpack.c.l.b16 %v3025
        %v3098 = vunpack.c.h.b16 %v3025
        %v3099 = vunpack.c.l.b16 %v3026
        %v3100 = vunpack.c.h.b16 %v3026
        %v3101 = vunpack.c.l.b16 %v3027
        %v3102 = vunpack.c.h.b16 %v3027
        %v3103 = vunpack.c.l.b16 %v3028
        %v3104 = vunpack.c.h.b16 %v3028
        %v3105 = vunpack.c.l.b16 %v3029
        %v3106 = vunpack.c.h.b16 %v3029
        %v3107 = vunpack.c.l.b16 %v3030
        %v3108 = vunpack.c.h.b16 %v3030
        %v3109 = vunpack.c.l.b16 %v3031
        %v3110 = vunpack.c.h.b16 %v3031
        %v3111 = vunpack.c.l.b16 %v3032
        %v3112 = vunpack.c.h.b16 %v3032
        %v3113 = vunpack.c.l.b16 %v3033
        %v3114 = vunpack.c.h.b16 %v3033
        %v3115 = vpack.c.b16 %v3085, %v3083
        %v3116 = vpack.c.b16 %v3086, %v3084
        %v3117 = vpack.c.b16 %v3089, %v3087
        %v3118 = vpack.c.b16 %v3090, %v3088
        %v3119 = vpack.c.b16 %v3093, %v3091
        %v3120 = vpack.c.b16 %v3094, %v3092
        %v3121 = vpack.c.b16 %v3097, %v3095
        %v3122 = vpack.c.b16 %v3098, %v3096
        %v3123 = vpack.c.b16 %v3101, %v3099
        %v3124 = vpack.c.b16 %v3102, %v3100
        %v3125 = vpack.c.b16 %v3105, %v3103
        %v3126 = vpack.c.b16 %v3106, %v3104
        %v3127 = vpack.c.b16 %v3109, %v3107
        %v3128 = vpack.c.b16 %v3110, %v3108
        %v3129 = vpack.c.b16 %v3113, %v3111
        %v3130 = vpack.c.b16 %v3114, %v3112
        %v3179 = vunpack.c.l.b16 %v3035
        %v3180 = vunpack.c.l.b16 %v3036
        %v3181 = vunpack.c.l.b16 %v3037
        %v3182 = vunpack.c.l.b16 %v3038
        %v3183 = vunpack.c.l.b16 %v3039
        %v3184 = vunpack.c.l.b16 %v3040
        %v3185 = vunpack.c.l.b16 %v3041
        %v3186 = vunpack.c.l.b16 %v3042
        %v3187 = vunpack.c.l.b16 %v3043
        %v3188 = vunpack.c.l.b16 %v3044
        %v3189 = vunpack.c.l.b16 %v3045
        %v3190 = vunpack.c.l.b16 %v3046
        %v3191 = vunpack.c.l.b16 %v3047
        %v3192 = vunpack.c.l.b16 %v3048
        %v3193 = vunpack.c.l.b16 %v3049
        %v3194 = vunpack.c.l.b16 %v3050
        %v3195 = vunpack.c.l.b16 %v3051
        %v3196 = vunpack.c.l.b16 %v3052
        %v3197 = vunpack.c.l.b16 %v3053
        %v3198 = vunpack.c.l.b16 %v3054
        %v3199 = vunpack.c.l.b16 %v3055
        %v3200 = vunpack.c.l.b16 %v3056
        %v3201 = vunpack.c.l.b16 %v3057
        %v3202 = vunpack.c.l.b16 %v3058
        %v3203 = vunpack.c.l.b16 %v3059
        %v3204 = vunpack.c.l.b16 %v3060
        %v3205 = vunpack.c.l.b16 %v3061
        %v3206 = vunpack.c.l.b16 %v3062
        %v3207 = vunpack.c.l.b16 %v3063
        %v3208 = vunpack.c.l.b16 %v3064
        %v3209 = vunpack.c.l.b16 %v3065
        %v3210 = vunpack.c.l.b16 %v3066
        %v3211 = vpack.c.b16 %v3180, %v3179
        %v3212 = vpack.c.b16 %v3182, %v3181
        %v3213 = vpack.c.b16 %v3184, %v3183
        %v3214 = vpack.c.b16 %v3186, %v3185
        %v3215 = vpack.c.b16 %v3188, %v3187
        %v3216 = vpack.c.b16 %v3190, %v3189
        %v3217 = vpack.c.b16 %v3192, %v3191
        %v3218 = vpack.c.b16 %v3194, %v3193
        %v3219 = vpack.c.b16 %v3196, %v3195
        %v3220 = vpack.c.b16 %v3198, %v3197
        %v3221 = vpack.c.b16 %v3200, %v3199
        %v3222 = vpack.c.b16 %v3202, %v3201
        %v3223 = vpack.c.b16 %v3204, %v3203
        %v3224 = vpack.c.b16 %v3206, %v3205
        %v3225 = vpack.c.b16 %v3208, %v3207
        %v3226 = vpack.c.b16 %v3210, %v3209
        %3243 = vmatprep.subr.bf16.mxu0 0
        %3244 = vmatpush1.bf16.msra.mxu0 %v3218
        %3245 = vmatprep.subr.bf16.mxu0 0
        %3246 = vmatpush1.bf16.msra.mxu0 %v3217
        %3247 = vmatprep.subr.bf16.mxu0 0
        %3248 = vmatpush1.bf16.msra.mxu0 %v3216
        %3249 = vmatprep.subr.bf16.mxu0 0
        %3250 = vmatpush1.bf16.msra.mxu0 %v3215
        %3251 = vmatprep.subr.bf16.mxu0 0
        %3252 = vmatpush1.bf16.msra.mxu0 %v3214
        %3253 = vmatprep.subr.bf16.mxu0 0
        %3254 = vmatpush1.bf16.msra.mxu0 %v3213
        %3255 = vmatprep.subr.bf16.mxu0 0
        %3256 = vmatpush1.bf16.msra.mxu0 %v3212
        %3257 = vmatprep.subr.bf16.mxu0 0
        %3258 = vmatpush1.bf16.msra.mxu0 %v3211
        %3259 = vmatprep.subr.bf16.mxu0 0
        %3260 = vmatpush2.bf16.msra.mxu0 %v3226
        %3261 = vmatprep.subr.bf16.mxu0 0
        %3262 = vmatpush2.bf16.msra.mxu0 %v3225
        %3263 = vmatprep.subr.bf16.mxu0 0
        %3264 = vmatpush2.bf16.msra.mxu0 %v3224
        %3265 = vmatprep.subr.bf16.mxu0 0
        %3266 = vmatpush2.bf16.msra.mxu0 %v3223
        %3267 = vmatprep.subr.bf16.mxu0 0
        %3268 = vmatpush2.bf16.msra.mxu0 %v3222
        %3269 = vmatprep.subr.bf16.mxu0 0
        %3270 = vmatpush2.bf16.msra.mxu0 %v3221
        %3271 = vmatprep.subr.bf16.mxu0 0
        %3272 = vmatpush2.bf16.msra.mxu0 %v3220
        %3273 = vmatprep.subr.bf16.mxu0 0
        %3274 = vmatpush2.bf16.msra.mxu0 %v3219
        %3275 = vmatprep.mubr.bf16.mxu0 %v3116
        %3276 = vmatmul.mubr.bf16.gmra.mxu0 %v3115
        %v3277 = vpop.f32.mrf.mxu0
        %v3278 = vadd.f32 0.0, %v3277
        %v3279 = vpop.f32.mrf.mxu0
        %v3280 = vpop.f32.mrf.mxu0
        %v3281 = vadd.f32 0.0, %v3280
        %v3282 = vpop.f32.mrf.mxu0
        %3283 = vmatprep.mubr.bf16.mxu0 %v3118
        %3284 = vmatmul.mubr.bf16.gmra.mxu0 %v3117
        %v3285 = vpop.f32.mrf.mxu0
        %v3286 = vadd.f32 0.0, %v3285
        %v3287 = vpop.f32.mrf.mxu0
        %v3288 = vpop.f32.mrf.mxu0
        %v3289 = vadd.f32 0.0, %v3288
        %v3290 = vpop.f32.mrf.mxu0
        %3291 = vmatprep.mubr.bf16.mxu0 %v3120
        %3292 = vmatmul.mubr.bf16.gmra.mxu0 %v3119
        %v3293 = vpop.f32.mrf.mxu0
        %v3294 = vadd.f32 0.0, %v3293
        %v3295 = vpop.f32.mrf.mxu0
        %v3296 = vpop.f32.mrf.mxu0
        %v3297 = vadd.f32 0.0, %v3296
        %v3298 = vpop.f32.mrf.mxu0
        %3299 = vmatprep.mubr.bf16.mxu0 %v3122
        %3300 = vmatmul.mubr.bf16.gmra.mxu0 %v3121
        %v3301 = vpop.f32.mrf.mxu0
        %v3302 = vadd.f32 0.0, %v3301
        %v3303 = vpop.f32.mrf.mxu0
        %v3304 = vpop.f32.mrf.mxu0
        %v3305 = vadd.f32 0.0, %v3304
        %v3306 = vpop.f32.mrf.mxu0
        %3307 = vmatprep.mubr.bf16.mxu0 %v3124
        %3308 = vmatmul.mubr.bf16.gmra.mxu0 %v3123
        %v3309 = vpop.f32.mrf.mxu0
        %v3310 = vadd.f32 0.0, %v3309
        %v3311 = vpop.f32.mrf.mxu0
        %v3312 = vpop.f32.mrf.mxu0
        %v3313 = vadd.f32 0.0, %v3312
        %v3314 = vpop.f32.mrf.mxu0
        %3315 = vmatprep.mubr.bf16.mxu0 %v3126
        %3316 = vmatmul.mubr.bf16.gmra.mxu0 %v3125
        %v3317 = vpop.f32.mrf.mxu0
        %v3318 = vadd.f32 0.0, %v3317
        %v3319 = vpop.f32.mrf.mxu0
        %v3320 = vpop.f32.mrf.mxu0
        %v3321 = vadd.f32 0.0, %v3320
        %v3322 = vpop.f32.mrf.mxu0
        %3323 = vmatprep.mubr.bf16.mxu0 %v3128
        %3324 = vmatmul.mubr.bf16.gmra.mxu0 %v3127
        %v3325 = vpop.f32.mrf.mxu0
        %v3326 = vadd.f32 0.0, %v3325
        %v3327 = vpop.f32.mrf.mxu0
        %v3328 = vpop.f32.mrf.mxu0
        %v3329 = vadd.f32 0.0, %v3328
        %v3330 = vpop.f32.mrf.mxu0
        %3331 = vmatprep.mubr.bf16.mxu0 %v3130
        %3332 = vmatmul.mubr.bf16.gmra.mxu0 %v3129
        %v3333 = vpop.f32.mrf.mxu0
        %v3334 = vadd.f32 0.0, %v3333
        %v3335 = vpop.f32.mrf.mxu0
        %v3336 = vpop.f32.mrf.mxu0
        %v3337 = vadd.f32 0.0, %v3336
        %v3338 = vpop.f32.mrf.mxu0
        %3339 = vdwg.mxu0
        %v3340 = vadd.f32 %v3002, %v3278
        %v3341 = vadd.f32 %v3003, %v3281
        %v3342 = vadd.f32 %v3004, %v3286
        %v3343 = vadd.f32 %v3005, %v3289
        %v3344 = vadd.f32 %v3006, %v3294
        %v3345 = vadd.f32 %v3007, %v3297
        %v3346 = vadd.f32 %v3008, %v3302
        %v3347 = vadd.f32 %v3009, %v3305
        %v3348 = vadd.f32 %v3010, %v3310
        %v3349 = vadd.f32 %v3011, %v3313
        %v3350 = vadd.f32 %v3012, %v3318
        %v3351 = vadd.f32 %v3013, %v3321
        %v3352 = vadd.f32 %v3014, %v3326
        %v3353 = vadd.f32 %v3015, %v3329
        %v3354 = vadd.f32 %v3016, %v3334
        %v3355 = vadd.f32 %v3017, %v3337
        %3356 = vst [vmem:[%s3001] sm:$0xff] %v3340
        %3357 = vst [vmem:[%s3001 + $0x8] sm:$0xff] %v3341
        %3358 = vst [vmem:[%s3001 + $0x10] sm:$0xff] %v3342
        %3359 = vst [vmem:[%s3001 + $0x18] sm:$0xff] %v3343
        %3360 = vst [vmem:[%s3001 + $0x20] sm:$0xff] %v3344
        %3361 = vst [vmem:[%s3001 + $0x28] sm:$0xff] %v3345
        %3362 = vst [vmem:[%s3001 + $0x30] sm:$0xff] %v3346
        %3363 = vst [vmem:[%s3001 + $0x38] sm:$0xff] %v3347
        %3364 = vst [vmem:[%s3001 + $0x40] sm:$0xff] %v3348
        %3365 = vst [vmem:[%s3001 + $0x48] sm:$0xff] %v3349
        %3366 = vst [vmem:[%s3001 + $0x50] sm:$0xff] %v3350
        %3367 = vst [vmem:[%s3001 + $0x58] sm:$0xff] %v3351
        %3368 = vst [vmem:[%s3001 + $0x60] sm:$0xff] %v3352
        %3369 = vst [vmem:[%s3001 + $0x68] sm:$0xff] %v3353
        %3370 = vst [vmem:[%s3001 + $0x70] sm:$0xff] %v3354
        %3371 = vst [vmem:[%s3001 + $0x78] sm:$0xff] %v3355
        %s3372 = scalar_lea.vmem [#allocation2], 1024
        %v3373 = vld [vmem:[%s3372] sm:$0xff]
        %v3374 = vld [vmem:[%s3372 + $0x8] sm:$0xff]
        %v3375 = vld [vmem:[%s3372 + $0x10] sm:$0xff]
        %v3376 = vld [vmem:[%s3372 + $0x18] sm:$0xff]
        %v3377 = vld [vmem:[%s3372 + $0x20] sm:$0xff]
        %v3378 = vld [vmem:[%s3372 + $0x28] sm:$0xff]
        %v3379 = vld [vmem:[%s3372 + $0x30] sm:$0xff]
        %v3380 = vld [vmem:[%s3372 + $0x38] sm:$0xff]
        %v3381 = vld [vmem:[%s3372 + $0x40] sm:$0xff]
        %v3382 = vld [vmem:[%s3372 + $0x48] sm:$0xff]
        %v3383 = vld [vmem:[%s3372 + $0x50] sm:$0xff]
        %v3384 = vld [vmem:[%s3372 + $0x58] sm:$0xff]
        %v3385 = vld [vmem:[%s3372 + $0x60] sm:$0xff]
        %v3386 = vld [vmem:[%s3372 + $0x68] sm:$0xff]
        %v3387 = vld [vmem:[%s3372 + $0x70] sm:$0xff]
        %v3388 = vld [vmem:[%s3372 + $0x78] sm:$0xff]
        %v3389 = vld [vmem:[%s214] sm:$0xff]
        %v3390 = vld [vmem:[%s214 + $0x8] sm:$0xff]
        %v3391 = vld [vmem:[%s214 + $0x10] sm:$0xff]
        %v3392 = vld [vmem:[%s214 + $0x18] sm:$0xff]
        %v3393 = vld [vmem:[%s214 + $0x20] sm:$0xff]
        %v3394 = vld [vmem:[%s214 + $0x28] sm:$0xff]
        %v3395 = vld [vmem:[%s214 + $0x30] sm:$0xff]
        %v3396 = vld [vmem:[%s214 + $0x38] sm:$0xff]
        %v3397 = vld [vmem:[%s214 + $0x40] sm:$0xff]
        %v3398 = vld [vmem:[%s214 + $0x48] sm:$0xff]
        %v3399 = vld [vmem:[%s214 + $0x50] sm:$0xff]
        %v3400 = vld [vmem:[%s214 + $0x58] sm:$0xff]
        %v3401 = vld [vmem:[%s214 + $0x60] sm:$0xff]
        %v3402 = vld [vmem:[%s214 + $0x68] sm:$0xff]
        %v3403 = vld [vmem:[%s214 + $0x70] sm:$0xff]
        %v3404 = vld [vmem:[%s214 + $0x78] sm:$0xff]
        %s3405 = scalar_lea.vmem %s223, 1024 [#allocation8]
        %v3406 = vld [vmem:[%s3405] sm:$0xf]
        %v3407 = vld [vmem:[%s3405 + $0x4] sm:$0xf]
        %v3408 = vld [vmem:[%s3405 + $0x8] sm:$0xf]
        %v3409 = vld [vmem:[%s3405 + $0xc] sm:$0xf]
        %v3410 = vld [vmem:[%s3405 + $0x10] sm:$0xf]
        %v3411 = vld [vmem:[%s3405 + $0x14] sm:$0xf]
        %v3412 = vld [vmem:[%s3405 + $0x18] sm:$0xf]
        %v3413 = vld [vmem:[%s3405 + $0x1c] sm:$0xf]
        %v3414 = vld [vmem:[%s3405 + $0x20] sm:$0xf]
        %v3415 = vld [vmem:[%s3405 + $0x24] sm:$0xf]
        %v3416 = vld [vmem:[%s3405 + $0x28] sm:$0xf]
        %v3417 = vld [vmem:[%s3405 + $0x2c] sm:$0xf]
        %v3418 = vld [vmem:[%s3405 + $0x30] sm:$0xf]
        %v3419 = vld [vmem:[%s3405 + $0x34] sm:$0xf]
        %v3420 = vld [vmem:[%s3405 + $0x38] sm:$0xf]
        %v3421 = vld [vmem:[%s3405 + $0x3c] sm:$0xf]
        %v3422 = vld [vmem:[%s3405 + $0x40] sm:$0xf]
        %v3423 = vld [vmem:[%s3405 + $0x44] sm:$0xf]
        %v3424 = vld [vmem:[%s3405 + $0x48] sm:$0xf]
        %v3425 = vld [vmem:[%s3405 + $0x4c] sm:$0xf]
        %v3426 = vld [vmem:[%s3405 + $0x50] sm:$0xf]
        %v3427 = vld [vmem:[%s3405 + $0x54] sm:$0xf]
        %v3428 = vld [vmem:[%s3405 + $0x58] sm:$0xf]
        %v3429 = vld [vmem:[%s3405 + $0x5c] sm:$0xf]
        %v3430 = vld [vmem:[%s3405 + $0x60] sm:$0xf]
        %v3431 = vld [vmem:[%s3405 + $0x64] sm:$0xf]
        %v3432 = vld [vmem:[%s3405 + $0x68] sm:$0xf]
        %v3433 = vld [vmem:[%s3405 + $0x6c] sm:$0xf]
        %v3434 = vld [vmem:[%s3405 + $0x70] sm:$0xf]
        %v3435 = vld [vmem:[%s3405 + $0x74] sm:$0xf]
        %v3436 = vld [vmem:[%s3405 + $0x78] sm:$0xf]
        %v3437 = vld [vmem:[%s3405 + $0x7c] sm:$0xf]
        %v3454 = vunpack.c.l.b16 %v3389
        %v3455 = vunpack.c.h.b16 %v3389
        %v3456 = vunpack.c.l.b16 %v3390
        %v3457 = vunpack.c.h.b16 %v3390
        %v3458 = vunpack.c.l.b16 %v3391
        %v3459 = vunpack.c.h.b16 %v3391
        %v3460 = vunpack.c.l.b16 %v3392
        %v3461 = vunpack.c.h.b16 %v3392
        %v3462 = vunpack.c.l.b16 %v3393
        %v3463 = vunpack.c.h.b16 %v3393
        %v3464 = vunpack.c.l.b16 %v3394
        %v3465 = vunpack.c.h.b16 %v3394
        %v3466 = vunpack.c.l.b16 %v3395
        %v3467 = vunpack.c.h.b16 %v3395
        %v3468 = vunpack.c.l.b16 %v3396
        %v3469 = vunpack.c.h.b16 %v3396
        %v3470 = vunpack.c.l.b16 %v3397
        %v3471 = vunpack.c.h.b16 %v3397
        %v3472 = vunpack.c.l.b16 %v3398
        %v3473 = vunpack.c.h.b16 %v3398
        %v3474 = vunpack.c.l.b16 %v3399
        %v3475 = vunpack.c.h.b16 %v3399
        %v3476 = vunpack.c.l.b16 %v3400
        %v3477 = vunpack.c.h.b16 %v3400
        %v3478 = vunpack.c.l.b16 %v3401
        %v3479 = vunpack.c.h.b16 %v3401
        %v3480 = vunpack.c.l.b16 %v3402
        %v3481 = vunpack.c.h.b16 %v3402
        %v3482 = vunpack.c.l.b16 %v3403
        %v3483 = vunpack.c.h.b16 %v3403
        %v3484 = vunpack.c.l.b16 %v3404
        %v3485 = vunpack.c.h.b16 %v3404
        %v3486 = vpack.c.b16 %v3456, %v3454
        %v3487 = vpack.c.b16 %v3457, %v3455
        %v3488 = vpack.c.b16 %v3460, %v3458
        %v3489 = vpack.c.b16 %v3461, %v3459
        %v3490 = vpack.c.b16 %v3464, %v3462
        %v3491 = vpack.c.b16 %v3465, %v3463
        %v3492 = vpack.c.b16 %v3468, %v3466
        %v3493 = vpack.c.b16 %v3469, %v3467
        %v3494 = vpack.c.b16 %v3472, %v3470
        %v3495 = vpack.c.b16 %v3473, %v3471
        %v3496 = vpack.c.b16 %v3476, %v3474
        %v3497 = vpack.c.b16 %v3477, %v3475
        %v3498 = vpack.c.b16 %v3480, %v3478
        %v3499 = vpack.c.b16 %v3481, %v3479
        %v3500 = vpack.c.b16 %v3484, %v3482
        %v3501 = vpack.c.b16 %v3485, %v3483
        %v3550 = vunpack.c.l.b16 %v3406
        %v3551 = vunpack.c.l.b16 %v3407
        %v3552 = vunpack.c.l.b16 %v3408
        %v3553 = vunpack.c.l.b16 %v3409
        %v3554 = vunpack.c.l.b16 %v3410
        %v3555 = vunpack.c.l.b16 %v3411
        %v3556 = vunpack.c.l.b16 %v3412
        %v3557 = vunpack.c.l.b16 %v3413
        %v3558 = vunpack.c.l.b16 %v3414
        %v3559 = vunpack.c.l.b16 %v3415
        %v3560 = vunpack.c.l.b16 %v3416
        %v3561 = vunpack.c.l.b16 %v3417
        %v3562 = vunpack.c.l.b16 %v3418
        %v3563 = vunpack.c.l.b16 %v3419
        %v3564 = vunpack.c.l.b16 %v3420
        %v3565 = vunpack.c.l.b16 %v3421
        %v3566 = vunpack.c.l.b16 %v3422
        %v3567 = vunpack.c.l.b16 %v3423
        %v3568 = vunpack.c.l.b16 %v3424
        %v3569 = vunpack.c.l.b16 %v3425
        %v3570 = vunpack.c.l.b16 %v3426
        %v3571 = vunpack.c.l.b16 %v3427
        %v3572 = vunpack.c.l.b16 %v3428
        %v3573 = vunpack.c.l.b16 %v3429
        %v3574 = vunpack.c.l.b16 %v3430
        %v3575 = vunpack.c.l.b16 %v3431
        %v3576 = vunpack.c.l.b16 %v3432
        %v3577 = vunpack.c.l.b16 %v3433
        %v3578 = vunpack.c.l.b16 %v3434
        %v3579 = vunpack.c.l.b16 %v3435
        %v3580 = vunpack.c.l.b16 %v3436
        %v3581 = vunpack.c.l.b16 %v3437
        %v3582 = vpack.c.b16 %v3551, %v3550
        %v3583 = vpack.c.b16 %v3553, %v3552
        %v3584 = vpack.c.b16 %v3555, %v3554
        %v3585 = vpack.c.b16 %v3557, %v3556
        %v3586 = vpack.c.b16 %v3559, %v3558
        %v3587 = vpack.c.b16 %v3561, %v3560
        %v3588 = vpack.c.b16 %v3563, %v3562
        %v3589 = vpack.c.b16 %v3565, %v3564
        %v3590 = vpack.c.b16 %v3567, %v3566
        %v3591 = vpack.c.b16 %v3569, %v3568
        %v3592 = vpack.c.b16 %v3571, %v3570
        %v3593 = vpack.c.b16 %v3573, %v3572
        %v3594 = vpack.c.b16 %v3575, %v3574
        %v3595 = vpack.c.b16 %v3577, %v3576
        %v3596 = vpack.c.b16 %v3579, %v3578
        %v3597 = vpack.c.b16 %v3581, %v3580
        %3614 = vmatprep.subr.bf16.mxu0 0
        %3615 = vmatpush1.bf16.msra.mxu0 %v3589
        %3616 = vmatprep.subr.bf16.mxu0 0
        %3617 = vmatpush1.bf16.msra.mxu0 %v3588
        %3618 = vmatprep.subr.bf16.mxu0 0
        %3619 = vmatpush1.bf16.msra.mxu0 %v3587
        %3620 = vmatprep.subr.bf16.mxu0 0
        %3621 = vmatpush1.bf16.msra.mxu0 %v3586
        %3622 = vmatprep.subr.bf16.mxu0 0
        %3623 = vmatpush1.bf16.msra.mxu0 %v3585
        %3624 = vmatprep.subr.bf16.mxu0 0
        %3625 = vmatpush1.bf16.msra.mxu0 %v3584
        %3626 = vmatprep.subr.bf16.mxu0 0
        %3627 = vmatpush1.bf16.msra.mxu0 %v3583
        %3628 = vmatprep.subr.bf16.mxu0 0
        %3629 = vmatpush1.bf16.msra.mxu0 %v3582
        %3630 = vmatprep.subr.bf16.mxu0 0
        %3631 = vmatpush2.bf16.msra.mxu0 %v3597
        %3632 = vmatprep.subr.bf16.mxu0 0
        %3633 = vmatpush2.bf16.msra.mxu0 %v3596
        %3634 = vmatprep.subr.bf16.mxu0 0
        %3635 = vmatpush2.bf16.msra.mxu0 %v3595
        %3636 = vmatprep.subr.bf16.mxu0 0
        %3637 = vmatpush2.bf16.msra.mxu0 %v3594
        %3638 = vmatprep.subr.bf16.mxu0 0
        %3639 = vmatpush2.bf16.msra.mxu0 %v3593
        %3640 = vmatprep.subr.bf16.mxu0 0
        %3641 = vmatpush2.bf16.msra.mxu0 %v3592
        %3642 = vmatprep.subr.bf16.mxu0 0
        %3643 = vmatpush2.bf16.msra.mxu0 %v3591
        %3644 = vmatprep.subr.bf16.mxu0 0
        %3645 = vmatpush2.bf16.msra.mxu0 %v3590
        %3646 = vmatprep.mubr.bf16.mxu0 %v3487
        %3647 = vmatmul.mubr.bf16.gmra.mxu0 %v3486
        %v3648 = vpop.f32.mrf.mxu0
        %v3649 = vadd.f32 0.0, %v3648
        %v3650 = vpop.f32.mrf.mxu0
        %v3651 = vpop.f32.mrf.mxu0
        %v3652 = vadd.f32 0.0, %v3651
        %v3653 = vpop.f32.mrf.mxu0
        %3654 = vmatprep.mubr.bf16.mxu0 %v3489
        %3655 = vmatmul.mubr.bf16.gmra.mxu0 %v3488
        %v3656 = vpop.f32.mrf.mxu0
        %v3657 = vadd.f32 0.0, %v3656
        %v3658 = vpop.f32.mrf.mxu0
        %v3659 = vpop.f32.mrf.mxu0
        %v3660 = vadd.f32 0.0, %v3659
        %v3661 = vpop.f32.mrf.mxu0
        %3662 = vmatprep.mubr.bf16.mxu0 %v3491
        %3663 = vmatmul.mubr.bf16.gmra.mxu0 %v3490
        %v3664 = vpop.f32.mrf.mxu0
        %v3665 = vadd.f32 0.0, %v3664
        %v3666 = vpop.f32.mrf.mxu0
        %v3667 = vpop.f32.mrf.mxu0
        %v3668 = vadd.f32 0.0, %v3667
        %v3669 = vpop.f32.mrf.mxu0
        %3670 = vmatprep.mubr.bf16.mxu0 %v3493
        %3671 = vmatmul.mubr.bf16.gmra.mxu0 %v3492
        %v3672 = vpop.f32.mrf.mxu0
        %v3673 = vadd.f32 0.0, %v3672
        %v3674 = vpop.f32.mrf.mxu0
        %v3675 = vpop.f32.mrf.mxu0
        %v3676 = vadd.f32 0.0, %v3675
        %v3677 = vpop.f32.mrf.mxu0
        %3678 = vmatprep.mubr.bf16.mxu0 %v3495
        %3679 = vmatmul.mubr.bf16.gmra.mxu0 %v3494
        %v3680 = vpop.f32.mrf.mxu0
        %v3681 = vadd.f32 0.0, %v3680
        %v3682 = vpop.f32.mrf.mxu0
        %v3683 = vpop.f32.mrf.mxu0
        %v3684 = vadd.f32 0.0, %v3683
        %v3685 = vpop.f32.mrf.mxu0
        %3686 = vmatprep.mubr.bf16.mxu0 %v3497
        %3687 = vmatmul.mubr.bf16.gmra.mxu0 %v3496
        %v3688 = vpop.f32.mrf.mxu0
        %v3689 = vadd.f32 0.0, %v3688
        %v3690 = vpop.f32.mrf.mxu0
        %v3691 = vpop.f32.mrf.mxu0
        %v3692 = vadd.f32 0.0, %v3691
        %v3693 = vpop.f32.mrf.mxu0
        %3694 = vmatprep.mubr.bf16.mxu0 %v3499
        %3695 = vmatmul.mubr.bf16.gmra.mxu0 %v3498
        %v3696 = vpop.f32.mrf.mxu0
        %v3697 = vadd.f32 0.0, %v3696
        %v3698 = vpop.f32.mrf.mxu0
        %v3699 = vpop.f32.mrf.mxu0
        %v3700 = vadd.f32 0.0, %v3699
        %v3701 = vpop.f32.mrf.mxu0
        %3702 = vmatprep.mubr.bf16.mxu0 %v3501
        %3703 = vmatmul.mubr.bf16.gmra.mxu0 %v3500
        %v3704 = vpop.f32.mrf.mxu0
        %v3705 = vadd.f32 0.0, %v3704
        %v3706 = vpop.f32.mrf.mxu0
        %v3707 = vpop.f32.mrf.mxu0
        %v3708 = vadd.f32 0.0, %v3707
        %v3709 = vpop.f32.mrf.mxu0
        %3710 = vdwg.mxu0
        %v3711 = vadd.f32 %v3373, %v3649
        %v3712 = vadd.f32 %v3374, %v3652
        %v3713 = vadd.f32 %v3375, %v3657
        %v3714 = vadd.f32 %v3376, %v3660
        %v3715 = vadd.f32 %v3377, %v3665
        %v3716 = vadd.f32 %v3378, %v3668
        %v3717 = vadd.f32 %v3379, %v3673
        %v3718 = vadd.f32 %v3380, %v3676
        %v3719 = vadd.f32 %v3381, %v3681
        %v3720 = vadd.f32 %v3382, %v3684
        %v3721 = vadd.f32 %v3383, %v3689
        %v3722 = vadd.f32 %v3384, %v3692
        %v3723 = vadd.f32 %v3385, %v3697
        %v3724 = vadd.f32 %v3386, %v3700
        %v3725 = vadd.f32 %v3387, %v3705
        %v3726 = vadd.f32 %v3388, %v3708
        %3727 = vst [vmem:[%s3372] sm:$0xff] %v3711
        %3728 = vst [vmem:[%s3372 + $0x8] sm:$0xff] %v3712
        %3729 = vst [vmem:[%s3372 + $0x10] sm:$0xff] %v3713
        %3730 = vst [vmem:[%s3372 + $0x18] sm:$0xff] %v3714
        %3731 = vst [vmem:[%s3372 + $0x20] sm:$0xff] %v3715
        %3732 = vst [vmem:[%s3372 + $0x28] sm:$0xff] %v3716
        %3733 = vst [vmem:[%s3372 + $0x30] sm:$0xff] %v3717
        %3734 = vst [vmem:[%s3372 + $0x38] sm:$0xff] %v3718
        %3735 = vst [vmem:[%s3372 + $0x40] sm:$0xff] %v3719
        %3736 = vst [vmem:[%s3372 + $0x48] sm:$0xff] %v3720
        %3737 = vst [vmem:[%s3372 + $0x50] sm:$0xff] %v3721
        %3738 = vst [vmem:[%s3372 + $0x58] sm:$0xff] %v3722
        %3739 = vst [vmem:[%s3372 + $0x60] sm:$0xff] %v3723
        %3740 = vst [vmem:[%s3372 + $0x68] sm:$0xff] %v3724
        %3741 = vst [vmem:[%s3372 + $0x70] sm:$0xff] %v3725
        %3742 = vst [vmem:[%s3372 + $0x78] sm:$0xff] %v3726
        // Predicated region
        $region41: #{tpu_custom_call.1} parent=27 // pred_check
          %p3743 = pneg %p258
        $region42: #{tpu_custom_call.1} parent=27 // pred_check_branch
          %3745 = sbr.rel (%p3743) target = $region44
        $region43: #{tpu_custom_call.1} parent=27 // pred_region
          %v3746 = vld [vmem:[#allocation2] sm:$0xff]
          %v3747 = vld [vmem:[#allocation2 + $0x8] sm:$0xff]
          %v3748 = vld [vmem:[#allocation2 + $0x10] sm:$0xff]
          %v3749 = vld [vmem:[#allocation2 + $0x18] sm:$0xff]
          %v3750 = vld [vmem:[#allocation2 + $0x20] sm:$0xff]
          %v3751 = vld [vmem:[#allocation2 + $0x28] sm:$0xff]
          %v3752 = vld [vmem:[#allocation2 + $0x30] sm:$0xff]
          %v3753 = vld [vmem:[#allocation2 + $0x38] sm:$0xff]
          %v3754 = vld [vmem:[#allocation2 + $0x40] sm:$0xff]
          %v3755 = vld [vmem:[#allocation2 + $0x48] sm:$0xff]
          %v3756 = vld [vmem:[#allocation2 + $0x50] sm:$0xff]
          %v3757 = vld [vmem:[#allocation2 + $0x58] sm:$0xff]
          %v3758 = vld [vmem:[#allocation2 + $0x60] sm:$0xff]
          %v3759 = vld [vmem:[#allocation2 + $0x68] sm:$0xff]
          %v3760 = vld [vmem:[#allocation2 + $0x70] sm:$0xff]
          %v3761 = vld [vmem:[#allocation2 + $0x78] sm:$0xff]
          %v3762 = vld [vmem:[%s775] sm:$0xff]
          %v3763 = vld [vmem:[%s775 + $0x8] sm:$0xff]
          %v3764 = vld [vmem:[%s775 + $0x10] sm:$0xff]
          %v3765 = vld [vmem:[%s775 + $0x18] sm:$0xff]
          %v3766 = vld [vmem:[%s775 + $0x20] sm:$0xff]
          %v3767 = vld [vmem:[%s775 + $0x28] sm:$0xff]
          %v3768 = vld [vmem:[%s775 + $0x30] sm:$0xff]
          %v3769 = vld [vmem:[%s775 + $0x38] sm:$0xff]
          %v3770 = vld [vmem:[%s775 + $0x40] sm:$0xff]
          %v3771 = vld [vmem:[%s775 + $0x48] sm:$0xff]
          %v3772 = vld [vmem:[%s775 + $0x50] sm:$0xff]
          %v3773 = vld [vmem:[%s775 + $0x58] sm:$0xff]
          %v3774 = vld [vmem:[%s775 + $0x60] sm:$0xff]
          %v3775 = vld [vmem:[%s775 + $0x68] sm:$0xff]
          %v3776 = vld [vmem:[%s775 + $0x70] sm:$0xff]
          %v3777 = vld [vmem:[%s775 + $0x78] sm:$0xff]
          %v3778 = vmax.f32 %v3746, %v3762
          %v3779 = vmax.f32 %v3747, %v3763
          %v3780 = vmax.f32 %v3748, %v3764
          %v3781 = vmax.f32 %v3749, %v3765
          %v3782 = vmax.f32 %v3750, %v3766
          %v3783 = vmax.f32 %v3751, %v3767
          %v3784 = vmax.f32 %v3752, %v3768
          %v3785 = vmax.f32 %v3753, %v3769
          %v3786 = vmax.f32 %v3754, %v3770
          %v3787 = vmax.f32 %v3755, %v3771
          %v3788 = vmax.f32 %v3756, %v3772
          %v3789 = vmax.f32 %v3757, %v3773
          %v3790 = vmax.f32 %v3758, %v3774
          %v3791 = vmax.f32 %v3759, %v3775
          %v3792 = vmax.f32 %v3760, %v3776
          %v3793 = vmax.f32 %v3761, %v3777
          %v3794 = vld [vmem:[%s1146] sm:$0xff]
          %v3795 = vld [vmem:[%s1146 + $0x8] sm:$0xff]
          %v3796 = vld [vmem:[%s1146 + $0x10] sm:$0xff]
          %v3797 = vld [vmem:[%s1146 + $0x18] sm:$0xff]
          %v3798 = vld [vmem:[%s1146 + $0x20] sm:$0xff]
          %v3799 = vld [vmem:[%s1146 + $0x28] sm:$0xff]
          %v3800 = vld [vmem:[%s1146 + $0x30] sm:$0xff]
          %v3801 = vld [vmem:[%s1146 + $0x38] sm:$0xff]
          %v3802 = vld [vmem:[%s1146 + $0x40] sm:$0xff]
          %v3803 = vld [vmem:[%s1146 + $0x48] sm:$0xff]
          %v3804 = vld [vmem:[%s1146 + $0x50] sm:$0xff]
          %v3805 = vld [vmem:[%s1146 + $0x58] sm:$0xff]
          %v3806 = vld [vmem:[%s1146 + $0x60] sm:$0xff]
          %v3807 = vld [vmem:[%s1146 + $0x68] sm:$0xff]
          %v3808 = vld [vmem:[%s1146 + $0x70] sm:$0xff]
          %v3809 = vld [vmem:[%s1146 + $0x78] sm:$0xff]
          %v3810 = vmax.f32 %v3778, %v3794
          %v3811 = vmax.f32 %v3779, %v3795
          %v3812 = vmax.f32 %v3780, %v3796
          %v3813 = vmax.f32 %v3781, %v3797
          %v3814 = vmax.f32 %v3782, %v3798
          %v3815 = vmax.f32 %v3783, %v3799
          %v3816 = vmax.f32 %v3784, %v3800
          %v3817 = vmax.f32 %v3785, %v3801
          %v3818 = vmax.f32 %v3786, %v3802
          %v3819 = vmax.f32 %v3787, %v3803
          %v3820 = vmax.f32 %v3788, %v3804
          %v3821 = vmax.f32 %v3789, %v3805
          %v3822 = vmax.f32 %v3790, %v3806
          %v3823 = vmax.f32 %v3791, %v3807
          %v3824 = vmax.f32 %v3792, %v3808
          %v3825 = vmax.f32 %v3793, %v3809
          %v3826 = vld [vmem:[%s1517] sm:$0xff]
          %v3827 = vld [vmem:[%s1517 + $0x8] sm:$0xff]
          %v3828 = vld [vmem:[%s1517 + $0x10] sm:$0xff]
          %v3829 = vld [vmem:[%s1517 + $0x18] sm:$0xff]
          %v3830 = vld [vmem:[%s1517 + $0x20] sm:$0xff]
          %v3831 = vld [vmem:[%s1517 + $0x28] sm:$0xff]
          %v3832 = vld [vmem:[%s1517 + $0x30] sm:$0xff]
          %v3833 = vld [vmem:[%s1517 + $0x38] sm:$0xff]
          %v3834 = vld [vmem:[%s1517 + $0x40] sm:$0xff]
          %v3835 = vld [vmem:[%s1517 + $0x48] sm:$0xff]
          %v3836 = vld [vmem:[%s1517 + $0x50] sm:$0xff]
          %v3837 = vld [vmem:[%s1517 + $0x58] sm:$0xff]
          %v3838 = vld [vmem:[%s1517 + $0x60] sm:$0xff]
          %v3839 = vld [vmem:[%s1517 + $0x68] sm:$0xff]
          %v3840 = vld [vmem:[%s1517 + $0x70] sm:$0xff]
          %v3841 = vld [vmem:[%s1517 + $0x78] sm:$0xff]
          %v3842 = vmax.f32 %v3810, %v3826
          %v3843 = vmax.f32 %v3811, %v3827
          %v3844 = vmax.f32 %v3812, %v3828
          %v3845 = vmax.f32 %v3813, %v3829
          %v3846 = vmax.f32 %v3814, %v3830
          %v3847 = vmax.f32 %v3815, %v3831
          %v3848 = vmax.f32 %v3816, %v3832
          %v3849 = vmax.f32 %v3817, %v3833
          %v3850 = vmax.f32 %v3818, %v3834
          %v3851 = vmax.f32 %v3819, %v3835
          %v3852 = vmax.f32 %v3820, %v3836
          %v3853 = vmax.f32 %v3821, %v3837
          %v3854 = vmax.f32 %v3822, %v3838
          %v3855 = vmax.f32 %v3823, %v3839
          %v3856 = vmax.f32 %v3824, %v3840
          %v3857 = vmax.f32 %v3825, %v3841
          %v3858 = vld [vmem:[%s1888] sm:$0xff]
          %v3859 = vld [vmem:[%s1888 + $0x8] sm:$0xff]
          %v3860 = vld [vmem:[%s1888 + $0x10] sm:$0xff]
          %v3861 = vld [vmem:[%s1888 + $0x18] sm:$0xff]
          %v3862 = vld [vmem:[%s1888 + $0x20] sm:$0xff]
          %v3863 = vld [vmem:[%s1888 + $0x28] sm:$0xff]
          %v3864 = vld [vmem:[%s1888 + $0x30] sm:$0xff]
          %v3865 = vld [vmem:[%s1888 + $0x38] sm:$0xff]
          %v3866 = vld [vmem:[%s1888 + $0x40] sm:$0xff]
          %v3867 = vld [vmem:[%s1888 + $0x48] sm:$0xff]
          %v3868 = vld [vmem:[%s1888 + $0x50] sm:$0xff]
          %v3869 = vld [vmem:[%s1888 + $0x58] sm:$0xff]
          %v3870 = vld [vmem:[%s1888 + $0x60] sm:$0xff]
          %v3871 = vld [vmem:[%s1888 + $0x68] sm:$0xff]
          %v3872 = vld [vmem:[%s1888 + $0x70] sm:$0xff]
          %v3873 = vld [vmem:[%s1888 + $0x78] sm:$0xff]
          %v3874 = vmax.f32 %v3842, %v3858
          %v3875 = vmax.f32 %v3843, %v3859
          %v3876 = vmax.f32 %v3844, %v3860
          %v3877 = vmax.f32 %v3845, %v3861
          %v3878 = vmax.f32 %v3846, %v3862
          %v3879 = vmax.f32 %v3847, %v3863
          %v3880 = vmax.f32 %v3848, %v3864
          %v3881 = vmax.f32 %v3849, %v3865
          %v3882 = vmax.f32 %v3850, %v3866
          %v3883 = vmax.f32 %v3851, %v3867
          %v3884 = vmax.f32 %v3852, %v3868
          %v3885 = vmax.f32 %v3853, %v3869
          %v3886 = vmax.f32 %v3854, %v3870
          %v3887 = vmax.f32 %v3855, %v3871
          %v3888 = vmax.f32 %v3856, %v3872
          %v3889 = vmax.f32 %v3857, %v3873
          %v3890 = vld [vmem:[%s2259] sm:$0xff]
          %v3891 = vld [vmem:[%s2259 + $0x8] sm:$0xff]
          %v3892 = vld [vmem:[%s2259 + $0x10] sm:$0xff]
          %v3893 = vld [vmem:[%s2259 + $0x18] sm:$0xff]
          %v3894 = vld [vmem:[%s2259 + $0x20] sm:$0xff]
          %v3895 = vld [vmem:[%s2259 + $0x28] sm:$0xff]
          %v3896 = vld [vmem:[%s2259 + $0x30] sm:$0xff]
          %v3897 = vld [vmem:[%s2259 + $0x38] sm:$0xff]
          %v3898 = vld [vmem:[%s2259 + $0x40] sm:$0xff]
          %v3899 = vld [vmem:[%s2259 + $0x48] sm:$0xff]
          %v3900 = vld [vmem:[%s2259 + $0x50] sm:$0xff]
          %v3901 = vld [vmem:[%s2259 + $0x58] sm:$0xff]
          %v3902 = vld [vmem:[%s2259 + $0x60] sm:$0xff]
          %v3903 = vld [vmem:[%s2259 + $0x68] sm:$0xff]
          %v3904 = vld [vmem:[%s2259 + $0x70] sm:$0xff]
          %v3905 = vld [vmem:[%s2259 + $0x78] sm:$0xff]
          %v3906 = vmax.f32 %v3874, %v3890
          %v3907 = vmax.f32 %v3875, %v3891
          %v3908 = vmax.f32 %v3876, %v3892
          %v3909 = vmax.f32 %v3877, %v3893
          %v3910 = vmax.f32 %v3878, %v3894
          %v3911 = vmax.f32 %v3879, %v3895
          %v3912 = vmax.f32 %v3880, %v3896
          %v3913 = vmax.f32 %v3881, %v3897
          %v3914 = vmax.f32 %v3882, %v3898
          %v3915 = vmax.f32 %v3883, %v3899
          %v3916 = vmax.f32 %v3884, %v3900
          %v3917 = vmax.f32 %v3885, %v3901
          %v3918 = vmax.f32 %v3886, %v3902
          %v3919 = vmax.f32 %v3887, %v3903
          %v3920 = vmax.f32 %v3888, %v3904
          %v3921 = vmax.f32 %v3889, %v3905
          %v3922 = vld [vmem:[%s2630] sm:$0xff]
          %v3923 = vld [vmem:[%s2630 + $0x8] sm:$0xff]
          %v3924 = vld [vmem:[%s2630 + $0x10] sm:$0xff]
          %v3925 = vld [vmem:[%s2630 + $0x18] sm:$0xff]
          %v3926 = vld [vmem:[%s2630 + $0x20] sm:$0xff]
          %v3927 = vld [vmem:[%s2630 + $0x28] sm:$0xff]
          %v3928 = vld [vmem:[%s2630 + $0x30] sm:$0xff]
          %v3929 = vld [vmem:[%s2630 + $0x38] sm:$0xff]
          %v3930 = vld [vmem:[%s2630 + $0x40] sm:$0xff]
          %v3931 = vld [vmem:[%s2630 + $0x48] sm:$0xff]
          %v3932 = vld [vmem:[%s2630 + $0x50] sm:$0xff]
          %v3933 = vld [vmem:[%s2630 + $0x58] sm:$0xff]
          %v3934 = vld [vmem:[%s2630 + $0x60] sm:$0xff]
          %v3935 = vld [vmem:[%s2630 + $0x68] sm:$0xff]
          %v3936 = vld [vmem:[%s2630 + $0x70] sm:$0xff]
          %v3937 = vld [vmem:[%s2630 + $0x78] sm:$0xff]
          %v3938 = vmax.f32 %v3906, %v3922
          %v3939 = vmax.f32 %v3907, %v3923
          %v3940 = vmax.f32 %v3908, %v3924
          %v3941 = vmax.f32 %v3909, %v3925
          %v3942 = vmax.f32 %v3910, %v3926
          %v3943 = vmax.f32 %v3911, %v3927
          %v3944 = vmax.f32 %v3912, %v3928
          %v3945 = vmax.f32 %v3913, %v3929
          %v3946 = vmax.f32 %v3914, %v3930
          %v3947 = vmax.f32 %v3915, %v3931
          %v3948 = vmax.f32 %v3916, %v3932
          %v3949 = vmax.f32 %v3917, %v3933
          %v3950 = vmax.f32 %v3918, %v3934
          %v3951 = vmax.f32 %v3919, %v3935
          %v3952 = vmax.f32 %v3920, %v3936
          %v3953 = vmax.f32 %v3921, %v3937
          %v3954 = vld [vmem:[%s3001] sm:$0xff]
          %v3955 = vld [vmem:[%s3001 + $0x8] sm:$0xff]
          %v3956 = vld [vmem:[%s3001 + $0x10] sm:$0xff]
          %v3957 = vld [vmem:[%s3001 + $0x18] sm:$0xff]
          %v3958 = vld [vmem:[%s3001 + $0x20] sm:$0xff]
          %v3959 = vld [vmem:[%s3001 + $0x28] sm:$0xff]
          %v3960 = vld [vmem:[%s3001 + $0x30] sm:$0xff]
          %v3961 = vld [vmem:[%s3001 + $0x38] sm:$0xff]
          %v3962 = vld [vmem:[%s3001 + $0x40] sm:$0xff]
          %v3963 = vld [vmem:[%s3001 + $0x48] sm:$0xff]
          %v3964 = vld [vmem:[%s3001 + $0x50] sm:$0xff]
          %v3965 = vld [vmem:[%s3001 + $0x58] sm:$0xff]
          %v3966 = vld [vmem:[%s3001 + $0x60] sm:$0xff]
          %v3967 = vld [vmem:[%s3001 + $0x68] sm:$0xff]
          %v3968 = vld [vmem:[%s3001 + $0x70] sm:$0xff]
          %v3969 = vld [vmem:[%s3001 + $0x78] sm:$0xff]
          %v3970 = vmax.f32 %v3938, %v3954
          %v3971 = vmax.f32 %v3939, %v3955
          %v3972 = vmax.f32 %v3940, %v3956
          %v3973 = vmax.f32 %v3941, %v3957
          %v3974 = vmax.f32 %v3942, %v3958
          %v3975 = vmax.f32 %v3943, %v3959
          %v3976 = vmax.f32 %v3944, %v3960
          %v3977 = vmax.f32 %v3945, %v3961
          %v3978 = vmax.f32 %v3946, %v3962
          %v3979 = vmax.f32 %v3947, %v3963
          %v3980 = vmax.f32 %v3948, %v3964
          %v3981 = vmax.f32 %v3949, %v3965
          %v3982 = vmax.f32 %v3950, %v3966
          %v3983 = vmax.f32 %v3951, %v3967
          %v3984 = vmax.f32 %v3952, %v3968
          %v3985 = vmax.f32 %v3953, %v3969
          %v3986 = vld [vmem:[%s3372] sm:$0xff]
          %v3987 = vld [vmem:[%s3372 + $0x8] sm:$0xff]
          %v3988 = vld [vmem:[%s3372 + $0x10] sm:$0xff]
          %v3989 = vld [vmem:[%s3372 + $0x18] sm:$0xff]
          %v3990 = vld [vmem:[%s3372 + $0x20] sm:$0xff]
          %v3991 = vld [vmem:[%s3372 + $0x28] sm:$0xff]
          %v3992 = vld [vmem:[%s3372 + $0x30] sm:$0xff]
          %v3993 = vld [vmem:[%s3372 + $0x38] sm:$0xff]
          %v3994 = vld [vmem:[%s3372 + $0x40] sm:$0xff]
          %v3995 = vld [vmem:[%s3372 + $0x48] sm:$0xff]
          %v3996 = vld [vmem:[%s3372 + $0x50] sm:$0xff]
          %v3997 = vld [vmem:[%s3372 + $0x58] sm:$0xff]
          %v3998 = vld [vmem:[%s3372 + $0x60] sm:$0xff]
          %v3999 = vld [vmem:[%s3372 + $0x68] sm:$0xff]
          %v4000 = vld [vmem:[%s3372 + $0x70] sm:$0xff]
          %v4001 = vld [vmem:[%s3372 + $0x78] sm:$0xff]
          %v4002 = vmax.f32 %v3970, %v3986
          %v4003 = vmax.f32 %v3971, %v3987
          %v4004 = vmax.f32 %v3972, %v3988
          %v4005 = vmax.f32 %v3973, %v3989
          %v4006 = vmax.f32 %v3974, %v3990
          %v4007 = vmax.f32 %v3975, %v3991
          %v4008 = vmax.f32 %v3976, %v3992
          %v4009 = vmax.f32 %v3977, %v3993
          %v4010 = vmax.f32 %v3978, %v3994
          %v4011 = vmax.f32 %v3979, %v3995
          %v4012 = vmax.f32 %v3980, %v3996
          %v4013 = vmax.f32 %v3981, %v3997
          %v4014 = vmax.f32 %v3982, %v3998
          %v4015 = vmax.f32 %v3983, %v3999
          %v4016 = vmax.f32 %v3984, %v4000
          %v4017 = vmax.f32 %v3985, %v4001
          %4018 = vst [vmem:[%s248] sm:$0xff] %v4002
          %4019 = vst [vmem:[%s248 + $0x8] sm:$0xff] %v4003
          %4020 = vst [vmem:[%s248 + $0x10] sm:$0xff] %v4004
          %4021 = vst [vmem:[%s248 + $0x18] sm:$0xff] %v4005
          %4022 = vst [vmem:[%s248 + $0x20] sm:$0xff] %v4006
          %4023 = vst [vmem:[%s248 + $0x28] sm:$0xff] %v4007
          %4024 = vst [vmem:[%s248 + $0x30] sm:$0xff] %v4008
          %4025 = vst [vmem:[%s248 + $0x38] sm:$0xff] %v4009
          %4026 = vst [vmem:[%s248 + $0x40] sm:$0xff] %v4010
          %4027 = vst [vmem:[%s248 + $0x48] sm:$0xff] %v4011
          %4028 = vst [vmem:[%s248 + $0x50] sm:$0xff] %v4012
          %4029 = vst [vmem:[%s248 + $0x58] sm:$0xff] %v4013
          %4030 = vst [vmem:[%s248 + $0x60] sm:$0xff] %v4014
          %4031 = vst [vmem:[%s248 + $0x68] sm:$0xff] %v4015
          %4032 = vst [vmem:[%s248 + $0x70] sm:$0xff] %v4016
          %4033 = vst [vmem:[%s248 + $0x78] sm:$0xff] %v4017
        $region44: #{tpu_custom_call.1} parent=27 // pred_fallthru
          _
        %s4034 = sand.u32 %s120, 1
        %s4035 = scalar_lea.sflag [#allocation7], %s4034
        %s4036 = sand.u32 %s120, 1
        %s4037 = smul.addr %s4036, 128
        %s4038 = scalar_lea.vmem [#allocation10], %s4037
        // Predicated region
        $region45: #{tpu_custom_call.1} parent=27 // pred_check
          %p4039 = pneg %p130
        $region46: #{tpu_custom_call.1} parent=27 // pred_check_branch
          %4041 = sbr.rel (%p4039) target = $region48
        $region47: #{tpu_custom_call.1} parent=27 // pred_region
          %s4042 = smul.u32 16, %s33
          %s4044 = ssub.s32 2048, 2048
          %4045 = vsyncadd %s4035, %s4044
          %s4046 = smul.addr %s4042, 2
          %s4047 = sadd.s32 %s32, %s4046
          %s4048 = smul.addr %s4047, 128
          %s4049 = scalar_lea.hbm %s3, %s4048
          %s4050 = sshll.u32 %s4038, 4
          %s4051 = int_to_ptr.vmem [resolvable:$true] %s4050
          %4056 = dma.vmem_to_hbm [thread:$0]  %s4051, 2048, %s4049, %s4035, 128, 256, 8
        $region48: #{tpu_custom_call.1} parent=27 // pred_fallthru
          _
      $region28: #{tpu_custom_call.1} parent=5 // pred_fallthru
        _
      %p4057 = scmp.le.s32.totalorder 2, %s22
      // Predicated region
      $region49: #{tpu_custom_call.1} parent=5 // pred_check
        %p4058 = pneg %p4057
      $region50: #{tpu_custom_call.1} parent=5 // pred_check_branch
        %4060 = sbr.rel (%p4058) target = $region52
      $region51: #{tpu_custom_call.1} parent=5 // pred_region
        %s4061 = ssub.s32 %s22, 2
        // Predicated region
        $region53: #{tpu_custom_call.1} parent=51 // pred_check
          %p4062 = pneg %p136
        $region54: #{tpu_custom_call.1} parent=51 // pred_check_branch
          %4064 = sbr.rel (%p4062) target = $region56
        $region55: #{tpu_custom_call.1} parent=51 // pred_region
          %s4065 = sand.u32 %s121, 1
          %s4066 = scalar_lea.sflag [#allocation7], %s4065
          %s4067 = sand.u32 %s121, 1
          %s4068 = smul.addr %s4067, 128
          %s4069 = scalar_lea.vmem [#allocation10], %s4068
          %4070 = dma.done %s4066, 2048
        $region56: #{tpu_custom_call.1} parent=51 // pred_fallthru
          _
      $region52: #{tpu_custom_call.1} parent=5 // pred_fallthru
        _
    $region6: #{tpu_custom_call.1} parent=1 // loop_footer
      %s26 = sadd.s32 1, %s22
    $region7: #{tpu_custom_call.1} parent=1 // loop_footer_branch
      %21 = sbr.rel target = $region3
    $region8: #{tpu_custom_call.1} parent=1 // loop_exit
      _
    %4071 = vsyncpa [#allocation6], 1
    %s4072 = scalar_lea.sflag [#allocation6], 1
    %4073 = vsyncpa %s4072, 1
    %4074 = vsyncpa [#allocation9], 1
    %s4075 = scalar_lea.sflag [#allocation9], 1
    %4076 = vsyncpa %s4075, 1
    %4077 = vsyncpa [#allocation7], 1
    %s4078 = scalar_lea.sflag [#allocation7], 1
    %4079 = vsyncpa %s4078, 1

</llo_original>
